<compile_context>
chip_gen: v7x
topology: tpu7x:2x2x1
jax: 0.10.0
libtpu: 0.0.40
codegen_flags: <defaults>
</compile_context>

<pallas_src>
import functools

import jax
import jax.numpy as jnp
from jax import lax
from jax.experimental import pallas as pl
from jax.experimental.pallas import tpu as pltpu

LANE = 128


def _round_up(x, m):
    return (x + m - 1) // m * m


def _vmem_limit_bytes():
    # Per-generation VMEM budget: ~70% of physical, capped at 96 MiB.
    #   -> ~89 MiB on v5e/v6e (128 MiB physical), ~44 MiB on v7x (64 MiB physical).
    try:
        cap = pltpu.get_tpu_info().vmem_capacity_bytes
    except Exception:  # conservative fallback if the query is unavailable
        cap = 64 * 1024 * 1024
    return max(32 * 1024 * 1024, min(96 * 1024 * 1024, int(cap) * 7 // 10))


def _pick_row_tile(Ho, Wo, target_rows, sublane):
    """Largest divisor of Ho such that TH*Wo <= target_rows (>= ~512 rows amortizes the
    per-grid-step overhead and sits on the HBM-roofline plateau).  TH > 1 additionally
    requires Wo % sublane == 0 so the in-kernel (TH, Wo, C) <-> (TH*Wo, C) reshapes are
    pure layout views (no relayout)."""
    if Wo % sublane != 0:
        return 1
    th = 1
    for d in range(1, Ho + 1):
        if Ho % d == 0 and d * Wo <= max(target_rows, Wo):
            th = d
    return th


# --------- Pass 1: in-kernel im2col conv (MXU) + per-tile channel sum / sumsq ----------
def _conv_stats_kernel(x_ref, w_ref, y_ref, stats_ref, *,
                       KH, KW, stride, TH, Wo, Cin, C_pad):
    # x_ref:     (1, Hp, Wp, Cin)    padded NHWC image; resident across the row-tile axis
    # w_ref:     (KH*KW, Cin, C_pad) per-tap weights (block-diagonal over groups)
    # y_ref:     (1, TH, Wo, C_pad)  conv output tile (f32 or bf16)
    # stats_ref: (1, 1, 8, C_pad)    row 0 = partial sum, row 1 = partial sum of squares
    t = pl.program_id(1)
    r0 = t * (TH * stride)
    if (TH * stride) % 8 == 0:
        r0 = pl.multiple_of(r0, 8)

    acc = jnp.zeros((TH * Wo, C_pad), jnp.float32)
    for kh in range(KH):
        for kw in range(KW):
            if stride == 1:
                xs = x_ref[0, pl.ds(r0 + kh, TH), pl.ds(kw, Wo), :]
            else:
                xs = x_ref[0, pl.ds(r0 + kh, TH, stride), pl.ds(kw, Wo, stride), :]
            acc = acc + jnp.dot(xs.reshape(TH * Wo, Cin), w_ref[kh * KW + kw],
                                preferred_element_type=jnp.float32)

    # Stats are taken from the f32 MXU result; the intermediate may be stored as bf16.
    y_ref[0] = acc.reshape(TH, Wo, C_pad).astype(y_ref.dtype)

    row = lax.broadcasted_iota(jnp.int32, (8, C_pad), 0)
    psum = jnp.sum(acc, axis=0, keepdims=True)
    psumsq = jnp.sum(acc * acc, axis=0, keepdims=True)
    stats_ref[0, 0] = jnp.where(row == 0, psum, jnp.where(row == 1, psumsq, 0.0))


# --------------------- Pass 2: BN affine (folded scale/shift) + SiLU --------------------
def _bn_silu_kernel(y_ref, scale_ref, shift_ref, o_ref, *, fast_sigmoid):
    z = y_ref[...].astype(jnp.float32) * scale_ref[...] + shift_ref[...]
    # exp() on the EUP; approx=True routes the reciprocal to the EUP vrcp slot as well.
    sig = pl.reciprocal(1.0 + jnp.exp(-z), approx=fast_sigmoid)
    o_ref[...] = (z * sig).astype(o_ref.dtype)


def cnn_block_forward(x_nchw, weight, gamma, beta, *, stride, padding, groups=1,
                      eps=1e-5, target_tile_rows=512,
                      compute_dtype=jnp.bfloat16, fast_sigmoid=True):
    """Conv2d(bias=False) -> BatchNorm2d (train-mode batch stats) -> SiLU.

    `weight` has PyTorch Conv2d layout (Cout, Cin//groups, KH, KW); input/output are NCHW.
    """
    N, Cin, H, W = x_nchw.shape
    Cout, cin_g, KH, KW = weight.shape
    assert Cin % groups == 0 and Cout % groups == 0 and cin_g == Cin // groups
    Ho = (H + 2 * padding - KH) // stride + 1
    Wo = (W + 2 * padding - KW) // stride + 1
    Hp, Wp = H + 2 * padding, W + 2 * padding
    C_pad = _round_up(Cout, LANE)
    M = N * Ho * Wo

    compute_dtype = jnp.dtype(compute_dtype)
    is_bf16 = compute_dtype == jnp.dtype(jnp.bfloat16)
    interm_dtype = jnp.bfloat16 if is_bf16 else jnp.float32
    c_bytes = compute_dtype.itemsize
    i_bytes = jnp.dtype(interm_dtype).itemsize

    TH = _pick_row_tile(Ho, Wo, target_tile_rows, 16 if is_bf16 else 8)
    T = Ho // TH
    vmem_limit = _vmem_limit_bytes()

    # ---- glue: NCHW -> spatially padded NHWC (one layout pass; no im2col blow-up) ----
    # TODO(synk): accept/produce NHWC directly to drop both layout transposes when the
    # surrounding network keeps activations in NHWC.
    x = jnp.transpose(x_nchw, (0, 2, 3, 1))
    x = jnp.pad(x, ((0, 0), (padding, padding), (padding, padding), (0, 0)))
    x = x.astype(compute_dtype)

    # ---- glue: per-tap (KH*KW, Cin, C_pad) weights, block-diagonal over groups ----
    # TODO(synk): groups>1 (esp. depthwise) wastes MXU work / weight bytes by `groups`x; a
    # grid axis over groups (or a VPU depthwise kernel) would avoid the dense block-diagonal.
    w_taps = jnp.zeros((KH * KW, Cin, C_pad), jnp.float32)
    cpg_in, cpg_out = Cin // groups, Cout // groups
    for g in range(groups):
        wg = jnp.transpose(weight[g * cpg_out:(g + 1) * cpg_out].astype(jnp.float32),
                           (2, 3, 1, 0)).reshape(KH * KW, cpg_in, cpg_out)
        w_taps = w_taps.at[:, g * cpg_in:(g + 1) * cpg_in,
                           g * cpg_out:(g + 1) * cpg_out].set(wg)
    w_taps = w_taps.astype(compute_dtype)

    # ---- Pass 1: conv matmuls + per-tile channel statistics (both grid axes parallel) ----
    # TODO(synk): for very large images / weight matrices, add row-window input blocks and
    # K/C tile grid axes instead of keeping the whole image & weight resident (v7x: 64 MiB).
    conv_kernel = functools.partial(_conv_stats_kernel, KH=KH, KW=KW, stride=stride,
                                    TH=TH, Wo=Wo, Cin=Cin, C_pad=C_pad)
    conv_out, stats = pl.pallas_call(
        conv_kernel,
        out_shape=(
            jax.ShapeDtypeStruct((N, Ho, Wo, C_pad), interm_dtype),
            jax.ShapeDtypeStruct((N, T, 8, C_pad), jnp.float32),
        ),
        grid=(N, T),
        in_specs=[
            # Whole padded image per batch element: re-DMA'd only when n changes.
            pl.BlockSpec((1, Hp, Wp, Cin), lambda n, t: (n, 0, 0, 0)),
            pl.BlockSpec((KH * KW, Cin, C_pad), lambda n, t: (0, 0, 0)),
        ],
        out_specs=(
            pl.BlockSpec((1, TH, Wo, C_pad), lambda n, t: (n, t, 0, 0)),
            pl.BlockSpec((1, 1, 8, C_pad), lambda n, t: (n, t, 0, 0)),
        ),
        compiler_params=pltpu.CompilerParams(
            dimension_semantics=("parallel", "parallel"),   # no grid-carried state
            vmem_limit_bytes=vmem_limit,
        ),
        cost_estimate=pl.CostEstimate(
            flops=2 * M * KH * KW * Cin * C_pad + 3 * M * C_pad,
            transcendentals=0,
            bytes_accessed=(N * Hp * Wp * Cin * c_bytes + KH * KW * Cin * C_pad * c_bytes
                            + M * C_pad * i_bytes + N * T * 8 * C_pad * 4),
        ),
    )(x, w_taps)

    # ---- tiny jnp fold: hierarchical reduction of partials -> BN scale/shift ----
    # TODO(synk): PyTorch BatchNorm2d also updates running_mean/running_var in training;
    # those buffers are not produced here.
    ch_sum = jnp.sum(stats[:, :, 0, :], axis=(0, 1))
    ch_sumsq = jnp.sum(stats[:, :, 1, :], axis=(0, 1))
    mean = ch_sum / float(M)
    var = jnp.maximum(ch_sumsq / float(M) - mean * mean, 0.0)   # biased (train-mode) variance
    inv_std = lax.rsqrt(var + eps)
    gamma_p = jnp.pad(gamma.astype(jnp.float32), (0, C_pad - Cout))
    beta_p = jnp.pad(beta.astype(jnp.float32), (0, C_pad - Cout))
    scale = (gamma_p * inv_std).reshape(1, 1, 1, C_pad)
    shift = (beta_p - mean * gamma_p * inv_std).reshape(1, 1, 1, C_pad)

    # ---- Pass 2: BN affine + SiLU, in place on the conv intermediate ----
    # TODO(synk): when M*C_pad*i_bytes fits VMEM (~40 MiB v7x / ~90 MiB v5e,v6e) the two
    # passes could be fused into one pallas_call with the conv tiles held in VMEM scratch,
    # removing the intermediate's HBM write+read entirely.
    bn_kernel = functools.partial(_bn_silu_kernel, fast_sigmoid=fast_sigmoid)
    out = pl.pallas_call(
        bn_kernel,
        out_shape=jax.ShapeDtypeStruct((N, Ho, Wo, C_pad), interm_dtype),
        grid=(N, T),
        in_specs=[
            pl.BlockSpec((1, TH, Wo, C_pad), lambda n, t: (n, t, 0, 0)),
            pl.BlockSpec((1, 1, 1, C_pad), lambda n, t: (0, 0, 0, 0)),
            pl.BlockSpec((1, 1, 1, C_pad), lambda n, t: (0, 0, 0, 0)),
        ],
        out_specs=pl.BlockSpec((1, TH, Wo, C_pad), lambda n, t: (n, t, 0, 0)),
        input_output_aliases={0: 0},          # reuse the intermediate's HBM buffer
        compiler_params=pltpu.CompilerParams(
            dimension_semantics=("parallel", "parallel"),   # elementwise -> megacore-shardable
            vmem_limit_bytes=vmem_limit,
        ),
        cost_estimate=pl.CostEstimate(
            flops=6 * M * C_pad,
            transcendentals=M * C_pad,
            bytes_accessed=2 * M * C_pad * i_bytes + 2 * C_pad * 4,
        ),
    )(conv_out, scale, shift)

    # ---- glue: strip channel padding, NHWC -> NCHW, restore input dtype ----
    return jnp.transpose(out[..., :Cout], (0, 3, 1, 2)).astype(x_nchw.dtype)


def _reference(x_nchw, weight, gamma, beta, *, stride, padding, groups, eps=1e-5):
    y = lax.conv_general_dilated(
        x_nchw.astype(jnp.float32), weight.astype(jnp.float32),
        window_strides=(stride, stride),
        padding=[(padding, padding), (padding, padding)],
        feature_group_count=groups,
        dimension_numbers=("NCHW", "OIHW", "NCHW"))
    mean = jnp.mean(y, axis=(0, 2, 3), keepdims=True)
    var = jnp.mean((y - mean) ** 2, axis=(0, 2, 3), keepdims=True)
    z = (y - mean) / jnp.sqrt(var + eps)
    z = z * gamma.reshape(1, -1, 1, 1) + beta.reshape(1, -1, 1, 1)
    return z * jax.nn.sigmoid(z)


if __name__ == "__main__":
    # CNNBlock(in_channels=4, out_channels=8, kernel_size=3, stride=1, padding=1, groups=1)
    # applied to x: (2, 4, 16, 16).
    N, Cin, H, W = 2, 4, 16, 16
    Cout, KH, KW = 8, 3, 3
    stride, padding, groups = 1, 1, 1

    key = jax.random.PRNGKey(0)
    kx, kw = jax.random.split(key)
    x = jax.random.normal(kx, (N, Cin, H, W), dtype=jnp.float32)
    weight = jax.random.normal(kw, (Cout, Cin // groups, KH, KW), dtype=jnp.float32) * 0.1
    gamma = jnp.ones((Cout,), jnp.float32)
    beta = jnp.zeros((Cout,), jnp.float32)

    ref = jax.block_until_ready(
        _reference(x, weight, gamma, beta, stride=stride, padding=padding, groups=groups))

    # Strict path: f32 matmul / f32 intermediate / exact sigmoid (PyTorch-default dtype).
    fwd_f32 = jax.jit(functools.partial(
        cnn_block_forward, stride=stride, padding=padding, groups=groups,
        compute_dtype=jnp.float32, fast_sigmoid=False))
    out = jax.block_until_ready(fwd_f32(x, weight, gamma, beta))
    assert out.shape == (N, Cout, H, W), out.shape
    assert jnp.allclose(out, ref, rtol=1e-4, atol=1e-4), float(jnp.max(jnp.abs(out - ref)))

    # Default fast path: bf16 matmul inputs + bf16 conv intermediate + EUP approx sigmoid
    # (f32 accumulation / statistics / BN math throughout).
    fwd_fast = jax.jit(functools.partial(
        cnn_block_forward, stride=stride, padding=padding, groups=groups))
    out_fast = jax.block_until_ready(fwd_fast(x, weight, gamma, beta))
    assert jnp.allclose(out_fast, ref, rtol=5e-2, atol=5e-2), \
        float(jnp.max(jnp.abs(out_fast - ref)))

    print("KERNEL_OK")
</pallas_src>

<mosaic_0001>
module attributes {stable_mosaic.version = 11 : i64} {
  func.func @_conv_stats_kernel(%arg0: i32, %arg1: i32, %arg2: memref<1x18x18x4xf32, #tpu.memory_space<vmem>>, %arg3: memref<9x4x128xf32, #tpu.memory_space<vmem>>, %arg4: memref<1x16x16x128xf32, #tpu.memory_space<vmem>>, %arg5: memref<1x1x8x128xf32, #tpu.memory_space<vmem>>) attributes {dimension_semantics = [#tpu.dimension_semantics<parallel>, #tpu.dimension_semantics<parallel>], iteration_bounds = array<i64: 2, 1>, scalar_prefetch = 0 : i64, scratch_operands = 0 : i64, tpu.core_type = #tpu.core_type<tc>, window_params = [{transform_indices = @transform_0, window_bounds = array<i64: 1, 18, 18, 4>}, {pipeline_mode = #tpu.pipeline_mode<synchronous>, transform_indices = @transform_1, window_bounds = array<i64: 9, 4, 128>}, {transform_indices = @transform_2, window_bounds = array<i64: 1, 16, 16, 128>}, {transform_indices = @transform_3, window_bounds = array<i64: 1, 1, 8, 128>}]} {
    %c16_i32 = arith.constant 16 : i32
    %0 = arith.muli %arg1, %c16_i32 : i32
    %1 = tpu.assume_multiple %0, 8 : i32
    %cst = arith.constant 0.000000e+00 : f32
    %2 = vector.broadcast %cst : f32 to vector<256x128xf32>
    %c0_i32 = arith.constant 0 : i32
    %3 = arith.addi %1, %c0_i32 : i32
    %c0 = arith.constant 0 : index
    %4 = arith.index_cast %3 : i32 to index
    %c0_0 = arith.constant 0 : index
    %c0_1 = arith.constant 0 : index
    %5 = vector.load %arg2[%c0, %4, %c0_0, %c0_1] : memref<1x18x18x4xf32, #tpu.memory_space<vmem>>, vector<1x16x16x4xf32>
    %6 = vector.shape_cast %5 : vector<1x16x16x4xf32> to vector<16x16x4xf32>
    %7 = vector.shape_cast %6 : vector<16x16x4xf32> to vector<256x4xf32>
    %c0_2 = arith.constant 0 : index
    %c0_3 = arith.constant 0 : index
    %c0_4 = arith.constant 0 : index
    %8 = vector.load %arg3[%c0_2, %c0_3, %c0_4] : memref<9x4x128xf32, #tpu.memory_space<vmem>>, vector<1x4x128xf32>
    %9 = vector.shape_cast %8 : vector<1x4x128xf32> to vector<4x128xf32>
    %cst_5 = arith.constant dense<0.000000e+00> : vector<256x128xf32>
    %10 = tpu.matmul %7, %9, %cst_5 {dimension_numbers = #tpu.dot_dimension_numbers<[1], [0], [0], [1], [0, 0, 1, 1], [], []>} : vector<256x4xf32>, vector<4x128xf32>, vector<256x128xf32> -> vector<256x128xf32>
    %11 = arith.addf %2, %10 : vector<256x128xf32>
    %c0_i32_6 = arith.constant 0 : i32
    %12 = arith.addi %1, %c0_i32_6 : i32
    %c0_7 = arith.constant 0 : index
    %13 = arith.index_cast %12 : i32 to index
    %c1 = arith.constant 1 : index
    %c0_8 = arith.constant 0 : index
    %14 = vector.load %arg2[%c0_7, %13, %c1, %c0_8] : memref<1x18x18x4xf32, #tpu.memory_space<vmem>>, vector<1x16x16x4xf32>
    %15 = vector.shape_cast %14 : vector<1x16x16x4xf32> to vector<16x16x4xf32>
    %16 = vector.shape_cast %15 : vector<16x16x4xf32> to vector<256x4xf32>
    %c1_9 = arith.constant 1 : index
    %c0_10 = arith.constant 0 : index
    %c0_11 = arith.constant 0 : index
    %17 = vector.load %arg3[%c1_9, %c0_10, %c0_11] : memref<9x4x128xf32, #tpu.memory_space<vmem>>, vector<1x4x128xf32>
    %18 = vector.shape_cast %17 : vector<1x4x128xf32> to vector<4x128xf32>
    %cst_12 = arith.constant dense<0.000000e+00> : vector<256x128xf32>
    %19 = tpu.matmul %16, %18, %cst_12 {dimension_numbers = #tpu.dot_dimension_numbers<[1], [0], [0], [1], [0, 0, 1, 1], [], []>} : vector<256x4xf32>, vector<4x128xf32>, vector<256x128xf32> -> vector<256x128xf32>
    %20 = arith.addf %11, %19 : vector<256x128xf32>
    %c0_i32_13 = arith.constant 0 : i32
    %21 = arith.addi %1, %c0_i32_13 : i32
    %c0_14 = arith.constant 0 : index
    %22 = arith.index_cast %21 : i32 to index
    %c2 = arith.constant 2 : index
    %c0_15 = arith.constant 0 : index
    %23 = vector.load %arg2[%c0_14, %22, %c2, %c0_15] : memref<1x18x18x4xf32, #tpu.memory_space<vmem>>, vector<1x16x16x4xf32>
    %24 = vector.shape_cast %23 : vector<1x16x16x4xf32> to vector<16x16x4xf32>
    %25 = vector.shape_cast %24 : vector<16x16x4xf32> to vector<256x4xf32>
    %c2_16 = arith.constant 2 : index
    %c0_17 = arith.constant 0 : index
    %c0_18 = arith.constant 0 : index
    %26 = vector.load %arg3[%c2_16, %c0_17, %c0_18] : memref<9x4x128xf32, #tpu.memory_space<vmem>>, vector<1x4x128xf32>
    %27 = vector.shape_cast %26 : vector<1x4x128xf32> to vector<4x128xf32>
    %cst_19 = arith.constant dense<0.000000e+00> : vector<256x128xf32>
    %28 = tpu.matmul %25, %27, %cst_19 {dimension_numbers = #tpu.dot_dimension_numbers<[1], [0], [0], [1], [0, 0, 1, 1], [], []>} : vector<256x4xf32>, vector<4x128xf32>, vector<256x128xf32> -> vector<256x128xf32>
    %29 = arith.addf %20, %28 : vector<256x128xf32>
    %c1_i32 = arith.constant 1 : i32
    %30 = arith.addi %1, %c1_i32 : i32
    %c0_20 = arith.constant 0 : index
    %31 = arith.index_cast %30 : i32 to index
    %c0_21 = arith.constant 0 : index
    %c0_22 = arith.constant 0 : index
    %32 = vector.load %arg2[%c0_20, %31, %c0_21, %c0_22] : memref<1x18x18x4xf32, #tpu.memory_space<vmem>>, vector<1x16x16x4xf32>
    %33 = vector.shape_cast %32 : vector<1x16x16x4xf32> to vector<16x16x4xf32>
    %34 = vector.shape_cast %33 : vector<16x16x4xf32> to vector<256x4xf32>
    %c3 = arith.constant 3 : index
    %c0_23 = arith.constant 0 : index
    %c0_24 = arith.constant 0 : index
    %35 = vector.load %arg3[%c3, %c0_23, %c0_24] : memref<9x4x128xf32, #tpu.memory_space<vmem>>, vector<1x4x128xf32>
    %36 = vector.shape_cast %35 : vector<1x4x128xf32> to vector<4x128xf32>
    %cst_25 = arith.constant dense<0.000000e+00> : vector<256x128xf32>
    %37 = tpu.matmul %34, %36, %cst_25 {dimension_numbers = #tpu.dot_dimension_numbers<[1], [0], [0], [1], [0, 0, 1, 1], [], []>} : vector<256x4xf32>, vector<4x128xf32>, vector<256x128xf32> -> vector<256x128xf32>
    %38 = arith.addf %29, %37 : vector<256x128xf32>
    %c1_i32_26 = arith.constant 1 : i32
    %39 = arith.addi %1, %c1_i32_26 : i32
    %c0_27 = arith.constant 0 : index
    %40 = arith.index_cast %39 : i32 to index
    %c1_28 = arith.constant 1 : index
    %c0_29 = arith.constant 0 : index
    %41 = vector.load %arg2[%c0_27, %40, %c1_28, %c0_29] : memref<1x18x18x4xf32, #tpu.memory_space<vmem>>, vector<1x16x16x4xf32>
    %42 = vector.shape_cast %41 : vector<1x16x16x4xf32> to vector<16x16x4xf32>
    %43 = vector.shape_cast %42 : vector<16x16x4xf32> to vector<256x4xf32>
    %c4 = arith.constant 4 : index
    %c0_30 = arith.constant 0 : index
    %c0_31 = arith.constant 0 : index
    %44 = vector.load %arg3[%c4, %c0_30, %c0_31] : memref<9x4x128xf32, #tpu.memory_space<vmem>>, vector<1x4x128xf32>
    %45 = vector.shape_cast %44 : vector<1x4x128xf32> to vector<4x128xf32>
    %cst_32 = arith.constant dense<0.000000e+00> : vector<256x128xf32>
    %46 = tpu.matmul %43, %45, %cst_32 {dimension_numbers = #tpu.dot_dimension_numbers<[1], [0], [0], [1], [0, 0, 1, 1], [], []>} : vector<256x4xf32>, vector<4x128xf32>, vector<256x128xf32> -> vector<256x128xf32>
    %47 = arith.addf %38, %46 : vector<256x128xf32>
    %c1_i32_33 = arith.constant 1 : i32
    %48 = arith.addi %1, %c1_i32_33 : i32
    %c0_34 = arith.constant 0 : index
    %49 = arith.index_cast %48 : i32 to index
    %c2_35 = arith.constant 2 : index
    %c0_36 = arith.constant 0 : index
    %50 = vector.load %arg2[%c0_34, %49, %c2_35, %c0_36] : memref<1x18x18x4xf32, #tpu.memory_space<vmem>>, vector<1x16x16x4xf32>
    %51 = vector.shape_cast %50 : vector<1x16x16x4xf32> to vector<16x16x4xf32>
    %52 = vector.shape_cast %51 : vector<16x16x4xf32> to vector<256x4xf32>
    %c5 = arith.constant 5 : index
    %c0_37 = arith.constant 0 : index
    %c0_38 = arith.constant 0 : index
    %53 = vector.load %arg3[%c5, %c0_37, %c0_38] : memref<9x4x128xf32, #tpu.memory_space<vmem>>, vector<1x4x128xf32>
    %54 = vector.shape_cast %53 : vector<1x4x128xf32> to vector<4x128xf32>
    %cst_39 = arith.constant dense<0.000000e+00> : vector<256x128xf32>
    %55 = tpu.matmul %52, %54, %cst_39 {dimension_numbers = #tpu.dot_dimension_numbers<[1], [0], [0], [1], [0, 0, 1, 1], [], []>} : vector<256x4xf32>, vector<4x128xf32>, vector<256x128xf32> -> vector<256x128xf32>
    %56 = arith.addf %47, %55 : vector<256x128xf32>
    %c2_i32 = arith.constant 2 : i32
    %57 = arith.addi %1, %c2_i32 : i32
    %c0_40 = arith.constant 0 : index
    %58 = arith.index_cast %57 : i32 to index
    %c0_41 = arith.constant 0 : index
    %c0_42 = arith.constant 0 : index
    %59 = vector.load %arg2[%c0_40, %58, %c0_41, %c0_42] : memref<1x18x18x4xf32, #tpu.memory_space<vmem>>, vector<1x16x16x4xf32>
    %60 = vector.shape_cast %59 : vector<1x16x16x4xf32> to vector<16x16x4xf32>
    %61 = vector.shape_cast %60 : vector<16x16x4xf32> to vector<256x4xf32>
    %c6 = arith.constant 6 : index
    %c0_43 = arith.constant 0 : index
    %c0_44 = arith.constant 0 : index
    %62 = vector.load %arg3[%c6, %c0_43, %c0_44] : memref<9x4x128xf32, #tpu.memory_space<vmem>>, vector<1x4x128xf32>
    %63 = vector.shape_cast %62 : vector<1x4x128xf32> to vector<4x128xf32>
    %cst_45 = arith.constant dense<0.000000e+00> : vector<256x128xf32>
    %64 = tpu.matmul %61, %63, %cst_45 {dimension_numbers = #tpu.dot_dimension_numbers<[1], [0], [0], [1], [0, 0, 1, 1], [], []>} : vector<256x4xf32>, vector<4x128xf32>, vector<256x128xf32> -> vector<256x128xf32>
    %65 = arith.addf %56, %64 : vector<256x128xf32>
    %c2_i32_46 = arith.constant 2 : i32
    %66 = arith.addi %1, %c2_i32_46 : i32
    %c0_47 = arith.constant 0 : index
    %67 = arith.index_cast %66 : i32 to index
    %c1_48 = arith.constant 1 : index
    %c0_49 = arith.constant 0 : index
    %68 = vector.load %arg2[%c0_47, %67, %c1_48, %c0_49] : memref<1x18x18x4xf32, #tpu.memory_space<vmem>>, vector<1x16x16x4xf32>
    %69 = vector.shape_cast %68 : vector<1x16x16x4xf32> to vector<16x16x4xf32>
    %70 = vector.shape_cast %69 : vector<16x16x4xf32> to vector<256x4xf32>
    %c7 = arith.constant 7 : index
    %c0_50 = arith.constant 0 : index
    %c0_51 = arith.constant 0 : index
    %71 = vector.load %arg3[%c7, %c0_50, %c0_51] : memref<9x4x128xf32, #tpu.memory_space<vmem>>, vector<1x4x128xf32>
    %72 = vector.shape_cast %71 : vector<1x4x128xf32> to vector<4x128xf32>
    %cst_52 = arith.constant dense<0.000000e+00> : vector<256x128xf32>
    %73 = tpu.matmul %70, %72, %cst_52 {dimension_numbers = #tpu.dot_dimension_numbers<[1], [0], [0], [1], [0, 0, 1, 1], [], []>} : vector<256x4xf32>, vector<4x128xf32>, vector<256x128xf32> -> vector<256x128xf32>
    %74 = arith.addf %65, %73 : vector<256x128xf32>
    %c2_i32_53 = arith.constant 2 : i32
    %75 = arith.addi %1, %c2_i32_53 : i32
    %c0_54 = arith.constant 0 : index
    %76 = arith.index_cast %75 : i32 to index
    %c2_55 = arith.constant 2 : index
    %c0_56 = arith.constant 0 : index
    %77 = vector.load %arg2[%c0_54, %76, %c2_55, %c0_56] : memref<1x18x18x4xf32, #tpu.memory_space<vmem>>, vector<1x16x16x4xf32>
    %78 = vector.shape_cast %77 : vector<1x16x16x4xf32> to vector<16x16x4xf32>
    %79 = vector.shape_cast %78 : vector<16x16x4xf32> to vector<256x4xf32>
    %c8 = arith.constant 8 : index
    %c0_57 = arith.constant 0 : index
    %c0_58 = arith.constant 0 : index
    %80 = vector.load %arg3[%c8, %c0_57, %c0_58] : memref<9x4x128xf32, #tpu.memory_space<vmem>>, vector<1x4x128xf32>
    %81 = vector.shape_cast %80 : vector<1x4x128xf32> to vector<4x128xf32>
    %cst_59 = arith.constant dense<0.000000e+00> : vector<256x128xf32>
    %82 = tpu.matmul %79, %81, %cst_59 {dimension_numbers = #tpu.dot_dimension_numbers<[1], [0], [0], [1], [0, 0, 1, 1], [], []>} : vector<256x4xf32>, vector<4x128xf32>, vector<256x128xf32> -> vector<256x128xf32>
    %83 = arith.addf %74, %82 : vector<256x128xf32>
    %84 = vector.shape_cast %83 : vector<256x128xf32> to vector<16x16x128xf32>
    %c0_60 = arith.constant 0 : index
    %c0_61 = arith.constant 0 : index
    %c0_62 = arith.constant 0 : index
    %c0_63 = arith.constant 0 : index
    %85 = vector.load %arg4[%c0_60, %c0_61, %c0_62, %c0_63] : memref<1x16x16x128xf32, #tpu.memory_space<vmem>>, vector<1x16x16x128xf32>
    %86 = vector.shape_cast %85 : vector<1x16x16x128xf32> to vector<16x16x128xf32>
    %87 = vector.shape_cast %84 : vector<16x16x128xf32> to vector<1x16x16x128xf32>
    tpu.vector_store %arg4[%c0_60, %c0_61, %c0_62, %c0_63], %87 {strides = array<i32>} : memref<1x16x16x128xf32, #tpu.memory_space<vmem>>, vector<1x16x16x128xf32>,
    %88 = tpu.iota {dimensions = array<i32: 0>} : vector<8x128xi32>
    %cst_64 = arith.constant dense<0.000000e+00> : vector<128xf32>
    %89 = vector.multi_reduction <add>, %83, %cst_64 [0] : vector<256x128xf32> to vector<128xf32>
    %90 = vector.shape_cast %89 : vector<128xf32> to vector<1x128xf32>
    %91 = arith.mulf %83, %83 : vector<256x128xf32>
    %cst_65 = arith.constant dense<0.000000e+00> : vector<128xf32>
    %92 = vector.multi_reduction <add>, %91, %cst_65 [0] : vector<256x128xf32> to vector<128xf32>
    %93 = vector.shape_cast %92 : vector<128xf32> to vector<1x128xf32>
    %c0_i32_66 = arith.constant 0 : i32
    %94 = vector.broadcast %c0_i32_66 : i32 to vector<8x128xi32>
    %95 = arith.cmpi eq, %88, %94 : vector<8x128xi32>
    %c1_i32_67 = arith.constant 1 : i32
    %96 = vector.broadcast %c1_i32_67 : i32 to vector<8x128xi32>
    %97 = arith.cmpi eq, %88, %96 : vector<8x128xi32>
    %cst_68 = arith.constant 0.000000e+00 : f32
    %98 = vector.shape_cast %93 : vector<1x128xf32> to vector<1x128xf32>
    %99 = vector.broadcast %98 : vector<1x128xf32> to vector<8x128xf32>
    %100 = vector.broadcast %cst_68 : f32 to vector<8x128xf32>
    %101 = arith.select %97, %99, %100 : vector<8x128xi1>, vector<8x128xf32>
    %102 = vector.shape_cast %90 : vector<1x128xf32> to vector<1x128xf32>
    %103 = vector.broadcast %102 : vector<1x128xf32> to vector<8x128xf32>
    %104 = arith.select %95, %103, %101 : vector<8x128xi1>, vector<8x128xf32>
    %c0_69 = arith.constant 0 : index
    %c0_70 = arith.constant 0 : index
    %c0_71 = arith.constant 0 : index
    %c0_72 = arith.constant 0 : index
    %105 = vector.load %arg5[%c0_69, %c0_70, %c0_71, %c0_72] : memref<1x1x8x128xf32, #tpu.memory_space<vmem>>, vector<1x1x8x128xf32>
    %106 = vector.shape_cast %105 : vector<1x1x8x128xf32> to vector<8x128xf32>
    %107 = vector.shape_cast %104 : vector<8x128xf32> to vector<1x1x8x128xf32>
    tpu.vector_store %arg5[%c0_69, %c0_70, %c0_71, %c0_72], %107 {strides = array<i32>} : memref<1x1x8x128xf32, #tpu.memory_space<vmem>>, vector<1x1x8x128xf32>,
    return
  }
  func.func @transform_0(%arg0: i32, %arg1: i32) -> (i32, i32, i32, i32) {
    %c0_i32 = arith.constant 0 : i32
    %c0_i32_0 = arith.constant 0 : i32
    %c0_i32_1 = arith.constant 0 : i32
    %c0_i32_2 = arith.constant 0 : i32
    return %arg0, %c0_i32, %c0_i32_0, %c0_i32_1 : i32, i32, i32, i32
  }
  func.func @transform_1(%arg0: i32, %arg1: i32) -> (i32, i32, i32) {
    %c0_i32 = arith.constant 0 : i32
    %c0_i32_0 = arith.constant 0 : i32
    %c0_i32_1 = arith.constant 0 : i32
    %c0_i32_2 = arith.constant 0 : i32
    return %c0_i32, %c0_i32_0, %c0_i32_1 : i32, i32, i32
  }
  func.func @transform_2(%arg0: i32, %arg1: i32) -> (i32, i32, i32, i32) {
    %c0_i32 = arith.constant 0 : i32
    %c0_i32_0 = arith.constant 0 : i32
    %c0_i32_1 = arith.constant 0 : i32
    return %arg0, %arg1, %c0_i32, %c0_i32_0 : i32, i32, i32, i32
  }
  func.func @transform_3(%arg0: i32, %arg1: i32) -> (i32, i32, i32, i32) {
    %c0_i32 = arith.constant 0 : i32
    %c0_i32_0 = arith.constant 0 : i32
    %c0_i32_1 = arith.constant 0 : i32
    return %arg0, %arg1, %c0_i32, %c0_i32_0 : i32, i32, i32, i32
  }
}

module attributes {stable_mosaic.version = 11 : i64} {
  func.func @_bn_silu_kernel(%arg0: i32, %arg1: i32, %arg2: memref<1x16x16x128xf32, #tpu.memory_space<vmem>>, %arg3: memref<1x1x1x128xf32, #tpu.memory_space<vmem>>, %arg4: memref<1x1x1x128xf32, #tpu.memory_space<vmem>>, %arg5: memref<1x16x16x128xf32, #tpu.memory_space<vmem>>) attributes {dimension_semantics = [#tpu.dimension_semantics<parallel>, #tpu.dimension_semantics<parallel>], iteration_bounds = array<i64: 2, 1>, scalar_prefetch = 0 : i64, scratch_operands = 0 : i64, tpu.core_type = #tpu.core_type<tc>, window_params = [{transform_indices = @transform_0, window_bounds = array<i64: 1, 16, 16, 128>}, {pipeline_mode = #tpu.pipeline_mode<synchronous>, transform_indices = @transform_1, window_bounds = array<i64: 1, 1, 1, 128>}, {pipeline_mode = #tpu.pipeline_mode<synchronous>, transform_indices = @transform_2, window_bounds = array<i64: 1, 1, 1, 128>}, {transform_indices = @transform_3, window_bounds = array<i64: 1, 16, 16, 128>}]} {
    %c0 = arith.constant 0 : index
    %c0_0 = arith.constant 0 : index
    %c0_1 = arith.constant 0 : index
    %c0_2 = arith.constant 0 : index
    %0 = vector.load %arg2[%c0, %c0_0, %c0_1, %c0_2] : memref<1x16x16x128xf32, #tpu.memory_space<vmem>>, vector<1x16x16x128xf32>
    %c0_3 = arith.constant 0 : index
    %c0_4 = arith.constant 0 : index
    %c0_5 = arith.constant 0 : index
    %c0_6 = arith.constant 0 : index
    %1 = vector.load %arg3[%c0_3, %c0_4, %c0_5, %c0_6] : memref<1x1x1x128xf32, #tpu.memory_space<vmem>>, vector<1x1x1x128xf32>
    %2 = vector.broadcast %1 : vector<1x1x1x128xf32> to vector<1x16x16x128xf32>
    %3 = arith.mulf %0, %2 : vector<1x16x16x128xf32>
    %c0_7 = arith.constant 0 : index
    %c0_8 = arith.constant 0 : index
    %c0_9 = arith.constant 0 : index
    %c0_10 = arith.constant 0 : index
    %4 = vector.load %arg4[%c0_7, %c0_8, %c0_9, %c0_10] : memref<1x1x1x128xf32, #tpu.memory_space<vmem>>, vector<1x1x1x128xf32>
    %5 = vector.broadcast %4 : vector<1x1x1x128xf32> to vector<1x16x16x128xf32>
    %6 = arith.addf %3, %5 : vector<1x16x16x128xf32>
    %cst = arith.constant 0.000000e+00 : f32
    %7 = vector.broadcast %cst : f32 to vector<1x16x16x128xf32>
    %8 = arith.subf %7, %6 : vector<1x16x16x128xf32>
    %9 = math.exp %8 : vector<1x16x16x128xf32>
    %cst_11 = arith.constant 1.000000e+00 : f32
    %10 = vector.broadcast %cst_11 : f32 to vector<1x16x16x128xf32>
    %11 = arith.addf %10, %9 : vector<1x16x16x128xf32>
    %12 = tpu.reciprocal %11 : vector<1x16x16x128xf32> -> vector<1x16x16x128xf32>
    %13 = arith.mulf %6, %12 : vector<1x16x16x128xf32>
    %c0_12 = arith.constant 0 : index
    %c0_13 = arith.constant 0 : index
    %c0_14 = arith.constant 0 : index
    %c0_15 = arith.constant 0 : index
    %14 = vector.load %arg5[%c0_12, %c0_13, %c0_14, %c0_15] : memref<1x16x16x128xf32, #tpu.memory_space<vmem>>, vector<1x16x16x128xf32>
    tpu.vector_store %arg5[%c0_12, %c0_13, %c0_14, %c0_15], %13 {strides = array<i32>} : memref<1x16x16x128xf32, #tpu.memory_space<vmem>>, vector<1x16x16x128xf32>,
    return
  }
  func.func @transform_0(%arg0: i32, %arg1: i32) -> (i32, i32, i32, i32) {
    %c0_i32 = arith.constant 0 : i32
    %c0_i32_0 = arith.constant 0 : i32
    %c0_i32_1 = arith.constant 0 : i32
    return %arg0, %arg1, %c0_i32, %c0_i32_0 : i32, i32, i32, i32
  }
  func.func @transform_1(%arg0: i32, %arg1: i32) -> (i32, i32, i32, i32) {
    %c0_i32 = arith.constant 0 : i32
    %c0_i32_0 = arith.constant 0 : i32
    %c0_i32_1 = arith.constant 0 : i32
    %c0_i32_2 = arith.constant 0 : i32
    %c0_i32_3 = arith.constant 0 : i32
    return %c0_i32, %c0_i32_0, %c0_i32_1, %c0_i32_2 : i32, i32, i32, i32
  }
  func.func @transform_2(%arg0: i32, %arg1: i32) -> (i32, i32, i32, i32) {
    %c0_i32 = arith.constant 0 : i32
    %c0_i32_0 = arith.constant 0 : i32
    %c0_i32_1 = arith.constant 0 : i32
    %c0_i32_2 = arith.constant 0 : i32
    %c0_i32_3 = arith.constant 0 : i32
    return %c0_i32, %c0_i32_0, %c0_i32_1, %c0_i32_2 : i32, i32, i32, i32
  }
  func.func @transform_3(%arg0: i32, %arg1: i32) -> (i32, i32, i32, i32) {
    %c0_i32 = arith.constant 0 : i32
    %c0_i32_0 = arith.constant 0 : i32
    %c0_i32_1 = arith.constant 0 : i32
    return %arg0, %arg1, %c0_i32, %c0_i32_0 : i32, i32, i32, i32
  }
}

</mosaic_0001>

<llo_original>
// kernel: cnn_block_forward.3
$region0: #{cnn_block_forward.3}
  #allocation0 [shape = 'u32[]', space=smem, size = 0x4, offset = 0x4, fixed_abs, tag = 'smem constant byte address 0x4 - core index']
  #allocation1 [shape = 'u32[144,128]{1,0:T(1,128)}', space=vmem, size = 0x12000, scoped, tag = 'internal scratch']
  %s0 = inlined_call_operand.vmem [shape: f32[2,16,16,128], index: 0, kind: input, shape index: {}, may-alias: {0,3}]
  %s1 = inlined_call_operand.vmem [shape: f32[1,1,1,128], index: 1, kind: input, shape index: {}]
  %s2 = inlined_call_operand.vmem [shape: f32[1,1,1,128], index: 2, kind: input, shape index: {}]
  %s3 = inlined_call_operand.vmem [shape: f32[2,16,16,128], index: 3, kind: output, shape index: {}, may-alias: {0,3}]
  %s4 = sld [smem:[#allocation0]]
  $region45: #{cnn_block_forward.3} parent=0
    _
  %s6 = ssub.s32 1, %s4
  %s7 = scalar_select 0, %s6, %s4
  loop: start=0, step=1, limit=4
  $region2: #{cnn_block_forward.3} parent=0 // loop_pre_header
    _
  $region3: #{cnn_block_forward.3} parent=0 // loop_header
    %s9 = sphi 0, %s13
    %p10 = scmp.ge.s32.totalorder %s9, 4
    %s16 = sphi 0, %s28
    %s17 = sphi 0, %s24
    %s18 = sphi 0, %s16
    %s19 = sphi 0, %s17
    %s20 = sphi 0, %s18
    %s21 = sphi 0, %s19
    %s33 = sphi 0, %s35
    %s36 = sphi 0, %s33
    %s37 = sphi 0, %s36
    %s53 = sphi 0, %s37
    %s57 = sphi 0, %s57
    %s59 = sphi 0, %s57
    %s60 = sphi 0, %s59
    %s74 = sphi 0, %s60
    %s78 = sphi 0, %s78
    %s80 = sphi 0, %s78
    %s81 = sphi 0, %s80
    %s95 = sphi 0, %s81
    %s103 = sphi 0, %s105
    %s106 = sphi 0, %s103
    %s107 = sphi 0, %s106
    %s123 = sphi 0, %s107
  $region4: #{cnn_block_forward.3} parent=0 // loop_header_branch
    %12 = sbr.rel (%p10) target = $region8
  $region5: #{cnn_block_forward.3} parent=0 // loop_body
    %s14 = ssub.s32 %s9, 1
    %s15 = ssub.s32 %s9, 2
    %s22 = sadd.s32 1, %s17
    %p23 = scmp.ge.s32.totalorder %s22, 1
    %s24 = scalar_select %p23, 0, %s22
    %s25 = sadd.s32 1, %s16
    %s26 = scalar_select %p23, %s25, %s16
    %p27 = scmp.ge.s32.totalorder %s26, 2
    %s28 = scalar_select %p27, 0, %s26
    %s29 = ssub.s32 %s16, %s28
    %s30 = ssub.s32 %s17, %s24
    %s31 = sor.u32 %s29, %s30
    %p32 = scmp.eq.s32.totalorder %s31, 0
    %s34 = sadd.s32 %s33, 1
    %s35 = scalar_select %p32, %s33, %s34
    %p38 = pneg %p32
    %p39 = scmp.eq.s32.totalorder %s9, 1
    %p40 = por %p38, %p39
    %p41 = scmp.ne.s32.totalorder %s33, %s36
    %p42 = scmp.eq.s32.totalorder %s9, 0
    %p43 = por %p41, %p42
    %p44 = scmp.ne.s32.totalorder %s33, %s36
    %p45 = scmp.eq.s32.totalorder %s14, 1
    %p46 = por %p44, %p45
    %p47 = scmp.ne.s32.totalorder %s36, %s37
    %p48 = scmp.eq.s32.totalorder %s14, 0
    %p49 = por %p47, %p48
    %p50 = scmp.ne.s32.totalorder %s36, %s37
    %p51 = scmp.eq.s32.totalorder %s15, 1
    %p52 = por %p50, %p51
    %p54 = scmp.ne.s32.totalorder %s37, %s53
    %p55 = scmp.eq.s32.totalorder %s15, 0
    %p56 = por %p54, %p55
    %s58 = sadd.s32 %s57, 1
    %p61 = scmp.eq.s32.totalorder %s9, 1
    %p62 = scmp.ne.s32.totalorder %s57, %s59
    %p63 = scmp.eq.s32.totalorder %s9, 0
    %p64 = por %p62, %p63
    %p65 = scmp.ne.s32.totalorder %s57, %s59
    %p66 = scmp.eq.s32.totalorder %s14, 1
    %p67 = por %p65, %p66
    %p68 = scmp.ne.s32.totalorder %s59, %s60
    %p69 = scmp.eq.s32.totalorder %s14, 0
    %p70 = por %p68, %p69
    %p71 = scmp.ne.s32.totalorder %s59, %s60
    %p72 = scmp.eq.s32.totalorder %s15, 1
    %p73 = por %p71, %p72
    %p75 = scmp.ne.s32.totalorder %s60, %s74
    %p76 = scmp.eq.s32.totalorder %s15, 0
    %p77 = por %p75, %p76
    %s79 = sadd.s32 %s78, 1
    %p82 = scmp.eq.s32.totalorder %s9, 1
    %p83 = scmp.ne.s32.totalorder %s78, %s80
    %p84 = scmp.eq.s32.totalorder %s9, 0
    %p85 = por %p83, %p84
    %p86 = scmp.ne.s32.totalorder %s78, %s80
    %p87 = scmp.eq.s32.totalorder %s14, 1
    %p88 = por %p86, %p87
    %p89 = scmp.ne.s32.totalorder %s80, %s81
    %p90 = scmp.eq.s32.totalorder %s14, 0
    %p91 = por %p89, %p90
    %p92 = scmp.ne.s32.totalorder %s80, %s81
    %p93 = scmp.eq.s32.totalorder %s15, 1
    %p94 = por %p92, %p93
    %p96 = scmp.ne.s32.totalorder %s81, %s95
    %p97 = scmp.eq.s32.totalorder %s15, 0
    %p98 = por %p96, %p97
    %s99 = ssub.s32 %s16, %s28
    %s100 = ssub.s32 %s17, %s24
    %s101 = sor.u32 %s99, %s100
    %p102 = scmp.eq.s32.totalorder %s101, 0
    %s104 = sadd.s32 %s103, 1
    %s105 = scalar_select %p102, %s103, %s104
    %p108 = pneg %p102
    %p109 = scmp.eq.s32.totalorder %s9, 1
    %p110 = por %p108, %p109
    %p111 = scmp.ne.s32.totalorder %s103, %s106
    %p112 = scmp.eq.s32.totalorder %s9, 0
    %p113 = por %p111, %p112
    %p114 = scmp.ne.s32.totalorder %s103, %s106
    %p115 = scmp.eq.s32.totalorder %s14, 1
    %p116 = por %p114, %p115
    %p117 = scmp.ne.s32.totalorder %s106, %s107
    %p118 = scmp.eq.s32.totalorder %s14, 0
    %p119 = por %p117, %p118
    %p120 = scmp.ne.s32.totalorder %s106, %s107
    %p121 = scmp.eq.s32.totalorder %s15, 1
    %p122 = por %p120, %p121
    %p124 = scmp.ne.s32.totalorder %s107, %s123
    %p125 = scmp.eq.s32.totalorder %s15, 0
    %p126 = por %p124, %p125
    %p127 = scmp.le.s32.totalorder 1, %s9
    %p128 = scmp.lt.s32.totalorder %s9, 3
    %p129 = pnand %p127, %p128
    %p130 = pneg %p129
    // Predicated region
    $region9: #{cnn_block_forward.3} parent=5 // pred_check
      _
    $region10: #{cnn_block_forward.3} parent=5 // pred_check_branch
      %132 = sbr.rel (%p129) target = $region12
    $region11: #{cnn_block_forward.3} parent=5 // pred_region
      %s133 = ssub.s32 %s9, 1
      // Predicated region
      $region13: #{cnn_block_forward.3} parent=11 // pred_check
        %p134 = pneg %p70
      $region14: #{cnn_block_forward.3} parent=11 // pred_check_branch
        %136 = sbr.rel (%p134) target = $region16
      $region15: #{cnn_block_forward.3} parent=11 // pred_region
        _
      $region16: #{cnn_block_forward.3} parent=11 // pred_fallthru
        _
      // Predicated region
      $region17: #{cnn_block_forward.3} parent=11 // pred_check
        %p137 = pneg %p91
      $region18: #{cnn_block_forward.3} parent=11 // pred_check_branch
        %139 = sbr.rel (%p137) target = $region20
      $region19: #{cnn_block_forward.3} parent=11 // pred_region
        _
      $region20: #{cnn_block_forward.3} parent=11 // pred_fallthru
        _
    $region12: #{cnn_block_forward.3} parent=5 // pred_fallthru
      _
    %p140 = scmp.lt.s32.totalorder %s9, 2
    // Predicated region
    $region21: #{cnn_block_forward.3} parent=5 // pred_check
      %p141 = pneg %p140
    $region22: #{cnn_block_forward.3} parent=5 // pred_check_branch
      %143 = sbr.rel (%p141) target = $region24
    $region23: #{cnn_block_forward.3} parent=5 // pred_region
      // Predicated region
      $region25: #{cnn_block_forward.3} parent=23 // pred_check
        %p144 = pneg %p43
      $region26: #{cnn_block_forward.3} parent=23 // pred_check_branch
        %146 = sbr.rel (%p144) target = $region28
      $region27: #{cnn_block_forward.3} parent=23 // pred_region
        %s147 = smul.u32 16, %s17
        %p148 = scmp.lt.s32.totalorder %s16, 1
        %s149 = scalar_select %p148, %s16, 1
        %p150 = scmp.lt.s32.totalorder %s147, 15
        %s151 = scalar_select %p150, %s147, 15
        %s152 = smul.addr %s151, 2
        %s153 = smul.addr %s149, 32
        %s154 = sadd.s32 %s152, %s153
        %s155 = smul.addr %s154, 8
        %s156 = scalar_lea.vmem %s0, %s155
        %s157 = smul.u32 16, %s17
      $region28: #{cnn_block_forward.3} parent=23 // pred_fallthru
        _
    $region24: #{cnn_block_forward.3} parent=5 // pred_fallthru
      _
    %p158 = scmp.le.s32.totalorder 1, %s9
    %p159 = scmp.lt.s32.totalorder %s9, 3
    %p160 = pnand %p158, %p159
    %p161 = pneg %p160
    // Predicated region
    $region29: #{cnn_block_forward.3} parent=5 // pred_check
      _
    $region30: #{cnn_block_forward.3} parent=5 // pred_check_branch
      %163 = sbr.rel (%p160) target = $region32
    $region31: #{cnn_block_forward.3} parent=5 // pred_region
      %s164 = ssub.s32 %s9, 1
      %s165 = smul.u32 16, %s19
      %p166 = scmp.lt.s32.totalorder %s18, 1
      %s167 = scalar_select %p166, %s18, 1
      %p168 = scmp.lt.s32.totalorder %s165, 15
      %s169 = scalar_select %p168, %s165, 15
      %s170 = smul.addr %s169, 2
      %s171 = smul.addr %s167, 32
      %s172 = sadd.s32 %s170, %s171
      %s173 = smul.addr %s172, 8
      %s174 = scalar_lea.vmem %s0, %s173
      %p175 = pneg %p49
      %p176 = pneg %p46
      %p177 = pneg %p70
      %p178 = pneg %p67
      %p179 = pneg %p91
      %p180 = pneg %p88
      %p181 = pneg %p119
      %p182 = pneg %p116
      %s183 = smul.u32 16, %s19
      %p184 = scmp.lt.s32.totalorder %s18, 1
      %s185 = scalar_select %p184, %s18, 1
      %p186 = scmp.lt.s32.totalorder %s183, 15
      %s187 = scalar_select %p186, %s183, 15
      %s188 = smul.addr %s187, 2
      %s189 = smul.addr %s185, 32
      %s190 = sadd.s32 %s188, %s189
      %s191 = smul.addr %s190, 8
      %s192 = scalar_lea.vmem %s3, %s191
      %s193 = smul.u32 16, %s19
      %p194 = scmp.lt.s32.totalorder %s18, 1
      %s195 = scalar_select %p194, %s18, 1
      %p196 = scmp.lt.s32.totalorder %s193, 15
      %s197 = scalar_select %p196, %s193, 15
      %s198 = smul.addr %s197, 2
      %s199 = smul.addr %s195, 32
      %s200 = sadd.s32 %s198, %s199
      %s201 = smul.addr %s200, 8
      %s202 = scalar_lea.vmem %s0, %s201
      %s203 = smul.u32 16, %s19
      %s204 = smul.u32 16, %s19
      %p205 = scmp.lt.s32.totalorder %s18, 1
      %s206 = scalar_select %p205, %s18, 1
      %p207 = scmp.lt.s32.totalorder %s204, 15
      %s208 = scalar_select %p207, %s204, 15
      %s209 = smul.addr %s208, 2
      %s210 = smul.addr %s206, 32
      %s211 = sadd.s32 %s209, %s210
      %s212 = smul.addr %s211, 8
      %s213 = scalar_lea.vmem %s3, %s212
      %s214 = smul.u32 16, %s19
      %v215 = vld [vmem:[%s202] sm:$0xff]
      %v216 = vld [vmem:[%s202 + $0x8] sm:$0xff]
      %v217 = vld [vmem:[%s202 + $0x10] sm:$0xff]
      %v218 = vld [vmem:[%s202 + $0x18] sm:$0xff]
      %v219 = vld [vmem:[%s202 + $0x20] sm:$0xff]
      %v220 = vld [vmem:[%s202 + $0x28] sm:$0xff]
      %v221 = vld [vmem:[%s202 + $0x30] sm:$0xff]
      %v222 = vld [vmem:[%s202 + $0x38] sm:$0xff]
      %v223 = vld [vmem:[%s202 + $0x40] sm:$0xff]
      %v224 = vld [vmem:[%s202 + $0x48] sm:$0xff]
      %v225 = vld [vmem:[%s202 + $0x50] sm:$0xff]
      %v226 = vld [vmem:[%s202 + $0x58] sm:$0xff]
      %v227 = vld [vmem:[%s202 + $0x60] sm:$0xff]
      %v228 = vld [vmem:[%s202 + $0x68] sm:$0xff]
      %v229 = vld [vmem:[%s202 + $0x70] sm:$0xff]
      %v230 = vld [vmem:[%s202 + $0x78] sm:$0xff]
      %v231 = vld [vmem:[%s202 + $0x80] sm:$0xff]
      %v232 = vld [vmem:[%s202 + $0x88] sm:$0xff]
      %v233 = vld [vmem:[%s202 + $0x90] sm:$0xff]
      %v234 = vld [vmem:[%s202 + $0x98] sm:$0xff]
      %v235 = vld [vmem:[%s202 + $0xa0] sm:$0xff]
      %v236 = vld [vmem:[%s202 + $0xa8] sm:$0xff]
      %v237 = vld [vmem:[%s202 + $0xb0] sm:$0xff]
      %v238 = vld [vmem:[%s202 + $0xb8] sm:$0xff]
      %v239 = vld [vmem:[%s202 + $0xc0] sm:$0xff]
      %v240 = vld [vmem:[%s202 + $0xc8] sm:$0xff]
      %v241 = vld [vmem:[%s202 + $0xd0] sm:$0xff]
      %v242 = vld [vmem:[%s202 + $0xd8] sm:$0xff]
      %v243 = vld [vmem:[%s202 + $0xe0] sm:$0xff]
      %v244 = vld [vmem:[%s202 + $0xe8] sm:$0xff]
      %v245 = vld [vmem:[%s202 + $0xf0] sm:$0xff]
      %v246 = vld [vmem:[%s202 + $0xf8] sm:$0xff]
      %v247 = vld [vmem:[%s1] sm:$0x1]
      %v249 = vlaneseq
      %v250 = vshrl.u32 %v249, 7
      %v251 = vsub.s32 0, %v250
      %v252 = vrot.slane %v247, %v251
      %v254 = vmul.f32 %v215, %v252
      %v255 = vmul.f32 %v216, %v252
      %v256 = vmul.f32 %v217, %v252
      %v257 = vmul.f32 %v218, %v252
      %v258 = vmul.f32 %v219, %v252
      %v259 = vmul.f32 %v220, %v252
      %v260 = vmul.f32 %v221, %v252
      %v261 = vmul.f32 %v222, %v252
      %v262 = vmul.f32 %v223, %v252
      %v263 = vmul.f32 %v224, %v252
      %v264 = vmul.f32 %v225, %v252
      %v265 = vmul.f32 %v226, %v252
      %v266 = vmul.f32 %v227, %v252
      %v267 = vmul.f32 %v228, %v252
      %v268 = vmul.f32 %v229, %v252
      %v269 = vmul.f32 %v230, %v252
      %v270 = vmul.f32 %v231, %v252
      %v271 = vmul.f32 %v232, %v252
      %v272 = vmul.f32 %v233, %v252
      %v273 = vmul.f32 %v234, %v252
      %v274 = vmul.f32 %v235, %v252
      %v275 = vmul.f32 %v236, %v252
      %v276 = vmul.f32 %v237, %v252
      %v277 = vmul.f32 %v238, %v252
      %v278 = vmul.f32 %v239, %v252
      %v279 = vmul.f32 %v240, %v252
      %v280 = vmul.f32 %v241, %v252
      %v281 = vmul.f32 %v242, %v252
      %v282 = vmul.f32 %v243, %v252
      %v283 = vmul.f32 %v244, %v252
      %v284 = vmul.f32 %v245, %v252
      %v285 = vmul.f32 %v246, %v252
      %v286 = vld [vmem:[%s2] sm:$0x1]
      %v288 = vlaneseq
      %v289 = vshrl.u32 %v288, 7
      %v290 = vsub.s32 0, %v289
      %v291 = vrot.slane %v286, %v290
      %v293 = vadd.f32 %v254, %v291
      %v294 = vadd.f32 %v255, %v291
      %v295 = vadd.f32 %v256, %v291
      %v296 = vadd.f32 %v257, %v291
      %v297 = vadd.f32 %v258, %v291
      %v298 = vadd.f32 %v259, %v291
      %v299 = vadd.f32 %v260, %v291
      %v300 = vadd.f32 %v261, %v291
      %v301 = vadd.f32 %v262, %v291
      %v302 = vadd.f32 %v263, %v291
      %v303 = vadd.f32 %v264, %v291
      %v304 = vadd.f32 %v265, %v291
      %v305 = vadd.f32 %v266, %v291
      %v306 = vadd.f32 %v267, %v291
      %v307 = vadd.f32 %v268, %v291
      %v308 = vadd.f32 %v269, %v291
      %v309 = vadd.f32 %v270, %v291
      %v310 = vadd.f32 %v271, %v291
      %v311 = vadd.f32 %v272, %v291
      %v312 = vadd.f32 %v273, %v291
      %v313 = vadd.f32 %v274, %v291
      %v314 = vadd.f32 %v275, %v291
      %v315 = vadd.f32 %v276, %v291
      %v316 = vadd.f32 %v277, %v291
      %v317 = vadd.f32 %v278, %v291
      %v318 = vadd.f32 %v279, %v291
      %v319 = vadd.f32 %v280, %v291
      %v320 = vadd.f32 %v281, %v291
      %v321 = vadd.f32 %v282, %v291
      %v322 = vadd.f32 %v283, %v291
      %v323 = vadd.f32 %v284, %v291
      %v324 = vadd.f32 %v285, %v291
      %v325 = vsub.f32 0.0, %v293
      %v326 = vsub.f32 0.0, %v294
      %v327 = vsub.f32 0.0, %v295
      %v328 = vsub.f32 0.0, %v296
      %v329 = vsub.f32 0.0, %v297
      %v330 = vsub.f32 0.0, %v298
      %v331 = vsub.f32 0.0, %v299
      %v332 = vsub.f32 0.0, %v300
      %v333 = vsub.f32 0.0, %v301
      %v334 = vsub.f32 0.0, %v302
      %v335 = vsub.f32 0.0, %v303
      %v336 = vsub.f32 0.0, %v304
      %v337 = vsub.f32 0.0, %v305
      %v338 = vsub.f32 0.0, %v306
      %v339 = vsub.f32 0.0, %v307
      %v340 = vsub.f32 0.0, %v308
      %v341 = vsub.f32 0.0, %v309
      %v342 = vsub.f32 0.0, %v310
      %v343 = vsub.f32 0.0, %v311
      %v344 = vsub.f32 0.0, %v312
      %v345 = vsub.f32 0.0, %v313
      %v346 = vsub.f32 0.0, %v314
      %v347 = vsub.f32 0.0, %v315
      %v348 = vsub.f32 0.0, %v316
      %v349 = vsub.f32 0.0, %v317
      %v350 = vsub.f32 0.0, %v318
      %v351 = vsub.f32 0.0, %v319
      %v352 = vsub.f32 0.0, %v320
      %v353 = vsub.f32 0.0, %v321
      %v354 = vsub.f32 0.0, %v322
      %v355 = vsub.f32 0.0, %v323
      %v356 = vsub.f32 0.0, %v324
      %v357 = vmul.f32 %v325, 1.442695
      %v358 = vpow.pop %v357
      %v359 = vmul.f32 %v326, 1.442695
      %v360 = vpow.pop %v359
      %v361 = vmul.f32 %v327, 1.442695
      %v362 = vpow.pop %v361
      %v363 = vmul.f32 %v328, 1.442695
      %v364 = vpow.pop %v363
      %v365 = vmul.f32 %v329, 1.442695
      %v366 = vpow.pop %v365
      %v367 = vmul.f32 %v330, 1.442695
      %v368 = vpow.pop %v367
      %v369 = vmul.f32 %v331, 1.442695
      %v370 = vpow.pop %v369
      %v371 = vmul.f32 %v332, 1.442695
      %v372 = vpow.pop %v371
      %v373 = vmul.f32 %v333, 1.442695
      %v374 = vpow.pop %v373
      %v375 = vmul.f32 %v334, 1.442695
      %v376 = vpow.pop %v375
      %v377 = vmul.f32 %v335, 1.442695
      %v378 = vpow.pop %v377
      %v379 = vmul.f32 %v336, 1.442695
      %v380 = vpow.pop %v379
      %v381 = vmul.f32 %v337, 1.442695
      %v382 = vpow.pop %v381
      %v383 = vmul.f32 %v338, 1.442695
      %v384 = vpow.pop %v383
      %v385 = vmul.f32 %v339, 1.442695
      %v386 = vpow.pop %v385
      %v387 = vmul.f32 %v340, 1.442695
      %v388 = vpow.pop %v387
      %v389 = vmul.f32 %v341, 1.442695
      %v390 = vpow.pop %v389
      %v391 = vmul.f32 %v342, 1.442695
      %v392 = vpow.pop %v391
      %v393 = vmul.f32 %v343, 1.442695
      %v394 = vpow.pop %v393
      %v395 = vmul.f32 %v344, 1.442695
      %v396 = vpow.pop %v395
      %v397 = vmul.f32 %v345, 1.442695
      %v398 = vpow.pop %v397
      %v399 = vmul.f32 %v346, 1.442695
      %v400 = vpow.pop %v399
      %v401 = vmul.f32 %v347, 1.442695
      %v402 = vpow.pop %v401
      %v403 = vmul.f32 %v348, 1.442695
      %v404 = vpow.pop %v403
      %v405 = vmul.f32 %v349, 1.442695
      %v406 = vpow.pop %v405
      %v407 = vmul.f32 %v350, 1.442695
      %v408 = vpow.pop %v407
      %v409 = vmul.f32 %v351, 1.442695
      %v410 = vpow.pop %v409
      %v411 = vmul.f32 %v352, 1.442695
      %v412 = vpow.pop %v411
      %v413 = vmul.f32 %v353, 1.442695
      %v414 = vpow.pop %v413
      %v415 = vmul.f32 %v354, 1.442695
      %v416 = vpow.pop %v415
      %v417 = vmul.f32 %v355, 1.442695
      %v418 = vpow.pop %v417
      %v419 = vmul.f32 %v356, 1.442695
      %v420 = vpow.pop %v419
      %v421 = vadd.f32 %v358, 1.0
      %v422 = vadd.f32 %v360, 1.0
      %v423 = vadd.f32 %v362, 1.0
      %v424 = vadd.f32 %v364, 1.0
      %v425 = vadd.f32 %v366, 1.0
      %v426 = vadd.f32 %v368, 1.0
      %v427 = vadd.f32 %v370, 1.0
      %v428 = vadd.f32 %v372, 1.0
      %v429 = vadd.f32 %v374, 1.0
      %v430 = vadd.f32 %v376, 1.0
      %v431 = vadd.f32 %v378, 1.0
      %v432 = vadd.f32 %v380, 1.0
      %v433 = vadd.f32 %v382, 1.0
      %v434 = vadd.f32 %v384, 1.0
      %v435 = vadd.f32 %v386, 1.0
      %v436 = vadd.f32 %v388, 1.0
      %v437 = vadd.f32 %v390, 1.0
      %v438 = vadd.f32 %v392, 1.0
      %v439 = vadd.f32 %v394, 1.0
      %v440 = vadd.f32 %v396, 1.0
      %v441 = vadd.f32 %v398, 1.0
      %v442 = vadd.f32 %v400, 1.0
      %v443 = vadd.f32 %v402, 1.0
      %v444 = vadd.f32 %v404, 1.0
      %v445 = vadd.f32 %v406, 1.0
      %v446 = vadd.f32 %v408, 1.0
      %v447 = vadd.f32 %v410, 1.0
      %v448 = vadd.f32 %v412, 1.0
      %v449 = vadd.f32 %v414, 1.0
      %v450 = vadd.f32 %v416, 1.0
      %v451 = vadd.f32 %v418, 1.0
      %v452 = vadd.f32 %v420, 1.0
      %v453 = vrcp.pop %v421
      %v454 = vrcp.pop %v422
      %v455 = vrcp.pop %v423
      %v456 = vrcp.pop %v424
      %v457 = vrcp.pop %v425
      %v458 = vrcp.pop %v426
      %v459 = vrcp.pop %v427
      %v460 = vrcp.pop %v428
      %v461 = vrcp.pop %v429
      %v462 = vrcp.pop %v430
      %v463 = vrcp.pop %v431
      %v464 = vrcp.pop %v432
      %v465 = vrcp.pop %v433
      %v466 = vrcp.pop %v434
      %v467 = vrcp.pop %v435
      %v468 = vrcp.pop %v436
      %v469 = vrcp.pop %v437
      %v470 = vrcp.pop %v438
      %v471 = vrcp.pop %v439
      %v472 = vrcp.pop %v440
      %v473 = vrcp.pop %v441
      %v474 = vrcp.pop %v442
      %v475 = vrcp.pop %v443
      %v476 = vrcp.pop %v444
      %v477 = vrcp.pop %v445
      %v478 = vrcp.pop %v446
      %v479 = vrcp.pop %v447
      %v480 = vrcp.pop %v448
      %v481 = vrcp.pop %v449
      %v482 = vrcp.pop %v450
      %v483 = vrcp.pop %v451
      %v484 = vrcp.pop %v452
      %v485 = vmul.f32 %v293, %v453
      %v486 = vmul.f32 %v294, %v454
      %v487 = vmul.f32 %v295, %v455
      %v488 = vmul.f32 %v296, %v456
      %v489 = vmul.f32 %v297, %v457
      %v490 = vmul.f32 %v298, %v458
      %v491 = vmul.f32 %v299, %v459
      %v492 = vmul.f32 %v300, %v460
      %v493 = vmul.f32 %v301, %v461
      %v494 = vmul.f32 %v302, %v462
      %v495 = vmul.f32 %v303, %v463
      %v496 = vmul.f32 %v304, %v464
      %v497 = vmul.f32 %v305, %v465
      %v498 = vmul.f32 %v306, %v466
      %v499 = vmul.f32 %v307, %v467
      %v500 = vmul.f32 %v308, %v468
      %v501 = vmul.f32 %v309, %v469
      %v502 = vmul.f32 %v310, %v470
      %v503 = vmul.f32 %v311, %v471
      %v504 = vmul.f32 %v312, %v472
      %v505 = vmul.f32 %v313, %v473
      %v506 = vmul.f32 %v314, %v474
      %v507 = vmul.f32 %v315, %v475
      %v508 = vmul.f32 %v316, %v476
      %v509 = vmul.f32 %v317, %v477
      %v510 = vmul.f32 %v318, %v478
      %v511 = vmul.f32 %v319, %v479
      %v512 = vmul.f32 %v320, %v480
      %v513 = vmul.f32 %v321, %v481
      %v514 = vmul.f32 %v322, %v482
      %v515 = vmul.f32 %v323, %v483
      %v516 = vmul.f32 %v324, %v484
      %517 = vst [vmem:[%s213] sm:$0xff] %v485
      %518 = vst [vmem:[%s213 + $0x8] sm:$0xff] %v486
      %519 = vst [vmem:[%s213 + $0x10] sm:$0xff] %v487
      %520 = vst [vmem:[%s213 + $0x18] sm:$0xff] %v488
      %521 = vst [vmem:[%s213 + $0x20] sm:$0xff] %v489
      %522 = vst [vmem:[%s213 + $0x28] sm:$0xff] %v490
      %523 = vst [vmem:[%s213 + $0x30] sm:$0xff] %v491
      %524 = vst [vmem:[%s213 + $0x38] sm:$0xff] %v492
      %525 = vst [vmem:[%s213 + $0x40] sm:$0xff] %v493
      %526 = vst [vmem:[%s213 + $0x48] sm:$0xff] %v494
      %527 = vst [vmem:[%s213 + $0x50] sm:$0xff] %v495
      %528 = vst [vmem:[%s213 + $0x58] sm:$0xff] %v496
      %529 = vst [vmem:[%s213 + $0x60] sm:$0xff] %v497
      %530 = vst [vmem:[%s213 + $0x68] sm:$0xff] %v498
      %531 = vst [vmem:[%s213 + $0x70] sm:$0xff] %v499
      %532 = vst [vmem:[%s213 + $0x78] sm:$0xff] %v500
      %533 = vst [vmem:[%s213 + $0x80] sm:$0xff] %v501
      %534 = vst [vmem:[%s213 + $0x88] sm:$0xff] %v502
      %535 = vst [vmem:[%s213 + $0x90] sm:$0xff] %v503
      %536 = vst [vmem:[%s213 + $0x98] sm:$0xff] %v504
      %537 = vst [vmem:[%s213 + $0xa0] sm:$0xff] %v505
      %538 = vst [vmem:[%s213 + $0xa8] sm:$0xff] %v506
      %539 = vst [vmem:[%s213 + $0xb0] sm:$0xff] %v507
      %540 = vst [vmem:[%s213 + $0xb8] sm:$0xff] %v508
      %541 = vst [vmem:[%s213 + $0xc0] sm:$0xff] %v509
      %542 = vst [vmem:[%s213 + $0xc8] sm:$0xff] %v510
      %543 = vst [vmem:[%s213 + $0xd0] sm:$0xff] %v511
      %544 = vst [vmem:[%s213 + $0xd8] sm:$0xff] %v512
      %545 = vst [vmem:[%s213 + $0xe0] sm:$0xff] %v513
      %546 = vst [vmem:[%s213 + $0xe8] sm:$0xff] %v514
      %547 = vst [vmem:[%s213 + $0xf0] sm:$0xff] %v515
      %548 = vst [vmem:[%s213 + $0xf8] sm:$0xff] %v516
      %s549 = smul.u32 16, %s19
      %p550 = scmp.lt.s32.totalorder %s18, 1
      %s551 = scalar_select %p550, %s18, 1
      %p552 = scmp.lt.s32.totalorder %s549, 15
      %s553 = scalar_select %p552, %s549, 15
      %s554 = smul.addr %s553, 2
      %s555 = smul.addr %s551, 32
      %s556 = sadd.s32 %s554, %s555
      %s557 = smul.addr %s556, 8
      %s558 = scalar_lea.vmem %s3, %s557
      // Predicated region
      $region33: #{cnn_block_forward.3} parent=31 // pred_check
        %p559 = pneg %p116
      $region34: #{cnn_block_forward.3} parent=31 // pred_check_branch
        %561 = sbr.rel (%p559) target = $region36
      $region35: #{cnn_block_forward.3} parent=31 // pred_region
        %s562 = smul.u32 16, %s19
      $region36: #{cnn_block_forward.3} parent=31 // pred_fallthru
        _
    $region32: #{cnn_block_forward.3} parent=5 // pred_fallthru
      _
    %p563 = scmp.le.s32.totalorder 2, %s9
    // Predicated region
    $region37: #{cnn_block_forward.3} parent=5 // pred_check
      %p564 = pneg %p563
    $region38: #{cnn_block_forward.3} parent=5 // pred_check_branch
      %566 = sbr.rel (%p564) target = $region40
    $region39: #{cnn_block_forward.3} parent=5 // pred_region
      %s567 = ssub.s32 %s9, 2
      // Predicated region
      $region41: #{cnn_block_forward.3} parent=39 // pred_check
        %p568 = pneg %p122
      $region42: #{cnn_block_forward.3} parent=39 // pred_check_branch
        %570 = sbr.rel (%p568) target = $region44
      $region43: #{cnn_block_forward.3} parent=39 // pred_region
        %s571 = smul.u32 16, %s21
        %p572 = scmp.lt.s32.totalorder %s20, 1
        %s573 = scalar_select %p572, %s20, 1
        %p574 = scmp.lt.s32.totalorder %s571, 15
        %s575 = scalar_select %p574, %s571, 15
        %s576 = smul.addr %s575, 2
        %s577 = smul.addr %s573, 32
        %s578 = sadd.s32 %s576, %s577
        %s579 = smul.addr %s578, 8
        %s580 = scalar_lea.vmem %s3, %s579
      $region44: #{cnn_block_forward.3} parent=39 // pred_fallthru
        _
    $region40: #{cnn_block_forward.3} parent=5 // pred_fallthru
      _
  $region6: #{cnn_block_forward.3} parent=0 // loop_footer
    %s13 = sadd.s32 1, %s9
  $region7: #{cnn_block_forward.3} parent=0 // loop_footer_branch
    %8 = sbr.rel target = $region3
  $region8: #{cnn_block_forward.3} parent=0 // loop_exit
    _

// kernel: cnn_block_forward.2
$region0: #{cnn_block_forward.2}
  #allocation0 [shape = 'u32[]', space=smem, size = 0x4, offset = 0x4, fixed_abs, tag = 'smem constant byte address 0x4 - core index']
  #allocation1 [shape = 'u32[144,128]{1,0:T(1,128)}', space=vmem, size = 0x12000, scoped, tag = 'internal scratch']
  %s0 = inlined_call_operand.vmem [shape: f32[2,18,18,4], index: 0, kind: input, shape index: {}]
  %s1 = inlined_call_operand.vmem [shape: f32[9,4,128], index: 1, kind: input, shape index: {}]
  %s2 = inlined_call_operand.vmem [shape: f32[2,16,16,128], index: 2, kind: output, shape index: {0}]
  %s3 = inlined_call_operand.vmem [shape: f32[2,1,8,128], index: 3, kind: output, shape index: {1}]
  %4 = xla_tuple %s2, %s3
  %s5 = sld [smem:[#allocation0]]
  $region49: #{cnn_block_forward.2} parent=0
    _
  %s7 = ssub.s32 1, %s5
  %s8 = scalar_select 0, %s7, %s5
  loop: start=0, step=1, limit=4
  $region2: #{cnn_block_forward.2} parent=0 // loop_pre_header
    _
  $region3: #{cnn_block_forward.2} parent=0 // loop_header
    %s10 = sphi 0, %s14
    %p11 = scmp.ge.s32.totalorder %s10, 4
    %s17 = sphi 0, %s29
    %s18 = sphi 0, %s25
    %s19 = sphi 0, %s17
    %s20 = sphi 0, %s18
    %s21 = sphi 0, %s19
    %s22 = sphi 0, %s20
    %s32 = sphi 0, %s34
    %s35 = sphi 0, %s32
    %s36 = sphi 0, %s35
    %s52 = sphi 0, %s36
    %s56 = sphi 0, %s56
    %s58 = sphi 0, %s56
    %s59 = sphi 0, %s58
    %s73 = sphi 0, %s59
    %s81 = sphi 0, %s83
    %s84 = sphi 0, %s81
    %s85 = sphi 0, %s84
    %s101 = sphi 0, %s85
    %s109 = sphi 0, %s111
    %s112 = sphi 0, %s109
    %s113 = sphi 0, %s112
    %s129 = sphi 0, %s113
  $region4: #{cnn_block_forward.2} parent=0 // loop_header_branch
    %13 = sbr.rel (%p11) target = $region8
  $region5: #{cnn_block_forward.2} parent=0 // loop_body
    %s15 = ssub.s32 %s10, 1
    %s16 = ssub.s32 %s10, 2
    %s23 = sadd.s32 1, %s18
    %p24 = scmp.ge.s32.totalorder %s23, 1
    %s25 = scalar_select %p24, 0, %s23
    %s26 = sadd.s32 1, %s17
    %s27 = scalar_select %p24, %s26, %s17
    %p28 = scmp.ge.s32.totalorder %s27, 2
    %s29 = scalar_select %p28, 0, %s27
    %s30 = ssub.s32 %s17, %s29
    %p31 = scmp.eq.s32.totalorder %s30, 0
    %s33 = sadd.s32 %s32, 1
    %s34 = scalar_select %p31, %s32, %s33
    %p37 = pneg %p31
    %p38 = scmp.eq.s32.totalorder %s10, 1
    %p39 = por %p37, %p38
    %p40 = scmp.ne.s32.totalorder %s32, %s35
    %p41 = scmp.eq.s32.totalorder %s10, 0
    %p42 = por %p40, %p41
    %p43 = scmp.ne.s32.totalorder %s32, %s35
    %p44 = scmp.eq.s32.totalorder %s15, 1
    %p45 = por %p43, %p44
    %p46 = scmp.ne.s32.totalorder %s35, %s36
    %p47 = scmp.eq.s32.totalorder %s15, 0
    %p48 = por %p46, %p47
    %p49 = scmp.ne.s32.totalorder %s35, %s36
    %p50 = scmp.eq.s32.totalorder %s16, 1
    %p51 = por %p49, %p50
    %p53 = scmp.ne.s32.totalorder %s36, %s52
    %p54 = scmp.eq.s32.totalorder %s16, 0
    %p55 = por %p53, %p54
    %s57 = sadd.s32 %s56, 1
    %p60 = scmp.eq.s32.totalorder %s10, 1
    %p61 = scmp.ne.s32.totalorder %s56, %s58
    %p62 = scmp.eq.s32.totalorder %s10, 0
    %p63 = por %p61, %p62
    %p64 = scmp.ne.s32.totalorder %s56, %s58
    %p65 = scmp.eq.s32.totalorder %s15, 1
    %p66 = por %p64, %p65
    %p67 = scmp.ne.s32.totalorder %s58, %s59
    %p68 = scmp.eq.s32.totalorder %s15, 0
    %p69 = por %p67, %p68
    %p70 = scmp.ne.s32.totalorder %s58, %s59
    %p71 = scmp.eq.s32.totalorder %s16, 1
    %p72 = por %p70, %p71
    %p74 = scmp.ne.s32.totalorder %s59, %s73
    %p75 = scmp.eq.s32.totalorder %s16, 0
    %p76 = por %p74, %p75
    %s77 = ssub.s32 %s17, %s29
    %s78 = ssub.s32 %s18, %s25
    %s79 = sor.u32 %s77, %s78
    %p80 = scmp.eq.s32.totalorder %s79, 0
    %s82 = sadd.s32 %s81, 1
    %s83 = scalar_select %p80, %s81, %s82
    %p86 = pneg %p80
    %p87 = scmp.eq.s32.totalorder %s10, 1
    %p88 = por %p86, %p87
    %p89 = scmp.ne.s32.totalorder %s81, %s84
    %p90 = scmp.eq.s32.totalorder %s10, 0
    %p91 = por %p89, %p90
    %p92 = scmp.ne.s32.totalorder %s81, %s84
    %p93 = scmp.eq.s32.totalorder %s15, 1
    %p94 = por %p92, %p93
    %p95 = scmp.ne.s32.totalorder %s84, %s85
    %p96 = scmp.eq.s32.totalorder %s15, 0
    %p97 = por %p95, %p96
    %p98 = scmp.ne.s32.totalorder %s84, %s85
    %p99 = scmp.eq.s32.totalorder %s16, 1
    %p100 = por %p98, %p99
    %p102 = scmp.ne.s32.totalorder %s85, %s101
    %p103 = scmp.eq.s32.totalorder %s16, 0
    %p104 = por %p102, %p103
    %s105 = ssub.s32 %s17, %s29
    %s106 = ssub.s32 %s18, %s25
    %s107 = sor.u32 %s105, %s106
    %p108 = scmp.eq.s32.totalorder %s107, 0
    %s110 = sadd.s32 %s109, 1
    %s111 = scalar_select %p108, %s109, %s110
    %p114 = pneg %p108
    %p115 = scmp.eq.s32.totalorder %s10, 1
    %p116 = por %p114, %p115
    %p117 = scmp.ne.s32.totalorder %s109, %s112
    %p118 = scmp.eq.s32.totalorder %s10, 0
    %p119 = por %p117, %p118
    %p120 = scmp.ne.s32.totalorder %s109, %s112
    %p121 = scmp.eq.s32.totalorder %s15, 1
    %p122 = por %p120, %p121
    %p123 = scmp.ne.s32.totalorder %s112, %s113
    %p124 = scmp.eq.s32.totalorder %s15, 0
    %p125 = por %p123, %p124
    %p126 = scmp.ne.s32.totalorder %s112, %s113
    %p127 = scmp.eq.s32.totalorder %s16, 1
    %p128 = por %p126, %p127
    %p130 = scmp.ne.s32.totalorder %s113, %s129
    %p131 = scmp.eq.s32.totalorder %s16, 0
    %p132 = por %p130, %p131
    %p133 = scmp.le.s32.totalorder 1, %s10
    %p134 = scmp.lt.s32.totalorder %s10, 3
    %p135 = pnand %p133, %p134
    %p136 = pneg %p135
    // Predicated region
    $region9: #{cnn_block_forward.2} parent=5 // pred_check
      _
    $region10: #{cnn_block_forward.2} parent=5 // pred_check_branch
      %138 = sbr.rel (%p135) target = $region12
    $region11: #{cnn_block_forward.2} parent=5 // pred_region
      %s139 = ssub.s32 %s10, 1
      // Predicated region
      $region13: #{cnn_block_forward.2} parent=11 // pred_check
        %p140 = pneg %p69
      $region14: #{cnn_block_forward.2} parent=11 // pred_check_branch
        %142 = sbr.rel (%p140) target = $region16
      $region15: #{cnn_block_forward.2} parent=11 // pred_region
        _
      $region16: #{cnn_block_forward.2} parent=11 // pred_fallthru
        _
    $region12: #{cnn_block_forward.2} parent=5 // pred_fallthru
      _
    %p143 = scmp.lt.s32.totalorder %s10, 2
    // Predicated region
    $region17: #{cnn_block_forward.2} parent=5 // pred_check
      %p144 = pneg %p143
    $region18: #{cnn_block_forward.2} parent=5 // pred_check_branch
      %146 = sbr.rel (%p144) target = $region20
    $region19: #{cnn_block_forward.2} parent=5 // pred_region
      // Predicated region
      $region21: #{cnn_block_forward.2} parent=19 // pred_check
        %p147 = pneg %p42
      $region22: #{cnn_block_forward.2} parent=19 // pred_check_branch
        %149 = sbr.rel (%p147) target = $region24
      $region23: #{cnn_block_forward.2} parent=19 // pred_region
        %p150 = scmp.lt.s32.totalorder %s17, 1
        %s151 = scalar_select %p150, %s17, 1
        %s152 = smul.addr %s151, 54
        %s153 = smul.addr %s152, 8
        %s154 = scalar_lea.vmem %s0, %s153
      $region24: #{cnn_block_forward.2} parent=19 // pred_fallthru
        _
    $region20: #{cnn_block_forward.2} parent=5 // pred_fallthru
      _
    %p155 = scmp.le.s32.totalorder 1, %s10
    %p156 = scmp.lt.s32.totalorder %s10, 3
    %p157 = pnand %p155, %p156
    %p158 = pneg %p157
    // Predicated region
    $region25: #{cnn_block_forward.2} parent=5 // pred_check
      _
    $region26: #{cnn_block_forward.2} parent=5 // pred_check_branch
      %160 = sbr.rel (%p157) target = $region28
    $region27: #{cnn_block_forward.2} parent=5 // pred_region
      %s161 = ssub.s32 %s10, 1
      %p162 = scmp.lt.s32.totalorder %s19, 1
      %s163 = scalar_select %p162, %s19, 1
      %s164 = smul.addr %s163, 54
      %s165 = smul.addr %s164, 8
      %s166 = scalar_lea.vmem %s0, %s165
      %p167 = pneg %p48
      %p168 = pneg %p45
      %p169 = pneg %p69
      %p170 = pneg %p66
      %p171 = pneg %p97
      %p172 = pneg %p94
      %s173 = smul.u32 16, %s20
      %p174 = scmp.lt.s32.totalorder %s19, 1
      %s175 = scalar_select %p174, %s19, 1
      %p176 = scmp.lt.s32.totalorder %s173, 15
      %s177 = scalar_select %p176, %s173, 15
      %s178 = smul.addr %s177, 2
      %s179 = smul.addr %s175, 32
      %s180 = sadd.s32 %s178, %s179
      %s181 = smul.addr %s180, 8
      %s182 = scalar_lea.vmem %s2, %s181
      %p183 = pneg %p125
      %p184 = pneg %p122
      %p185 = scmp.lt.s32.totalorder %s19, 1
      %s186 = scalar_select %p185, %s19, 1
      %p187 = scmp.lt.s32.totalorder %s20, 0
      %s188 = scalar_select %p187, %s20, 0
      %s189 = sadd.s32 %s188, %s186
      %s190 = smul.addr %s189, 8
      %s191 = scalar_lea.vmem %s3, %s190
      %p192 = scmp.lt.s32.totalorder %s19, 1
      %s193 = scalar_select %p192, %s19, 1
      %s194 = smul.addr %s193, 54
      %s195 = smul.addr %s194, 8
      %s196 = scalar_lea.vmem %s0, %s195
      %s197 = smul.u32 16, %s20
      %p198 = scmp.lt.s32.totalorder %s19, 1
      %s199 = scalar_select %p198, %s19, 1
      %p200 = scmp.lt.s32.totalorder %s197, 15
      %s201 = scalar_select %p200, %s197, 15
      %s202 = smul.addr %s201, 2
      %s203 = smul.addr %s199, 32
      %s204 = sadd.s32 %s202, %s203
      %s205 = smul.addr %s204, 8
      %s206 = scalar_lea.vmem %s2, %s205
      %s207 = smul.u32 16, %s20
      %p208 = scmp.lt.s32.totalorder %s19, 1
      %s209 = scalar_select %p208, %s19, 1
      %p210 = scmp.lt.s32.totalorder %s20, 0
      %s211 = scalar_select %p210, %s20, 0
      %s212 = sadd.s32 %s211, %s209
      %s213 = smul.addr %s212, 8
      %s214 = scalar_lea.vmem %s3, %s213
      %s215 = smul.u32 %s20, 16
      %s216 = smul.u32 %s215, 24
      %s217 = scalar_lea.vmem %s196, %s216
      %v218 = vld [vmem:[%s217] sm:$0xff]
      %v219 = vld [vmem:[%s217 + $0x8] sm:$0xff]
      %v220 = vld [vmem:[%s217 + $0x18] sm:$0xff]
      %v221 = vld [vmem:[%s217 + $0x20] sm:$0xff]
      %v222 = vld [vmem:[%s217 + $0x30] sm:$0xff]
      %v223 = vld [vmem:[%s217 + $0x38] sm:$0xff]
      %v224 = vld [vmem:[%s217 + $0x48] sm:$0xff]
      %v225 = vld [vmem:[%s217 + $0x50] sm:$0xff]
      %v226 = vld [vmem:[%s217 + $0x60] sm:$0xff]
      %v227 = vld [vmem:[%s217 + $0x68] sm:$0xff]
      %v228 = vld [vmem:[%s217 + $0x78] sm:$0xff]
      %v229 = vld [vmem:[%s217 + $0x80] sm:$0xff]
      %v230 = vld [vmem:[%s217 + $0x90] sm:$0xff]
      %v231 = vld [vmem:[%s217 + $0x98] sm:$0xff]
      %v232 = vld [vmem:[%s217 + $0xa8] sm:$0xff]
      %v233 = vld [vmem:[%s217 + $0xb0] sm:$0xff]
      %v234 = vld [vmem:[%s217 + $0xc0] sm:$0xff]
      %v235 = vld [vmem:[%s217 + $0xc8] sm:$0xff]
      %v236 = vld [vmem:[%s217 + $0xd8] sm:$0xff]
      %v237 = vld [vmem:[%s217 + $0xe0] sm:$0xff]
      %v238 = vld [vmem:[%s217 + $0xf0] sm:$0xff]
      %v239 = vld [vmem:[%s217 + $0xf8] sm:$0xff]
      %v240 = vld [vmem:[%s217 + $0x108] sm:$0xff]
      %v241 = vld [vmem:[%s217 + $0x110] sm:$0xff]
      %v242 = vld [vmem:[%s217 + $0x120] sm:$0xff]
      %v243 = vld [vmem:[%s217 + $0x128] sm:$0xff]
      %v244 = vld [vmem:[%s217 + $0x138] sm:$0xff]
      %v245 = vld [vmem:[%s217 + $0x140] sm:$0xff]
      %v246 = vld [vmem:[%s217 + $0x150] sm:$0xff]
      %v247 = vld [vmem:[%s217 + $0x158] sm:$0xff]
      %v248 = vld [vmem:[%s217 + $0x168] sm:$0xff]
      %v249 = vld [vmem:[%s217 + $0x170] sm:$0xff]
      %v250 = vld [vmem:[%s1] sm:$0xf]
      %v251 = vld [vmem:[%s217 + $0x1] sm:$0xff]
      %v252 = vld [vmem:[%s217 + $0x9] sm:$0xff]
      %v253 = vld [vmem:[%s217 + $0x19] sm:$0xff]
      %v254 = vld [vmem:[%s217 + $0x21] sm:$0xff]
      %v255 = vld [vmem:[%s217 + $0x31] sm:$0xff]
      %v256 = vld [vmem:[%s217 + $0x39] sm:$0xff]
      %v257 = vld [vmem:[%s217 + $0x49] sm:$0xff]
      %v258 = vld [vmem:[%s217 + $0x51] sm:$0xff]
      %v259 = vld [vmem:[%s217 + $0x61] sm:$0xff]
      %v260 = vld [vmem:[%s217 + $0x69] sm:$0xff]
      %v261 = vld [vmem:[%s217 + $0x79] sm:$0xff]
      %v262 = vld [vmem:[%s217 + $0x81] sm:$0xff]
      %v263 = vld [vmem:[%s217 + $0x91] sm:$0xff]
      %v264 = vld [vmem:[%s217 + $0x99] sm:$0xff]
      %v265 = vld [vmem:[%s217 + $0xa9] sm:$0xff]
      %v266 = vld [vmem:[%s217 + $0xb1] sm:$0xff]
      %v267 = vld [vmem:[%s217 + $0xc1] sm:$0xff]
      %v268 = vld [vmem:[%s217 + $0xc9] sm:$0xff]
      %v269 = vld [vmem:[%s217 + $0xd9] sm:$0xff]
      %v270 = vld [vmem:[%s217 + $0xe1] sm:$0xff]
      %v271 = vld [vmem:[%s217 + $0xf1] sm:$0xff]
      %v272 = vld [vmem:[%s217 + $0xf9] sm:$0xff]
      %v273 = vld [vmem:[%s217 + $0x109] sm:$0xff]
      %v274 = vld [vmem:[%s217 + $0x111] sm:$0xff]
      %v275 = vld [vmem:[%s217 + $0x121] sm:$0xff]
      %v276 = vld [vmem:[%s217 + $0x129] sm:$0xff]
      %v277 = vld [vmem:[%s217 + $0x139] sm:$0xff]
      %v278 = vld [vmem:[%s217 + $0x141] sm:$0xff]
      %v279 = vld [vmem:[%s217 + $0x151] sm:$0xff]
      %v280 = vld [vmem:[%s217 + $0x159] sm:$0xff]
      %v281 = vld [vmem:[%s217 + $0x169] sm:$0xff]
      %v282 = vld [vmem:[%s217 + $0x171] sm:$0xff]
      %s283 = scalar_lea.vmem %s1, 4
      %v284 = vld [vmem:[%s283] sm:$0xf]
      %vm285 = vcmask 31744
      %v287 = vsel %vm285, %v251, 0
      %v290 = vsel %vm285, %v252, 0
      %v293 = vsel %vm285, %v253, 0
      %v296 = vsel %vm285, %v254, 0
      %v299 = vsel %vm285, %v255, 0
      %v302 = vsel %vm285, %v256, 0
      %v305 = vsel %vm285, %v257, 0
      %v308 = vsel %vm285, %v258, 0
      %v311 = vsel %vm285, %v259, 0
      %v314 = vsel %vm285, %v260, 0
      %v317 = vsel %vm285, %v261, 0
      %v320 = vsel %vm285, %v262, 0
      %v323 = vsel %vm285, %v263, 0
      %v326 = vsel %vm285, %v264, 0
      %v329 = vsel %vm285, %v265, 0
      %v332 = vsel %vm285, %v266, 0
      %v335 = vsel %vm285, %v267, 0
      %v338 = vsel %vm285, %v268, 0
      %v341 = vsel %vm285, %v269, 0
      %v344 = vsel %vm285, %v270, 0
      %v347 = vsel %vm285, %v271, 0
      %v350 = vsel %vm285, %v272, 0
      %v353 = vsel %vm285, %v273, 0
      %v356 = vsel %vm285, %v274, 0
      %v359 = vsel %vm285, %v275, 0
      %v362 = vsel %vm285, %v276, 0
      %v365 = vsel %vm285, %v277, 0
      %v368 = vsel %vm285, %v278, 0
      %v371 = vsel %vm285, %v279, 0
      %v374 = vsel %vm285, %v280, 0
      %v377 = vsel %vm285, %v281, 0
      %v380 = vsel %vm285, %v282, 0
      %vm382 = vcmask 1043456
      %v384 = vsel %vm382, %v284, 0
      %386 = vmatprep.subr.mxu0 0.0
      %387 = vmatpush1.msra.mxu0 %v384
      %388 = vmatprep.subr.mxu0 0.0
      %389 = vmatpush1.msra.mxu0 0.0
      %390 = vmatprep.subr.mxu0 0.0
      %391 = vmatpush1.msra.mxu0 0.0
      %392 = vmatprep.subr.mxu0 0.0
      %393 = vmatpush1.msra.mxu0 0.0
      %394 = vmatprep.subr.mxu0 0.0
      %395 = vmatpush1.msra.mxu0 0.0
      %396 = vmatprep.subr.mxu0 0.0
      %397 = vmatpush1.msra.mxu0 0.0
      %398 = vmatprep.subr.mxu0 0.0
      %399 = vmatpush1.msra.mxu0 0.0
      %400 = vmatprep.subr.mxu0 0.0
      %401 = vmatpush1.msra.mxu0 0.0
      %402 = vmatprep.subr.mxu0 0.0
      %403 = vmatpush1.msra.mxu0 0.0
      %404 = vmatprep.subr.mxu0 0.0
      %405 = vmatpush1.msra.mxu0 0.0
      %406 = vmatprep.subr.mxu0 0.0
      %407 = vmatpush1.msra.mxu0 0.0
      %408 = vmatprep.subr.mxu0 0.0
      %409 = vmatpush1.msra.mxu0 0.0
      %410 = vmatprep.subr.mxu0 0.0
      %411 = vmatpush1.msra.mxu0 0.0
      %412 = vmatprep.subr.mxu0 0.0
      %413 = vmatpush1.msra.mxu0 0.0
      %414 = vmatprep.subr.mxu0 0.0
      %415 = vmatpush1.msra.mxu0 0.0
      %416 = vmatprep.subr.mxu0 0.0
      %417 = vmatpush1.msra.mxu0 0.0
      %418 = vmatprep.subr.mxu0 0.0
      %419 = vmatpush1.msra.mxu0 0.0
      %420 = vmatprep.subr.mxu0 0.0
      %421 = vmatpush1.msra.mxu0 0.0
      %422 = vmatprep.subr.mxu0 0.0
      %423 = vmatpush1.msra.mxu0 0.0
      %424 = vmatprep.subr.mxu0 0.0
      %425 = vmatpush1.msra.mxu0 0.0
      %426 = vmatprep.subr.mxu0 0.0
      %427 = vmatpush1.msra.mxu0 0.0
      %428 = vmatprep.subr.mxu0 0.0
      %429 = vmatpush1.msra.mxu0 0.0
      %430 = vmatprep.subr.mxu0 0.0
      %431 = vmatpush1.msra.mxu0 0.0
      %432 = vmatprep.subr.mxu0 0.0
      %433 = vmatpush1.msra.mxu0 0.0
      %434 = vmatprep.subr.mxu0 0.0
      %435 = vmatpush1.msra.mxu0 0.0
      %436 = vmatprep.subr.mxu0 0.0
      %437 = vmatpush1.msra.mxu0 0.0
      %438 = vmatprep.subr.mxu0 0.0
      %439 = vmatpush1.msra.mxu0 0.0
      %440 = vmatprep.subr.mxu0 0.0
      %441 = vmatpush1.msra.mxu0 0.0
      %442 = vmatprep.subr.mxu0 0.0
      %443 = vmatpush1.msra.mxu0 0.0
      %444 = vmatprep.subr.mxu0 0.0
      %445 = vmatpush1.msra.mxu0 0.0
      %446 = vmatprep.subr.mxu0 0.0
      %447 = vmatpush1.msra.mxu0 0.0
      %448 = vmatprep.subr.mxu0 0.0
      %449 = vmatpush1.msra.mxu0 0.0
      %450 = vmatprep.mubr.f32.mxu0 0.0
      %451 = vmatmul.mubr.f32.gmra.mrb[0].mxu0 %v287
      %v452 = vpop.f32.mrb[0].mxu0
      %v453 = vadd.f32 0.0, %v452
      %v454 = vpop.f32.mrb[0].mxu0
      %455 = vmatprep.mubr.f32.mxu0 0.0
      %456 = vmatmul.mubr.f32.gmra.mrb[0].mxu0 %v290
      %v457 = vpop.f32.mrb[0].mxu0
      %v458 = vadd.f32 0.0, %v457
      %v459 = vpop.f32.mrb[0].mxu0
      %460 = vmatprep.mubr.f32.mxu0 0.0
      %461 = vmatmul.mubr.f32.gmra.mrb[0].mxu0 %v293
      %v462 = vpop.f32.mrb[0].mxu0
      %v463 = vadd.f32 0.0, %v462
      %v464 = vpop.f32.mrb[0].mxu0
      %465 = vmatprep.mubr.f32.mxu0 0.0
      %466 = vmatmul.mubr.f32.gmra.mrb[0].mxu0 %v296
      %v467 = vpop.f32.mrb[0].mxu0
      %v468 = vadd.f32 0.0, %v467
      %v469 = vpop.f32.mrb[0].mxu0
      %470 = vmatprep.mubr.f32.mxu0 0.0
      %471 = vmatmul.mubr.f32.gmra.mrb[0].mxu0 %v299
      %v472 = vpop.f32.mrb[0].mxu0
      %v473 = vadd.f32 0.0, %v472
      %v474 = vpop.f32.mrb[0].mxu0
      %475 = vmatprep.mubr.f32.mxu0 0.0
      %476 = vmatmul.mubr.f32.gmra.mrb[0].mxu0 %v302
      %v477 = vpop.f32.mrb[0].mxu0
      %v478 = vadd.f32 0.0, %v477
      %v479 = vpop.f32.mrb[0].mxu0
      %480 = vmatprep.mubr.f32.mxu0 0.0
      %481 = vmatmul.mubr.f32.gmra.mrb[0].mxu0 %v305
      %v482 = vpop.f32.mrb[0].mxu0
      %v483 = vadd.f32 0.0, %v482
      %v484 = vpop.f32.mrb[0].mxu0
      %485 = vmatprep.mubr.f32.mxu0 0.0
      %486 = vmatmul.mubr.f32.gmra.mrb[0].mxu0 %v308
      %v487 = vpop.f32.mrb[0].mxu0
      %v488 = vadd.f32 0.0, %v487
      %v489 = vpop.f32.mrb[0].mxu0
      %490 = vmatprep.mubr.f32.mxu0 0.0
      %491 = vmatmul.mubr.f32.gmra.mrb[0].mxu0 %v311
      %v492 = vpop.f32.mrb[0].mxu0
      %v493 = vadd.f32 0.0, %v492
      %v494 = vpop.f32.mrb[0].mxu0
      %495 = vmatprep.mubr.f32.mxu0 0.0
      %496 = vmatmul.mubr.f32.gmra.mrb[0].mxu0 %v314
      %v497 = vpop.f32.mrb[0].mxu0
      %v498 = vadd.f32 0.0, %v497
      %v499 = vpop.f32.mrb[0].mxu0
      %500 = vmatprep.mubr.f32.mxu0 0.0
      %501 = vmatmul.mubr.f32.gmra.mrb[0].mxu0 %v317
      %v502 = vpop.f32.mrb[0].mxu0
      %v503 = vadd.f32 0.0, %v502
      %v504 = vpop.f32.mrb[0].mxu0
      %505 = vmatprep.mubr.f32.mxu0 0.0
      %506 = vmatmul.mubr.f32.gmra.mrb[0].mxu0 %v320
      %v507 = vpop.f32.mrb[0].mxu0
      %v508 = vadd.f32 0.0, %v507
      %v509 = vpop.f32.mrb[0].mxu0
      %510 = vmatprep.mubr.f32.mxu0 0.0
      %511 = vmatmul.mubr.f32.gmra.mrb[0].mxu0 %v323
      %v512 = vpop.f32.mrb[0].mxu0
      %v513 = vadd.f32 0.0, %v512
      %v514 = vpop.f32.mrb[0].mxu0
      %515 = vmatprep.mubr.f32.mxu0 0.0
      %516 = vmatmul.mubr.f32.gmra.mrb[0].mxu0 %v326
      %v517 = vpop.f32.mrb[0].mxu0
      %v518 = vadd.f32 0.0, %v517
      %v519 = vpop.f32.mrb[0].mxu0
      %520 = vmatprep.mubr.f32.mxu0 0.0
      %521 = vmatmul.mubr.f32.gmra.mrb[0].mxu0 %v329
      %v522 = vpop.f32.mrb[0].mxu0
      %v523 = vadd.f32 0.0, %v522
      %v524 = vpop.f32.mrb[0].mxu0
      %525 = vmatprep.mubr.f32.mxu0 0.0
      %526 = vmatmul.mubr.f32.gmra.mrb[0].mxu0 %v332
      %v527 = vpop.f32.mrb[0].mxu0
      %v528 = vadd.f32 0.0, %v527
      %v529 = vpop.f32.mrb[0].mxu0
      %530 = vmatprep.mubr.f32.mxu0 0.0
      %531 = vmatmul.mubr.f32.gmra.mrb[0].mxu0 %v335
      %v532 = vpop.f32.mrb[0].mxu0
      %v533 = vadd.f32 0.0, %v532
      %v534 = vpop.f32.mrb[0].mxu0
      %535 = vmatprep.mubr.f32.mxu0 0.0
      %536 = vmatmul.mubr.f32.gmra.mrb[0].mxu0 %v338
      %v537 = vpop.f32.mrb[0].mxu0
      %v538 = vadd.f32 0.0, %v537
      %v539 = vpop.f32.mrb[0].mxu0
      %540 = vmatprep.mubr.f32.mxu0 0.0
      %541 = vmatmul.mubr.f32.gmra.mrb[0].mxu0 %v341
      %v542 = vpop.f32.mrb[0].mxu0
      %v543 = vadd.f32 0.0, %v542
      %v544 = vpop.f32.mrb[0].mxu0
      %545 = vmatprep.mubr.f32.mxu0 0.0
      %546 = vmatmul.mubr.f32.gmra.mrb[0].mxu0 %v344
      %v547 = vpop.f32.mrb[0].mxu0
      %v548 = vadd.f32 0.0, %v547
      %v549 = vpop.f32.mrb[0].mxu0
      %550 = vmatprep.mubr.f32.mxu0 0.0
      %551 = vmatmul.mubr.f32.gmra.mrb[0].mxu0 %v347
      %v552 = vpop.f32.mrb[0].mxu0
      %v553 = vadd.f32 0.0, %v552
      %v554 = vpop.f32.mrb[0].mxu0
      %555 = vmatprep.mubr.f32.mxu0 0.0
      %556 = vmatmul.mubr.f32.gmra.mrb[0].mxu0 %v350
      %v557 = vpop.f32.mrb[0].mxu0
      %v558 = vadd.f32 0.0, %v557
      %v559 = vpop.f32.mrb[0].mxu0
      %560 = vmatprep.mubr.f32.mxu0 0.0
      %561 = vmatmul.mubr.f32.gmra.mrb[0].mxu0 %v353
      %v562 = vpop.f32.mrb[0].mxu0
      %v563 = vadd.f32 0.0, %v562
      %v564 = vpop.f32.mrb[0].mxu0
      %565 = vmatprep.mubr.f32.mxu0 0.0
      %566 = vmatmul.mubr.f32.gmra.mrb[0].mxu0 %v356
      %v567 = vpop.f32.mrb[0].mxu0
      %v568 = vadd.f32 0.0, %v567
      %v569 = vpop.f32.mrb[0].mxu0
      %570 = vmatprep.mubr.f32.mxu0 0.0
      %571 = vmatmul.mubr.f32.gmra.mrb[0].mxu0 %v359
      %v572 = vpop.f32.mrb[0].mxu0
      %v573 = vadd.f32 0.0, %v572
      %v574 = vpop.f32.mrb[0].mxu0
      %575 = vmatprep.mubr.f32.mxu0 0.0
      %576 = vmatmul.mubr.f32.gmra.mrb[0].mxu0 %v362
      %v577 = vpop.f32.mrb[0].mxu0
      %v578 = vadd.f32 0.0, %v577
      %v579 = vpop.f32.mrb[0].mxu0
      %580 = vmatprep.mubr.f32.mxu0 0.0
      %581 = vmatmul.mubr.f32.gmra.mrb[0].mxu0 %v365
      %v582 = vpop.f32.mrb[0].mxu0
      %v583 = vadd.f32 0.0, %v582
      %v584 = vpop.f32.mrb[0].mxu0
      %585 = vmatprep.mubr.f32.mxu0 0.0
      %586 = vmatmul.mubr.f32.gmra.mrb[0].mxu0 %v368
      %v587 = vpop.f32.mrb[0].mxu0
      %v588 = vadd.f32 0.0, %v587
      %v589 = vpop.f32.mrb[0].mxu0
      %590 = vmatprep.mubr.f32.mxu0 0.0
      %591 = vmatmul.mubr.f32.gmra.mrb[0].mxu0 %v371
      %v592 = vpop.f32.mrb[0].mxu0
      %v593 = vadd.f32 0.0, %v592
      %v594 = vpop.f32.mrb[0].mxu0
      %595 = vmatprep.mubr.f32.mxu0 0.0
      %596 = vmatmul.mubr.f32.gmra.mrb[0].mxu0 %v374
      %v597 = vpop.f32.mrb[0].mxu0
      %v598 = vadd.f32 0.0, %v597
      %v599 = vpop.f32.mrb[0].mxu0
      %600 = vmatprep.mubr.f32.mxu0 0.0
      %601 = vmatmul.mubr.f32.gmra.mrb[0].mxu0 %v377
      %v602 = vpop.f32.mrb[0].mxu0
      %v603 = vadd.f32 0.0, %v602
      %v604 = vpop.f32.mrb[0].mxu0
      %605 = vmatprep.mubr.f32.mxu0 0.0
      %606 = vmatmul.mubr.f32.gmra.mrb[0].mxu0 %v380
      %v607 = vpop.f32.mrb[0].mxu0
      %v608 = vadd.f32 0.0, %v607
      %v609 = vpop.f32.mrb[0].mxu0
      %610 = vdwg.mxu0
      %v612 = vsel %vm285, %v218, 0
      %v615 = vsel %vm285, %v219, 0
      %v618 = vsel %vm285, %v220, 0
      %v621 = vsel %vm285, %v221, 0
      %v624 = vsel %vm285, %v222, 0
      %v627 = vsel %vm285, %v223, 0
      %v630 = vsel %vm285, %v224, 0
      %v633 = vsel %vm285, %v225, 0
      %v636 = vsel %vm285, %v226, 0
      %v639 = vsel %vm285, %v227, 0
      %v642 = vsel %vm285, %v228, 0
      %v645 = vsel %vm285, %v229, 0
      %v648 = vsel %vm285, %v230, 0
      %v651 = vsel %vm285, %v231, 0
      %v654 = vsel %vm285, %v232, 0
      %v657 = vsel %vm285, %v233, 0
      %v660 = vsel %vm285, %v234, 0
      %v663 = vsel %vm285, %v235, 0
      %v666 = vsel %vm285, %v236, 0
      %v669 = vsel %vm285, %v237, 0
      %v672 = vsel %vm285, %v238, 0
      %v675 = vsel %vm285, %v239, 0
      %v678 = vsel %vm285, %v240, 0
      %v681 = vsel %vm285, %v241, 0
      %v684 = vsel %vm285, %v242, 0
      %v687 = vsel %vm285, %v243, 0
      %v690 = vsel %vm285, %v244, 0
      %v693 = vsel %vm285, %v245, 0
      %v696 = vsel %vm285, %v246, 0
      %v699 = vsel %vm285, %v247, 0
      %v702 = vsel %vm285, %v248, 0
      %v705 = vsel %vm285, %v249, 0
      %v708 = vsel %vm382, %v250, 0
      %710 = vmatprep.subr.mxu0 0.0
      %711 = vmatpush1.msra.mxu0 %v708
      %712 = vmatprep.subr.mxu0 0.0
      %713 = vmatpush1.msra.mxu0 0.0
      %714 = vmatprep.subr.mxu0 0.0
      %715 = vmatpush1.msra.mxu0 0.0
      %716 = vmatprep.subr.mxu0 0.0
      %717 = vmatpush1.msra.mxu0 0.0
      %718 = vmatprep.subr.mxu0 0.0
      %719 = vmatpush1.msra.mxu0 0.0
      %720 = vmatprep.subr.mxu0 0.0
      %721 = vmatpush1.msra.mxu0 0.0
      %722 = vmatprep.subr.mxu0 0.0
      %723 = vmatpush1.msra.mxu0 0.0
      %724 = vmatprep.subr.mxu0 0.0
      %725 = vmatpush1.msra.mxu0 0.0
      %726 = vmatprep.subr.mxu0 0.0
      %727 = vmatpush1.msra.mxu0 0.0
      %728 = vmatprep.subr.mxu0 0.0
      %729 = vmatpush1.msra.mxu0 0.0
      %730 = vmatprep.subr.mxu0 0.0
      %731 = vmatpush1.msra.mxu0 0.0
      %732 = vmatprep.subr.mxu0 0.0
      %733 = vmatpush1.msra.mxu0 0.0
      %734 = vmatprep.subr.mxu0 0.0
      %735 = vmatpush1.msra.mxu0 0.0
      %736 = vmatprep.subr.mxu0 0.0
      %737 = vmatpush1.msra.mxu0 0.0
      %738 = vmatprep.subr.mxu0 0.0
      %739 = vmatpush1.msra.mxu0 0.0
      %740 = vmatprep.subr.mxu0 0.0
      %741 = vmatpush1.msra.mxu0 0.0
      %742 = vmatprep.subr.mxu0 0.0
      %743 = vmatpush1.msra.mxu0 0.0
      %744 = vmatprep.subr.mxu0 0.0
      %745 = vmatpush1.msra.mxu0 0.0
      %746 = vmatprep.subr.mxu0 0.0
      %747 = vmatpush1.msra.mxu0 0.0
      %748 = vmatprep.subr.mxu0 0.0
      %749 = vmatpush1.msra.mxu0 0.0
      %750 = vmatprep.subr.mxu0 0.0
      %751 = vmatpush1.msra.mxu0 0.0
      %752 = vmatprep.subr.mxu0 0.0
      %753 = vmatpush1.msra.mxu0 0.0
      %754 = vmatprep.subr.mxu0 0.0
      %755 = vmatpush1.msra.mxu0 0.0
      %756 = vmatprep.subr.mxu0 0.0
      %757 = vmatpush1.msra.mxu0 0.0
      %758 = vmatprep.subr.mxu0 0.0
      %759 = vmatpush1.msra.mxu0 0.0
      %760 = vmatprep.subr.mxu0 0.0
      %761 = vmatpush1.msra.mxu0 0.0
      %762 = vmatprep.subr.mxu0 0.0
      %763 = vmatpush1.msra.mxu0 0.0
      %764 = vmatprep.subr.mxu0 0.0
      %765 = vmatpush1.msra.mxu0 0.0
      %766 = vmatprep.subr.mxu0 0.0
      %767 = vmatpush1.msra.mxu0 0.0
      %768 = vmatprep.subr.mxu0 0.0
      %769 = vmatpush1.msra.mxu0 0.0
      %770 = vmatprep.subr.mxu0 0.0
      %771 = vmatpush1.msra.mxu0 0.0
      %772 = vmatprep.subr.mxu0 0.0
      %773 = vmatpush1.msra.mxu0 0.0
      %774 = vmatprep.mubr.f32.mxu0 0.0
      %775 = vmatmul.mubr.f32.gmra.mrb[0].mxu0 %v612
      %v776 = vpop.f32.mrb[0].mxu0
      %v777 = vadd.f32 %v453, %v776
      %v778 = vpop.f32.mrb[0].mxu0
      %779 = vmatprep.mubr.f32.mxu0 0.0
      %780 = vmatmul.mubr.f32.gmra.mrb[0].mxu0 %v615
      %v781 = vpop.f32.mrb[0].mxu0
      %v782 = vadd.f32 %v458, %v781
      %v783 = vpop.f32.mrb[0].mxu0
      %784 = vmatprep.mubr.f32.mxu0 0.0
      %785 = vmatmul.mubr.f32.gmra.mrb[0].mxu0 %v618
      %v786 = vpop.f32.mrb[0].mxu0
      %v787 = vadd.f32 %v463, %v786
      %v788 = vpop.f32.mrb[0].mxu0
      %789 = vmatprep.mubr.f32.mxu0 0.0
      %790 = vmatmul.mubr.f32.gmra.mrb[0].mxu0 %v621
      %v791 = vpop.f32.mrb[0].mxu0
      %v792 = vadd.f32 %v468, %v791
      %v793 = vpop.f32.mrb[0].mxu0
      %794 = vmatprep.mubr.f32.mxu0 0.0
      %795 = vmatmul.mubr.f32.gmra.mrb[0].mxu0 %v624
      %v796 = vpop.f32.mrb[0].mxu0
      %v797 = vadd.f32 %v473, %v796
      %v798 = vpop.f32.mrb[0].mxu0
      %799 = vmatprep.mubr.f32.mxu0 0.0
      %800 = vmatmul.mubr.f32.gmra.mrb[0].mxu0 %v627
      %v801 = vpop.f32.mrb[0].mxu0
      %v802 = vadd.f32 %v478, %v801
      %v803 = vpop.f32.mrb[0].mxu0
      %804 = vmatprep.mubr.f32.mxu0 0.0
      %805 = vmatmul.mubr.f32.gmra.mrb[0].mxu0 %v630
      %v806 = vpop.f32.mrb[0].mxu0
      %v807 = vadd.f32 %v483, %v806
      %v808 = vpop.f32.mrb[0].mxu0
      %809 = vmatprep.mubr.f32.mxu0 0.0
      %810 = vmatmul.mubr.f32.gmra.mrb[0].mxu0 %v633
      %v811 = vpop.f32.mrb[0].mxu0
      %v812 = vadd.f32 %v488, %v811
      %v813 = vpop.f32.mrb[0].mxu0
      %814 = vmatprep.mubr.f32.mxu0 0.0
      %815 = vmatmul.mubr.f32.gmra.mrb[0].mxu0 %v636
      %v816 = vpop.f32.mrb[0].mxu0
      %v817 = vadd.f32 %v493, %v816
      %v818 = vpop.f32.mrb[0].mxu0
      %819 = vmatprep.mubr.f32.mxu0 0.0
      %820 = vmatmul.mubr.f32.gmra.mrb[0].mxu0 %v639
      %v821 = vpop.f32.mrb[0].mxu0
      %v822 = vadd.f32 %v498, %v821
      %v823 = vpop.f32.mrb[0].mxu0
      %824 = vmatprep.mubr.f32.mxu0 0.0
      %825 = vmatmul.mubr.f32.gmra.mrb[0].mxu0 %v642
      %v826 = vpop.f32.mrb[0].mxu0
      %v827 = vadd.f32 %v503, %v826
      %v828 = vpop.f32.mrb[0].mxu0
      %829 = vmatprep.mubr.f32.mxu0 0.0
      %830 = vmatmul.mubr.f32.gmra.mrb[0].mxu0 %v645
      %v831 = vpop.f32.mrb[0].mxu0
      %v832 = vadd.f32 %v508, %v831
      %v833 = vpop.f32.mrb[0].mxu0
      %834 = vmatprep.mubr.f32.mxu0 0.0
      %835 = vmatmul.mubr.f32.gmra.mrb[0].mxu0 %v648
      %v836 = vpop.f32.mrb[0].mxu0
      %v837 = vadd.f32 %v513, %v836
      %v838 = vpop.f32.mrb[0].mxu0
      %839 = vmatprep.mubr.f32.mxu0 0.0
      %840 = vmatmul.mubr.f32.gmra.mrb[0].mxu0 %v651
      %v841 = vpop.f32.mrb[0].mxu0
      %v842 = vadd.f32 %v518, %v841
      %v843 = vpop.f32.mrb[0].mxu0
      %844 = vmatprep.mubr.f32.mxu0 0.0
      %845 = vmatmul.mubr.f32.gmra.mrb[0].mxu0 %v654
      %v846 = vpop.f32.mrb[0].mxu0
      %v847 = vadd.f32 %v523, %v846
      %v848 = vpop.f32.mrb[0].mxu0
      %849 = vmatprep.mubr.f32.mxu0 0.0
      %850 = vmatmul.mubr.f32.gmra.mrb[0].mxu0 %v657
      %v851 = vpop.f32.mrb[0].mxu0
      %v852 = vadd.f32 %v528, %v851
      %v853 = vpop.f32.mrb[0].mxu0
      %854 = vmatprep.mubr.f32.mxu0 0.0
      %855 = vmatmul.mubr.f32.gmra.mrb[0].mxu0 %v660
      %v856 = vpop.f32.mrb[0].mxu0
      %v857 = vadd.f32 %v533, %v856
      %v858 = vpop.f32.mrb[0].mxu0
      %859 = vmatprep.mubr.f32.mxu0 0.0
      %860 = vmatmul.mubr.f32.gmra.mrb[0].mxu0 %v663
      %v861 = vpop.f32.mrb[0].mxu0
      %v862 = vadd.f32 %v538, %v861
      %v863 = vpop.f32.mrb[0].mxu0
      %864 = vmatprep.mubr.f32.mxu0 0.0
      %865 = vmatmul.mubr.f32.gmra.mrb[0].mxu0 %v666
      %v866 = vpop.f32.mrb[0].mxu0
      %v867 = vadd.f32 %v543, %v866
      %v868 = vpop.f32.mrb[0].mxu0
      %869 = vmatprep.mubr.f32.mxu0 0.0
      %870 = vmatmul.mubr.f32.gmra.mrb[0].mxu0 %v669
      %v871 = vpop.f32.mrb[0].mxu0
      %v872 = vadd.f32 %v548, %v871
      %v873 = vpop.f32.mrb[0].mxu0
      %874 = vmatprep.mubr.f32.mxu0 0.0
      %875 = vmatmul.mubr.f32.gmra.mrb[0].mxu0 %v672
      %v876 = vpop.f32.mrb[0].mxu0
      %v877 = vadd.f32 %v553, %v876
      %v878 = vpop.f32.mrb[0].mxu0
      %879 = vmatprep.mubr.f32.mxu0 0.0
      %880 = vmatmul.mubr.f32.gmra.mrb[0].mxu0 %v675
      %v881 = vpop.f32.mrb[0].mxu0
      %v882 = vadd.f32 %v558, %v881
      %v883 = vpop.f32.mrb[0].mxu0
      %884 = vmatprep.mubr.f32.mxu0 0.0
      %885 = vmatmul.mubr.f32.gmra.mrb[0].mxu0 %v678
      %v886 = vpop.f32.mrb[0].mxu0
      %v887 = vadd.f32 %v563, %v886
      %v888 = vpop.f32.mrb[0].mxu0
      %889 = vmatprep.mubr.f32.mxu0 0.0
      %890 = vmatmul.mubr.f32.gmra.mrb[0].mxu0 %v681
      %v891 = vpop.f32.mrb[0].mxu0
      %v892 = vadd.f32 %v568, %v891
      %v893 = vpop.f32.mrb[0].mxu0
      %894 = vmatprep.mubr.f32.mxu0 0.0
      %895 = vmatmul.mubr.f32.gmra.mrb[0].mxu0 %v684
      %v896 = vpop.f32.mrb[0].mxu0
      %v897 = vadd.f32 %v573, %v896
      %v898 = vpop.f32.mrb[0].mxu0
      %899 = vmatprep.mubr.f32.mxu0 0.0
      %900 = vmatmul.mubr.f32.gmra.mrb[0].mxu0 %v687
      %v901 = vpop.f32.mrb[0].mxu0
      %v902 = vadd.f32 %v578, %v901
      %v903 = vpop.f32.mrb[0].mxu0
      %904 = vmatprep.mubr.f32.mxu0 0.0
      %905 = vmatmul.mubr.f32.gmra.mrb[0].mxu0 %v690
      %v906 = vpop.f32.mrb[0].mxu0
      %v907 = vadd.f32 %v583, %v906
      %v908 = vpop.f32.mrb[0].mxu0
      %909 = vmatprep.mubr.f32.mxu0 0.0
      %910 = vmatmul.mubr.f32.gmra.mrb[0].mxu0 %v693
      %v911 = vpop.f32.mrb[0].mxu0
      %v912 = vadd.f32 %v588, %v911
      %v913 = vpop.f32.mrb[0].mxu0
      %914 = vmatprep.mubr.f32.mxu0 0.0
      %915 = vmatmul.mubr.f32.gmra.mrb[0].mxu0 %v696
      %v916 = vpop.f32.mrb[0].mxu0
      %v917 = vadd.f32 %v593, %v916
      %v918 = vpop.f32.mrb[0].mxu0
      %919 = vmatprep.mubr.f32.mxu0 0.0
      %920 = vmatmul.mubr.f32.gmra.mrb[0].mxu0 %v699
      %v921 = vpop.f32.mrb[0].mxu0
      %v922 = vadd.f32 %v598, %v921
      %v923 = vpop.f32.mrb[0].mxu0
      %924 = vmatprep.mubr.f32.mxu0 0.0
      %925 = vmatmul.mubr.f32.gmra.mrb[0].mxu0 %v702
      %v926 = vpop.f32.mrb[0].mxu0
      %v927 = vadd.f32 %v603, %v926
      %v928 = vpop.f32.mrb[0].mxu0
      %929 = vmatprep.mubr.f32.mxu0 0.0
      %930 = vmatmul.mubr.f32.gmra.mrb[0].mxu0 %v705
      %v931 = vpop.f32.mrb[0].mxu0
      %v932 = vadd.f32 %v608, %v931
      %v933 = vpop.f32.mrb[0].mxu0
      %934 = vdwg.mxu0
      %v935 = vld [vmem:[%s217 + $0x2] sm:$0xff]
      %v936 = vld [vmem:[%s217 + $0xa] sm:$0xff]
      %v937 = vld [vmem:[%s217 + $0x1a] sm:$0xff]
      %v938 = vld [vmem:[%s217 + $0x22] sm:$0xff]
      %v939 = vld [vmem:[%s217 + $0x32] sm:$0xff]
      %v940 = vld [vmem:[%s217 + $0x3a] sm:$0xff]
      %v941 = vld [vmem:[%s217 + $0x4a] sm:$0xff]
      %v942 = vld [vmem:[%s217 + $0x52] sm:$0xff]
      %v943 = vld [vmem:[%s217 + $0x62] sm:$0xff]
      %v944 = vld [vmem:[%s217 + $0x6a] sm:$0xff]
      %v945 = vld [vmem:[%s217 + $0x7a] sm:$0xff]
      %v946 = vld [vmem:[%s217 + $0x82] sm:$0xff]
      %v947 = vld [vmem:[%s217 + $0x92] sm:$0xff]
      %v948 = vld [vmem:[%s217 + $0x9a] sm:$0xff]
      %v949 = vld [vmem:[%s217 + $0xaa] sm:$0xff]
      %v950 = vld [vmem:[%s217 + $0xb2] sm:$0xff]
      %v951 = vld [vmem:[%s217 + $0xc2] sm:$0xff]
      %v952 = vld [vmem:[%s217 + $0xca] sm:$0xff]
      %v953 = vld [vmem:[%s217 + $0xda] sm:$0xff]
      %v954 = vld [vmem:[%s217 + $0xe2] sm:$0xff]
      %v955 = vld [vmem:[%s217 + $0xf2] sm:$0xff]
      %v956 = vld [vmem:[%s217 + $0xfa] sm:$0xff]
      %v957 = vld [vmem:[%s217 + $0x10a] sm:$0xff]
      %v958 = vld [vmem:[%s217 + $0x112] sm:$0xff]
      %v959 = vld [vmem:[%s217 + $0x122] sm:$0xff]
      %v960 = vld [vmem:[%s217 + $0x12a] sm:$0xff]
      %v961 = vld [vmem:[%s217 + $0x13a] sm:$0xff]
      %v962 = vld [vmem:[%s217 + $0x142] sm:$0xff]
      %v963 = vld [vmem:[%s217 + $0x152] sm:$0xff]
      %v964 = vld [vmem:[%s217 + $0x15a] sm:$0xff]
      %v965 = vld [vmem:[%s217 + $0x16a] sm:$0xff]
      %v966 = vld [vmem:[%s217 + $0x172] sm:$0xff]
      %s967 = scalar_lea.vmem %s1, 8
      %v968 = vld [vmem:[%s967] sm:$0xf]
      %v970 = vsel %vm285, %v935, 0
      %v973 = vsel %vm285, %v936, 0
      %v976 = vsel %vm285, %v937, 0
      %v979 = vsel %vm285, %v938, 0
      %v982 = vsel %vm285, %v939, 0
      %v985 = vsel %vm285, %v940, 0
      %v988 = vsel %vm285, %v941, 0
      %v991 = vsel %vm285, %v942, 0
      %v994 = vsel %vm285, %v943, 0
      %v997 = vsel %vm285, %v944, 0
      %v1000 = vsel %vm285, %v945, 0
      %v1003 = vsel %vm285, %v946, 0
      %v1006 = vsel %vm285, %v947, 0
      %v1009 = vsel %vm285, %v948, 0
      %v1012 = vsel %vm285, %v949, 0
      %v1015 = vsel %vm285, %v950, 0
      %v1018 = vsel %vm285, %v951, 0
      %v1021 = vsel %vm285, %v952, 0
      %v1024 = vsel %vm285, %v953, 0
      %v1027 = vsel %vm285, %v954, 0
      %v1030 = vsel %vm285, %v955, 0
      %v1033 = vsel %vm285, %v956, 0
      %v1036 = vsel %vm285, %v957, 0
      %v1039 = vsel %vm285, %v958, 0
      %v1042 = vsel %vm285, %v959, 0
      %v1045 = vsel %vm285, %v960, 0
      %v1048 = vsel %vm285, %v961, 0
      %v1051 = vsel %vm285, %v962, 0
      %v1054 = vsel %vm285, %v963, 0
      %v1057 = vsel %vm285, %v964, 0
      %v1060 = vsel %vm285, %v965, 0
      %v1063 = vsel %vm285, %v966, 0
      %v1066 = vsel %vm382, %v968, 0
      %1068 = vmatprep.subr.mxu0 0.0
      %1069 = vmatpush1.msra.mxu0 %v1066
      %1070 = vmatprep.subr.mxu0 0.0
      %1071 = vmatpush1.msra.mxu0 0.0
      %1072 = vmatprep.subr.mxu0 0.0
      %1073 = vmatpush1.msra.mxu0 0.0
      %1074 = vmatprep.subr.mxu0 0.0
      %1075 = vmatpush1.msra.mxu0 0.0
      %1076 = vmatprep.subr.mxu0 0.0
      %1077 = vmatpush1.msra.mxu0 0.0
      %1078 = vmatprep.subr.mxu0 0.0
      %1079 = vmatpush1.msra.mxu0 0.0
      %1080 = vmatprep.subr.mxu0 0.0
      %1081 = vmatpush1.msra.mxu0 0.0
      %1082 = vmatprep.subr.mxu0 0.0
      %1083 = vmatpush1.msra.mxu0 0.0
      %1084 = vmatprep.subr.mxu0 0.0
      %1085 = vmatpush1.msra.mxu0 0.0
      %1086 = vmatprep.subr.mxu0 0.0
      %1087 = vmatpush1.msra.mxu0 0.0
      %1088 = vmatprep.subr.mxu0 0.0
      %1089 = vmatpush1.msra.mxu0 0.0
      %1090 = vmatprep.subr.mxu0 0.0
      %1091 = vmatpush1.msra.mxu0 0.0
      %1092 = vmatprep.subr.mxu0 0.0
      %1093 = vmatpush1.msra.mxu0 0.0
      %1094 = vmatprep.subr.mxu0 0.0
      %1095 = vmatpush1.msra.mxu0 0.0
      %1096 = vmatprep.subr.mxu0 0.0
      %1097 = vmatpush1.msra.mxu0 0.0
      %1098 = vmatprep.subr.mxu0 0.0
      %1099 = vmatpush1.msra.mxu0 0.0
      %1100 = vmatprep.subr.mxu0 0.0
      %1101 = vmatpush1.msra.mxu0 0.0
      %1102 = vmatprep.subr.mxu0 0.0
      %1103 = vmatpush1.msra.mxu0 0.0
      %1104 = vmatprep.subr.mxu0 0.0
      %1105 = vmatpush1.msra.mxu0 0.0
      %1106 = vmatprep.subr.mxu0 0.0
      %1107 = vmatpush1.msra.mxu0 0.0
      %1108 = vmatprep.subr.mxu0 0.0
      %1109 = vmatpush1.msra.mxu0 0.0
      %1110 = vmatprep.subr.mxu0 0.0
      %1111 = vmatpush1.msra.mxu0 0.0
      %1112 = vmatprep.subr.mxu0 0.0
      %1113 = vmatpush1.msra.mxu0 0.0
      %1114 = vmatprep.subr.mxu0 0.0
      %1115 = vmatpush1.msra.mxu0 0.0
      %1116 = vmatprep.subr.mxu0 0.0
      %1117 = vmatpush1.msra.mxu0 0.0
      %1118 = vmatprep.subr.mxu0 0.0
      %1119 = vmatpush1.msra.mxu0 0.0
      %1120 = vmatprep.subr.mxu0 0.0
      %1121 = vmatpush1.msra.mxu0 0.0
      %1122 = vmatprep.subr.mxu0 0.0
      %1123 = vmatpush1.msra.mxu0 0.0
      %1124 = vmatprep.subr.mxu0 0.0
      %1125 = vmatpush1.msra.mxu0 0.0
      %1126 = vmatprep.subr.mxu0 0.0
      %1127 = vmatpush1.msra.mxu0 0.0
      %1128 = vmatprep.subr.mxu0 0.0
      %1129 = vmatpush1.msra.mxu0 0.0
      %1130 = vmatprep.subr.mxu0 0.0
      %1131 = vmatpush1.msra.mxu0 0.0
      %1132 = vmatprep.mubr.f32.mxu0 0.0
      %1133 = vmatmul.mubr.f32.gmra.mrb[0].mxu0 %v970
      %v1134 = vpop.f32.mrb[0].mxu0
      %v1135 = vadd.f32 0.0, %v1134
      %v1136 = vpop.f32.mrb[0].mxu0
      %1137 = vmatprep.mubr.f32.mxu0 0.0
      %1138 = vmatmul.mubr.f32.gmra.mrb[0].mxu0 %v973
      %v1139 = vpop.f32.mrb[0].mxu0
      %v1140 = vadd.f32 0.0, %v1139
      %v1141 = vpop.f32.mrb[0].mxu0
      %1142 = vmatprep.mubr.f32.mxu0 0.0
      %1143 = vmatmul.mubr.f32.gmra.mrb[0].mxu0 %v976
      %v1144 = vpop.f32.mrb[0].mxu0
      %v1145 = vadd.f32 0.0, %v1144
      %v1146 = vpop.f32.mrb[0].mxu0
      %1147 = vmatprep.mubr.f32.mxu0 0.0
      %1148 = vmatmul.mubr.f32.gmra.mrb[0].mxu0 %v979
      %v1149 = vpop.f32.mrb[0].mxu0
      %v1150 = vadd.f32 0.0, %v1149
      %v1151 = vpop.f32.mrb[0].mxu0
      %1152 = vmatprep.mubr.f32.mxu0 0.0
      %1153 = vmatmul.mubr.f32.gmra.mrb[0].mxu0 %v982
      %v1154 = vpop.f32.mrb[0].mxu0
      %v1155 = vadd.f32 0.0, %v1154
      %v1156 = vpop.f32.mrb[0].mxu0
      %1157 = vmatprep.mubr.f32.mxu0 0.0
      %1158 = vmatmul.mubr.f32.gmra.mrb[0].mxu0 %v985
      %v1159 = vpop.f32.mrb[0].mxu0
      %v1160 = vadd.f32 0.0, %v1159
      %v1161 = vpop.f32.mrb[0].mxu0
      %1162 = vmatprep.mubr.f32.mxu0 0.0
      %1163 = vmatmul.mubr.f32.gmra.mrb[0].mxu0 %v988
      %v1164 = vpop.f32.mrb[0].mxu0
      %v1165 = vadd.f32 0.0, %v1164
      %v1166 = vpop.f32.mrb[0].mxu0
      %1167 = vmatprep.mubr.f32.mxu0 0.0
      %1168 = vmatmul.mubr.f32.gmra.mrb[0].mxu0 %v991
      %v1169 = vpop.f32.mrb[0].mxu0
      %v1170 = vadd.f32 0.0, %v1169
      %v1171 = vpop.f32.mrb[0].mxu0
      %1172 = vmatprep.mubr.f32.mxu0 0.0
      %1173 = vmatmul.mubr.f32.gmra.mrb[0].mxu0 %v994
      %v1174 = vpop.f32.mrb[0].mxu0
      %v1175 = vadd.f32 0.0, %v1174
      %v1176 = vpop.f32.mrb[0].mxu0
      %1177 = vmatprep.mubr.f32.mxu0 0.0
      %1178 = vmatmul.mubr.f32.gmra.mrb[0].mxu0 %v997
      %v1179 = vpop.f32.mrb[0].mxu0
      %v1180 = vadd.f32 0.0, %v1179
      %v1181 = vpop.f32.mrb[0].mxu0
      %1182 = vmatprep.mubr.f32.mxu0 0.0
      %1183 = vmatmul.mubr.f32.gmra.mrb[0].mxu0 %v1000
      %v1184 = vpop.f32.mrb[0].mxu0
      %v1185 = vadd.f32 0.0, %v1184
      %v1186 = vpop.f32.mrb[0].mxu0
      %1187 = vmatprep.mubr.f32.mxu0 0.0
      %1188 = vmatmul.mubr.f32.gmra.mrb[0].mxu0 %v1003
      %v1189 = vpop.f32.mrb[0].mxu0
      %v1190 = vadd.f32 0.0, %v1189
      %v1191 = vpop.f32.mrb[0].mxu0
      %1192 = vmatprep.mubr.f32.mxu0 0.0
      %1193 = vmatmul.mubr.f32.gmra.mrb[0].mxu0 %v1006
      %v1194 = vpop.f32.mrb[0].mxu0
      %v1195 = vadd.f32 0.0, %v1194
      %v1196 = vpop.f32.mrb[0].mxu0
      %1197 = vmatprep.mubr.f32.mxu0 0.0
      %1198 = vmatmul.mubr.f32.gmra.mrb[0].mxu0 %v1009
      %v1199 = vpop.f32.mrb[0].mxu0
      %v1200 = vadd.f32 0.0, %v1199
      %v1201 = vpop.f32.mrb[0].mxu0
      %1202 = vmatprep.mubr.f32.mxu0 0.0
      %1203 = vmatmul.mubr.f32.gmra.mrb[0].mxu0 %v1012
      %v1204 = vpop.f32.mrb[0].mxu0
      %v1205 = vadd.f32 0.0, %v1204
      %v1206 = vpop.f32.mrb[0].mxu0
      %1207 = vmatprep.mubr.f32.mxu0 0.0
      %1208 = vmatmul.mubr.f32.gmra.mrb[0].mxu0 %v1015
      %v1209 = vpop.f32.mrb[0].mxu0
      %v1210 = vadd.f32 0.0, %v1209
      %v1211 = vpop.f32.mrb[0].mxu0
      %1212 = vmatprep.mubr.f32.mxu0 0.0
      %1213 = vmatmul.mubr.f32.gmra.mrb[0].mxu0 %v1018
      %v1214 = vpop.f32.mrb[0].mxu0
      %v1215 = vadd.f32 0.0, %v1214
      %v1216 = vpop.f32.mrb[0].mxu0
      %1217 = vmatprep.mubr.f32.mxu0 0.0
      %1218 = vmatmul.mubr.f32.gmra.mrb[0].mxu0 %v1021
      %v1219 = vpop.f32.mrb[0].mxu0
      %v1220 = vadd.f32 0.0, %v1219
      %v1221 = vpop.f32.mrb[0].mxu0
      %1222 = vmatprep.mubr.f32.mxu0 0.0
      %1223 = vmatmul.mubr.f32.gmra.mrb[0].mxu0 %v1024
      %v1224 = vpop.f32.mrb[0].mxu0
      %v1225 = vadd.f32 0.0, %v1224
      %v1226 = vpop.f32.mrb[0].mxu0
      %1227 = vmatprep.mubr.f32.mxu0 0.0
      %1228 = vmatmul.mubr.f32.gmra.mrb[0].mxu0 %v1027
      %v1229 = vpop.f32.mrb[0].mxu0
      %v1230 = vadd.f32 0.0, %v1229
      %v1231 = vpop.f32.mrb[0].mxu0
      %1232 = vmatprep.mubr.f32.mxu0 0.0
      %1233 = vmatmul.mubr.f32.gmra.mrb[0].mxu0 %v1030
      %v1234 = vpop.f32.mrb[0].mxu0
      %v1235 = vadd.f32 0.0, %v1234
      %v1236 = vpop.f32.mrb[0].mxu0
      %1237 = vmatprep.mubr.f32.mxu0 0.0
      %1238 = vmatmul.mubr.f32.gmra.mrb[0].mxu0 %v1033
      %v1239 = vpop.f32.mrb[0].mxu0
      %v1240 = vadd.f32 0.0, %v1239
      %v1241 = vpop.f32.mrb[0].mxu0
      %1242 = vmatprep.mubr.f32.mxu0 0.0
      %1243 = vmatmul.mubr.f32.gmra.mrb[0].mxu0 %v1036
      %v1244 = vpop.f32.mrb[0].mxu0
      %v1245 = vadd.f32 0.0, %v1244
      %v1246 = vpop.f32.mrb[0].mxu0
      %1247 = vmatprep.mubr.f32.mxu0 0.0
      %1248 = vmatmul.mubr.f32.gmra.mrb[0].mxu0 %v1039
      %v1249 = vpop.f32.mrb[0].mxu0
      %v1250 = vadd.f32 0.0, %v1249
      %v1251 = vpop.f32.mrb[0].mxu0
      %1252 = vmatprep.mubr.f32.mxu0 0.0
      %1253 = vmatmul.mubr.f32.gmra.mrb[0].mxu0 %v1042
      %v1254 = vpop.f32.mrb[0].mxu0
      %v1255 = vadd.f32 0.0, %v1254
      %v1256 = vpop.f32.mrb[0].mxu0
      %1257 = vmatprep.mubr.f32.mxu0 0.0
      %1258 = vmatmul.mubr.f32.gmra.mrb[0].mxu0 %v1045
      %v1259 = vpop.f32.mrb[0].mxu0
      %v1260 = vadd.f32 0.0, %v1259
      %v1261 = vpop.f32.mrb[0].mxu0
      %1262 = vmatprep.mubr.f32.mxu0 0.0
      %1263 = vmatmul.mubr.f32.gmra.mrb[0].mxu0 %v1048
      %v1264 = vpop.f32.mrb[0].mxu0
      %v1265 = vadd.f32 0.0, %v1264
      %v1266 = vpop.f32.mrb[0].mxu0
      %1267 = vmatprep.mubr.f32.mxu0 0.0
      %1268 = vmatmul.mubr.f32.gmra.mrb[0].mxu0 %v1051
      %v1269 = vpop.f32.mrb[0].mxu0
      %v1270 = vadd.f32 0.0, %v1269
      %v1271 = vpop.f32.mrb[0].mxu0
      %1272 = vmatprep.mubr.f32.mxu0 0.0
      %1273 = vmatmul.mubr.f32.gmra.mrb[0].mxu0 %v1054
      %v1274 = vpop.f32.mrb[0].mxu0
      %v1275 = vadd.f32 0.0, %v1274
      %v1276 = vpop.f32.mrb[0].mxu0
      %1277 = vmatprep.mubr.f32.mxu0 0.0
      %1278 = vmatmul.mubr.f32.gmra.mrb[0].mxu0 %v1057
      %v1279 = vpop.f32.mrb[0].mxu0
      %v1280 = vadd.f32 0.0, %v1279
      %v1281 = vpop.f32.mrb[0].mxu0
      %1282 = vmatprep.mubr.f32.mxu0 0.0
      %1283 = vmatmul.mubr.f32.gmra.mrb[0].mxu0 %v1060
      %v1284 = vpop.f32.mrb[0].mxu0
      %v1285 = vadd.f32 0.0, %v1284
      %v1286 = vpop.f32.mrb[0].mxu0
      %1287 = vmatprep.mubr.f32.mxu0 0.0
      %1288 = vmatmul.mubr.f32.gmra.mrb[0].mxu0 %v1063
      %v1289 = vpop.f32.mrb[0].mxu0
      %v1290 = vadd.f32 0.0, %v1289
      %v1291 = vpop.f32.mrb[0].mxu0
      %1292 = vdwg.mxu0
      %v1293 = vadd.f32 %v777, %v1135
      %v1294 = vadd.f32 %v782, %v1140
      %v1295 = vadd.f32 %v787, %v1145
      %v1296 = vadd.f32 %v792, %v1150
      %v1297 = vadd.f32 %v797, %v1155
      %v1298 = vadd.f32 %v802, %v1160
      %v1299 = vadd.f32 %v807, %v1165
      %v1300 = vadd.f32 %v812, %v1170
      %v1301 = vadd.f32 %v817, %v1175
      %v1302 = vadd.f32 %v822, %v1180
      %v1303 = vadd.f32 %v827, %v1185
      %v1304 = vadd.f32 %v832, %v1190
      %v1305 = vadd.f32 %v837, %v1195
      %v1306 = vadd.f32 %v842, %v1200
      %v1307 = vadd.f32 %v847, %v1205
      %v1308 = vadd.f32 %v852, %v1210
      %v1309 = vadd.f32 %v857, %v1215
      %v1310 = vadd.f32 %v862, %v1220
      %v1311 = vadd.f32 %v867, %v1225
      %v1312 = vadd.f32 %v872, %v1230
      %v1313 = vadd.f32 %v877, %v1235
      %v1314 = vadd.f32 %v882, %v1240
      %v1315 = vadd.f32 %v887, %v1245
      %v1316 = vadd.f32 %v892, %v1250
      %v1317 = vadd.f32 %v897, %v1255
      %v1318 = vadd.f32 %v902, %v1260
      %v1319 = vadd.f32 %v907, %v1265
      %v1320 = vadd.f32 %v912, %v1270
      %v1321 = vadd.f32 %v917, %v1275
      %v1322 = vadd.f32 %v922, %v1280
      %v1323 = vadd.f32 %v927, %v1285
      %v1324 = vadd.f32 %v932, %v1290
      %s1325 = sadd.s32 %s215, 1
      %s1326 = smul.u32 %s1325, 24
      %s1327 = scalar_lea.vmem %s196, %s1326
      %v1328 = vld [vmem:[%s1327] sm:$0xff]
      %v1329 = vld [vmem:[%s1327 + $0x8] sm:$0xff]
      %v1330 = vld [vmem:[%s1327 + $0x18] sm:$0xff]
      %v1331 = vld [vmem:[%s1327 + $0x20] sm:$0xff]
      %v1332 = vld [vmem:[%s1327 + $0x30] sm:$0xff]
      %v1333 = vld [vmem:[%s1327 + $0x38] sm:$0xff]
      %v1334 = vld [vmem:[%s1327 + $0x48] sm:$0xff]
      %v1335 = vld [vmem:[%s1327 + $0x50] sm:$0xff]
      %v1336 = vld [vmem:[%s1327 + $0x60] sm:$0xff]
      %v1337 = vld [vmem:[%s1327 + $0x68] sm:$0xff]
      %v1338 = vld [vmem:[%s1327 + $0x78] sm:$0xff]
      %v1339 = vld [vmem:[%s1327 + $0x80] sm:$0xff]
      %v1340 = vld [vmem:[%s1327 + $0x90] sm:$0xff]
      %v1341 = vld [vmem:[%s1327 + $0x98] sm:$0xff]
      %v1342 = vld [vmem:[%s1327 + $0xa8] sm:$0xff]
      %v1343 = vld [vmem:[%s1327 + $0xb0] sm:$0xff]
      %v1344 = vld [vmem:[%s1327 + $0xc0] sm:$0xff]
      %v1345 = vld [vmem:[%s1327 + $0xc8] sm:$0xff]
      %v1346 = vld [vmem:[%s1327 + $0xd8] sm:$0xff]
      %v1347 = vld [vmem:[%s1327 + $0xe0] sm:$0xff]
      %v1348 = vld [vmem:[%s1327 + $0xf0] sm:$0xff]
      %v1349 = vld [vmem:[%s1327 + $0xf8] sm:$0xff]
      %v1350 = vld [vmem:[%s1327 + $0x108] sm:$0xff]
      %v1351 = vld [vmem:[%s1327 + $0x110] sm:$0xff]
      %v1352 = vld [vmem:[%s1327 + $0x120] sm:$0xff]
      %v1353 = vld [vmem:[%s1327 + $0x128] sm:$0xff]
      %v1354 = vld [vmem:[%s1327 + $0x138] sm:$0xff]
      %v1355 = vld [vmem:[%s1327 + $0x140] sm:$0xff]
      %v1356 = vld [vmem:[%s1327 + $0x150] sm:$0xff]
      %v1357 = vld [vmem:[%s1327 + $0x158] sm:$0xff]
      %v1358 = vld [vmem:[%s1327 + $0x168] sm:$0xff]
      %v1359 = vld [vmem:[%s1327 + $0x170] sm:$0xff]
      %s1360 = scalar_lea.vmem %s1, 12
      %v1361 = vld [vmem:[%s1360] sm:$0xf]
      %v1363 = vsel %vm285, %v1328, 0
      %v1366 = vsel %vm285, %v1329, 0
      %v1369 = vsel %vm285, %v1330, 0
      %v1372 = vsel %vm285, %v1331, 0
      %v1375 = vsel %vm285, %v1332, 0
      %v1378 = vsel %vm285, %v1333, 0
      %v1381 = vsel %vm285, %v1334, 0
      %v1384 = vsel %vm285, %v1335, 0
      %v1387 = vsel %vm285, %v1336, 0
      %v1390 = vsel %vm285, %v1337, 0
      %v1393 = vsel %vm285, %v1338, 0
      %v1396 = vsel %vm285, %v1339, 0
      %v1399 = vsel %vm285, %v1340, 0
      %v1402 = vsel %vm285, %v1341, 0
      %v1405 = vsel %vm285, %v1342, 0
      %v1408 = vsel %vm285, %v1343, 0
      %v1411 = vsel %vm285, %v1344, 0
      %v1414 = vsel %vm285, %v1345, 0
      %v1417 = vsel %vm285, %v1346, 0
      %v1420 = vsel %vm285, %v1347, 0
      %v1423 = vsel %vm285, %v1348, 0
      %v1426 = vsel %vm285, %v1349, 0
      %v1429 = vsel %vm285, %v1350, 0
      %v1432 = vsel %vm285, %v1351, 0
      %v1435 = vsel %vm285, %v1352, 0
      %v1438 = vsel %vm285, %v1353, 0
      %v1441 = vsel %vm285, %v1354, 0
      %v1444 = vsel %vm285, %v1355, 0
      %v1447 = vsel %vm285, %v1356, 0
      %v1450 = vsel %vm285, %v1357, 0
      %v1453 = vsel %vm285, %v1358, 0
      %v1456 = vsel %vm285, %v1359, 0
      %v1459 = vsel %vm382, %v1361, 0
      %1461 = vmatprep.subr.mxu0 0.0
      %1462 = vmatpush1.msra.mxu0 %v1459
      %1463 = vmatprep.subr.mxu0 0.0
      %1464 = vmatpush1.msra.mxu0 0.0
      %1465 = vmatprep.subr.mxu0 0.0
      %1466 = vmatpush1.msra.mxu0 0.0
      %1467 = vmatprep.subr.mxu0 0.0
      %1468 = vmatpush1.msra.mxu0 0.0
      %1469 = vmatprep.subr.mxu0 0.0
      %1470 = vmatpush1.msra.mxu0 0.0
      %1471 = vmatprep.subr.mxu0 0.0
      %1472 = vmatpush1.msra.mxu0 0.0
      %1473 = vmatprep.subr.mxu0 0.0
      %1474 = vmatpush1.msra.mxu0 0.0
      %1475 = vmatprep.subr.mxu0 0.0
      %1476 = vmatpush1.msra.mxu0 0.0
      %1477 = vmatprep.subr.mxu0 0.0
      %1478 = vmatpush1.msra.mxu0 0.0
      %1479 = vmatprep.subr.mxu0 0.0
      %1480 = vmatpush1.msra.mxu0 0.0
      %1481 = vmatprep.subr.mxu0 0.0
      %1482 = vmatpush1.msra.mxu0 0.0
      %1483 = vmatprep.subr.mxu0 0.0
      %1484 = vmatpush1.msra.mxu0 0.0
      %1485 = vmatprep.subr.mxu0 0.0
      %1486 = vmatpush1.msra.mxu0 0.0
      %1487 = vmatprep.subr.mxu0 0.0
      %1488 = vmatpush1.msra.mxu0 0.0
      %1489 = vmatprep.subr.mxu0 0.0
      %1490 = vmatpush1.msra.mxu0 0.0
      %1491 = vmatprep.subr.mxu0 0.0
      %1492 = vmatpush1.msra.mxu0 0.0
      %1493 = vmatprep.subr.mxu0 0.0
      %1494 = vmatpush1.msra.mxu0 0.0
      %1495 = vmatprep.subr.mxu0 0.0
      %1496 = vmatpush1.msra.mxu0 0.0
      %1497 = vmatprep.subr.mxu0 0.0
      %1498 = vmatpush1.msra.mxu0 0.0
      %1499 = vmatprep.subr.mxu0 0.0
      %1500 = vmatpush1.msra.mxu0 0.0
      %1501 = vmatprep.subr.mxu0 0.0
      %1502 = vmatpush1.msra.mxu0 0.0
      %1503 = vmatprep.subr.mxu0 0.0
      %1504 = vmatpush1.msra.mxu0 0.0
      %1505 = vmatprep.subr.mxu0 0.0
      %1506 = vmatpush1.msra.mxu0 0.0
      %1507 = vmatprep.subr.mxu0 0.0
      %1508 = vmatpush1.msra.mxu0 0.0
      %1509 = vmatprep.subr.mxu0 0.0
      %1510 = vmatpush1.msra.mxu0 0.0
      %1511 = vmatprep.subr.mxu0 0.0
      %1512 = vmatpush1.msra.mxu0 0.0
      %1513 = vmatprep.subr.mxu0 0.0
      %1514 = vmatpush1.msra.mxu0 0.0
      %1515 = vmatprep.subr.mxu0 0.0
      %1516 = vmatpush1.msra.mxu0 0.0
      %1517 = vmatprep.subr.mxu0 0.0
      %1518 = vmatpush1.msra.mxu0 0.0
      %1519 = vmatprep.subr.mxu0 0.0
      %1520 = vmatpush1.msra.mxu0 0.0
      %1521 = vmatprep.subr.mxu0 0.0
      %1522 = vmatpush1.msra.mxu0 0.0
      %1523 = vmatprep.subr.mxu0 0.0
      %1524 = vmatpush1.msra.mxu0 0.0
      %1525 = vmatprep.mubr.f32.mxu0 0.0
      %1526 = vmatmul.mubr.f32.gmra.mrb[0].mxu0 %v1363
      %v1527 = vpop.f32.mrb[0].mxu0
      %v1528 = vadd.f32 0.0, %v1527
      %v1529 = vpop.f32.mrb[0].mxu0
      %1530 = vmatprep.mubr.f32.mxu0 0.0
      %1531 = vmatmul.mubr.f32.gmra.mrb[0].mxu0 %v1366
      %v1532 = vpop.f32.mrb[0].mxu0
      %v1533 = vadd.f32 0.0, %v1532
      %v1534 = vpop.f32.mrb[0].mxu0
      %1535 = vmatprep.mubr.f32.mxu0 0.0
      %1536 = vmatmul.mubr.f32.gmra.mrb[0].mxu0 %v1369
      %v1537 = vpop.f32.mrb[0].mxu0
      %v1538 = vadd.f32 0.0, %v1537
      %v1539 = vpop.f32.mrb[0].mxu0
      %1540 = vmatprep.mubr.f32.mxu0 0.0
      %1541 = vmatmul.mubr.f32.gmra.mrb[0].mxu0 %v1372
      %v1542 = vpop.f32.mrb[0].mxu0
      %v1543 = vadd.f32 0.0, %v1542
      %v1544 = vpop.f32.mrb[0].mxu0
      %1545 = vmatprep.mubr.f32.mxu0 0.0
      %1546 = vmatmul.mubr.f32.gmra.mrb[0].mxu0 %v1375
      %v1547 = vpop.f32.mrb[0].mxu0
      %v1548 = vadd.f32 0.0, %v1547
      %v1549 = vpop.f32.mrb[0].mxu0
      %1550 = vmatprep.mubr.f32.mxu0 0.0
      %1551 = vmatmul.mubr.f32.gmra.mrb[0].mxu0 %v1378
      %v1552 = vpop.f32.mrb[0].mxu0
      %v1553 = vadd.f32 0.0, %v1552
      %v1554 = vpop.f32.mrb[0].mxu0
      %1555 = vmatprep.mubr.f32.mxu0 0.0
      %1556 = vmatmul.mubr.f32.gmra.mrb[0].mxu0 %v1381
      %v1557 = vpop.f32.mrb[0].mxu0
      %v1558 = vadd.f32 0.0, %v1557
      %v1559 = vpop.f32.mrb[0].mxu0
      %1560 = vmatprep.mubr.f32.mxu0 0.0
      %1561 = vmatmul.mubr.f32.gmra.mrb[0].mxu0 %v1384
      %v1562 = vpop.f32.mrb[0].mxu0
      %v1563 = vadd.f32 0.0, %v1562
      %v1564 = vpop.f32.mrb[0].mxu0
      %1565 = vmatprep.mubr.f32.mxu0 0.0
      %1566 = vmatmul.mubr.f32.gmra.mrb[0].mxu0 %v1387
      %v1567 = vpop.f32.mrb[0].mxu0
      %v1568 = vadd.f32 0.0, %v1567
      %v1569 = vpop.f32.mrb[0].mxu0
      %1570 = vmatprep.mubr.f32.mxu0 0.0
      %1571 = vmatmul.mubr.f32.gmra.mrb[0].mxu0 %v1390
      %v1572 = vpop.f32.mrb[0].mxu0
      %v1573 = vadd.f32 0.0, %v1572
      %v1574 = vpop.f32.mrb[0].mxu0
      %1575 = vmatprep.mubr.f32.mxu0 0.0
      %1576 = vmatmul.mubr.f32.gmra.mrb[0].mxu0 %v1393
      %v1577 = vpop.f32.mrb[0].mxu0
      %v1578 = vadd.f32 0.0, %v1577
      %v1579 = vpop.f32.mrb[0].mxu0
      %1580 = vmatprep.mubr.f32.mxu0 0.0
      %1581 = vmatmul.mubr.f32.gmra.mrb[0].mxu0 %v1396
      %v1582 = vpop.f32.mrb[0].mxu0
      %v1583 = vadd.f32 0.0, %v1582
      %v1584 = vpop.f32.mrb[0].mxu0
      %1585 = vmatprep.mubr.f32.mxu0 0.0
      %1586 = vmatmul.mubr.f32.gmra.mrb[0].mxu0 %v1399
      %v1587 = vpop.f32.mrb[0].mxu0
      %v1588 = vadd.f32 0.0, %v1587
      %v1589 = vpop.f32.mrb[0].mxu0
      %1590 = vmatprep.mubr.f32.mxu0 0.0
      %1591 = vmatmul.mubr.f32.gmra.mrb[0].mxu0 %v1402
      %v1592 = vpop.f32.mrb[0].mxu0
      %v1593 = vadd.f32 0.0, %v1592
      %v1594 = vpop.f32.mrb[0].mxu0
      %1595 = vmatprep.mubr.f32.mxu0 0.0
      %1596 = vmatmul.mubr.f32.gmra.mrb[0].mxu0 %v1405
      %v1597 = vpop.f32.mrb[0].mxu0
      %v1598 = vadd.f32 0.0, %v1597
      %v1599 = vpop.f32.mrb[0].mxu0
      %1600 = vmatprep.mubr.f32.mxu0 0.0
      %1601 = vmatmul.mubr.f32.gmra.mrb[0].mxu0 %v1408
      %v1602 = vpop.f32.mrb[0].mxu0
      %v1603 = vadd.f32 0.0, %v1602
      %v1604 = vpop.f32.mrb[0].mxu0
      %1605 = vmatprep.mubr.f32.mxu0 0.0
      %1606 = vmatmul.mubr.f32.gmra.mrb[0].mxu0 %v1411
      %v1607 = vpop.f32.mrb[0].mxu0
      %v1608 = vadd.f32 0.0, %v1607
      %v1609 = vpop.f32.mrb[0].mxu0
      %1610 = vmatprep.mubr.f32.mxu0 0.0
      %1611 = vmatmul.mubr.f32.gmra.mrb[0].mxu0 %v1414
      %v1612 = vpop.f32.mrb[0].mxu0
      %v1613 = vadd.f32 0.0, %v1612
      %v1614 = vpop.f32.mrb[0].mxu0
      %1615 = vmatprep.mubr.f32.mxu0 0.0
      %1616 = vmatmul.mubr.f32.gmra.mrb[0].mxu0 %v1417
      %v1617 = vpop.f32.mrb[0].mxu0
      %v1618 = vadd.f32 0.0, %v1617
      %v1619 = vpop.f32.mrb[0].mxu0
      %1620 = vmatprep.mubr.f32.mxu0 0.0
      %1621 = vmatmul.mubr.f32.gmra.mrb[0].mxu0 %v1420
      %v1622 = vpop.f32.mrb[0].mxu0
      %v1623 = vadd.f32 0.0, %v1622
      %v1624 = vpop.f32.mrb[0].mxu0
      %1625 = vmatprep.mubr.f32.mxu0 0.0
      %1626 = vmatmul.mubr.f32.gmra.mrb[0].mxu0 %v1423
      %v1627 = vpop.f32.mrb[0].mxu0
      %v1628 = vadd.f32 0.0, %v1627
      %v1629 = vpop.f32.mrb[0].mxu0
      %1630 = vmatprep.mubr.f32.mxu0 0.0
      %1631 = vmatmul.mubr.f32.gmra.mrb[0].mxu0 %v1426
      %v1632 = vpop.f32.mrb[0].mxu0
      %v1633 = vadd.f32 0.0, %v1632
      %v1634 = vpop.f32.mrb[0].mxu0
      %1635 = vmatprep.mubr.f32.mxu0 0.0
      %1636 = vmatmul.mubr.f32.gmra.mrb[0].mxu0 %v1429
      %v1637 = vpop.f32.mrb[0].mxu0
      %v1638 = vadd.f32 0.0, %v1637
      %v1639 = vpop.f32.mrb[0].mxu0
      %1640 = vmatprep.mubr.f32.mxu0 0.0
      %1641 = vmatmul.mubr.f32.gmra.mrb[0].mxu0 %v1432
      %v1642 = vpop.f32.mrb[0].mxu0
      %v1643 = vadd.f32 0.0, %v1642
      %v1644 = vpop.f32.mrb[0].mxu0
      %1645 = vmatprep.mubr.f32.mxu0 0.0
      %1646 = vmatmul.mubr.f32.gmra.mrb[0].mxu0 %v1435
      %v1647 = vpop.f32.mrb[0].mxu0
      %v1648 = vadd.f32 0.0, %v1647
      %v1649 = vpop.f32.mrb[0].mxu0
      %1650 = vmatprep.mubr.f32.mxu0 0.0
      %1651 = vmatmul.mubr.f32.gmra.mrb[0].mxu0 %v1438
      %v1652 = vpop.f32.mrb[0].mxu0
      %v1653 = vadd.f32 0.0, %v1652
      %v1654 = vpop.f32.mrb[0].mxu0
      %1655 = vmatprep.mubr.f32.mxu0 0.0
      %1656 = vmatmul.mubr.f32.gmra.mrb[0].mxu0 %v1441
      %v1657 = vpop.f32.mrb[0].mxu0
      %v1658 = vadd.f32 0.0, %v1657
      %v1659 = vpop.f32.mrb[0].mxu0
      %1660 = vmatprep.mubr.f32.mxu0 0.0
      %1661 = vmatmul.mubr.f32.gmra.mrb[0].mxu0 %v1444
      %v1662 = vpop.f32.mrb[0].mxu0
      %v1663 = vadd.f32 0.0, %v1662
      %v1664 = vpop.f32.mrb[0].mxu0
      %1665 = vmatprep.mubr.f32.mxu0 0.0
      %1666 = vmatmul.mubr.f32.gmra.mrb[0].mxu0 %v1447
      %v1667 = vpop.f32.mrb[0].mxu0
      %v1668 = vadd.f32 0.0, %v1667
      %v1669 = vpop.f32.mrb[0].mxu0
      %1670 = vmatprep.mubr.f32.mxu0 0.0
      %1671 = vmatmul.mubr.f32.gmra.mrb[0].mxu0 %v1450
      %v1672 = vpop.f32.mrb[0].mxu0
      %v1673 = vadd.f32 0.0, %v1672
      %v1674 = vpop.f32.mrb[0].mxu0
      %1675 = vmatprep.mubr.f32.mxu0 0.0
      %1676 = vmatmul.mubr.f32.gmra.mrb[0].mxu0 %v1453
      %v1677 = vpop.f32.mrb[0].mxu0
      %v1678 = vadd.f32 0.0, %v1677
      %v1679 = vpop.f32.mrb[0].mxu0
      %1680 = vmatprep.mubr.f32.mxu0 0.0
      %1681 = vmatmul.mubr.f32.gmra.mrb[0].mxu0 %v1456
      %v1682 = vpop.f32.mrb[0].mxu0
      %v1683 = vadd.f32 0.0, %v1682
      %v1684 = vpop.f32.mrb[0].mxu0
      %1685 = vdwg.mxu0
      %v1686 = vadd.f32 %v1293, %v1528
      %v1687 = vadd.f32 %v1294, %v1533
      %v1688 = vadd.f32 %v1295, %v1538
      %v1689 = vadd.f32 %v1296, %v1543
      %v1690 = vadd.f32 %v1297, %v1548
      %v1691 = vadd.f32 %v1298, %v1553
      %v1692 = vadd.f32 %v1299, %v1558
      %v1693 = vadd.f32 %v1300, %v1563
      %v1694 = vadd.f32 %v1301, %v1568
      %v1695 = vadd.f32 %v1302, %v1573
      %v1696 = vadd.f32 %v1303, %v1578
      %v1697 = vadd.f32 %v1304, %v1583
      %v1698 = vadd.f32 %v1305, %v1588
      %v1699 = vadd.f32 %v1306, %v1593
      %v1700 = vadd.f32 %v1307, %v1598
      %v1701 = vadd.f32 %v1308, %v1603
      %v1702 = vadd.f32 %v1309, %v1608
      %v1703 = vadd.f32 %v1310, %v1613
      %v1704 = vadd.f32 %v1311, %v1618
      %v1705 = vadd.f32 %v1312, %v1623
      %v1706 = vadd.f32 %v1313, %v1628
      %v1707 = vadd.f32 %v1314, %v1633
      %v1708 = vadd.f32 %v1315, %v1638
      %v1709 = vadd.f32 %v1316, %v1643
      %v1710 = vadd.f32 %v1317, %v1648
      %v1711 = vadd.f32 %v1318, %v1653
      %v1712 = vadd.f32 %v1319, %v1658
      %v1713 = vadd.f32 %v1320, %v1663
      %v1714 = vadd.f32 %v1321, %v1668
      %v1715 = vadd.f32 %v1322, %v1673
      %v1716 = vadd.f32 %v1323, %v1678
      %v1717 = vadd.f32 %v1324, %v1683
      %v1718 = vld [vmem:[%s1327 + $0x1] sm:$0xff]
      %v1719 = vld [vmem:[%s1327 + $0x9] sm:$0xff]
      %v1720 = vld [vmem:[%s1327 + $0x19] sm:$0xff]
      %v1721 = vld [vmem:[%s1327 + $0x21] sm:$0xff]
      %v1722 = vld [vmem:[%s1327 + $0x31] sm:$0xff]
      %v1723 = vld [vmem:[%s1327 + $0x39] sm:$0xff]
      %v1724 = vld [vmem:[%s1327 + $0x49] sm:$0xff]
      %v1725 = vld [vmem:[%s1327 + $0x51] sm:$0xff]
      %v1726 = vld [vmem:[%s1327 + $0x61] sm:$0xff]
      %v1727 = vld [vmem:[%s1327 + $0x69] sm:$0xff]
      %v1728 = vld [vmem:[%s1327 + $0x79] sm:$0xff]
      %v1729 = vld [vmem:[%s1327 + $0x81] sm:$0xff]
      %v1730 = vld [vmem:[%s1327 + $0x91] sm:$0xff]
      %v1731 = vld [vmem:[%s1327 + $0x99] sm:$0xff]
      %v1732 = vld [vmem:[%s1327 + $0xa9] sm:$0xff]
      %v1733 = vld [vmem:[%s1327 + $0xb1] sm:$0xff]
      %v1734 = vld [vmem:[%s1327 + $0xc1] sm:$0xff]
      %v1735 = vld [vmem:[%s1327 + $0xc9] sm:$0xff]
      %v1736 = vld [vmem:[%s1327 + $0xd9] sm:$0xff]
      %v1737 = vld [vmem:[%s1327 + $0xe1] sm:$0xff]
      %v1738 = vld [vmem:[%s1327 + $0xf1] sm:$0xff]
      %v1739 = vld [vmem:[%s1327 + $0xf9] sm:$0xff]
      %v1740 = vld [vmem:[%s1327 + $0x109] sm:$0xff]
      %v1741 = vld [vmem:[%s1327 + $0x111] sm:$0xff]
      %v1742 = vld [vmem:[%s1327 + $0x121] sm:$0xff]
      %v1743 = vld [vmem:[%s1327 + $0x129] sm:$0xff]
      %v1744 = vld [vmem:[%s1327 + $0x139] sm:$0xff]
      %v1745 = vld [vmem:[%s1327 + $0x141] sm:$0xff]
      %v1746 = vld [vmem:[%s1327 + $0x151] sm:$0xff]
      %v1747 = vld [vmem:[%s1327 + $0x159] sm:$0xff]
      %v1748 = vld [vmem:[%s1327 + $0x169] sm:$0xff]
      %v1749 = vld [vmem:[%s1327 + $0x171] sm:$0xff]
      %s1750 = scalar_lea.vmem %s1, 16
      %v1751 = vld [vmem:[%s1750] sm:$0xf]
      %v1753 = vsel %vm285, %v1718, 0
      %v1756 = vsel %vm285, %v1719, 0
      %v1759 = vsel %vm285, %v1720, 0
      %v1762 = vsel %vm285, %v1721, 0
      %v1765 = vsel %vm285, %v1722, 0
      %v1768 = vsel %vm285, %v1723, 0
      %v1771 = vsel %vm285, %v1724, 0
      %v1774 = vsel %vm285, %v1725, 0
      %v1777 = vsel %vm285, %v1726, 0
      %v1780 = vsel %vm285, %v1727, 0
      %v1783 = vsel %vm285, %v1728, 0
      %v1786 = vsel %vm285, %v1729, 0
      %v1789 = vsel %vm285, %v1730, 0
      %v1792 = vsel %vm285, %v1731, 0
      %v1795 = vsel %vm285, %v1732, 0
      %v1798 = vsel %vm285, %v1733, 0
      %v1801 = vsel %vm285, %v1734, 0
      %v1804 = vsel %vm285, %v1735, 0
      %v1807 = vsel %vm285, %v1736, 0
      %v1810 = vsel %vm285, %v1737, 0
      %v1813 = vsel %vm285, %v1738, 0
      %v1816 = vsel %vm285, %v1739, 0
      %v1819 = vsel %vm285, %v1740, 0
      %v1822 = vsel %vm285, %v1741, 0
      %v1825 = vsel %vm285, %v1742, 0
      %v1828 = vsel %vm285, %v1743, 0
      %v1831 = vsel %vm285, %v1744, 0
      %v1834 = vsel %vm285, %v1745, 0
      %v1837 = vsel %vm285, %v1746, 0
      %v1840 = vsel %vm285, %v1747, 0
      %v1843 = vsel %vm285, %v1748, 0
      %v1846 = vsel %vm285, %v1749, 0
      %v1849 = vsel %vm382, %v1751, 0
      %1851 = vmatprep.subr.mxu0 0.0
      %1852 = vmatpush1.msra.mxu0 %v1849
      %1853 = vmatprep.subr.mxu0 0.0
      %1854 = vmatpush1.msra.mxu0 0.0
      %1855 = vmatprep.subr.mxu0 0.0
      %1856 = vmatpush1.msra.mxu0 0.0
      %1857 = vmatprep.subr.mxu0 0.0
      %1858 = vmatpush1.msra.mxu0 0.0
      %1859 = vmatprep.subr.mxu0 0.0
      %1860 = vmatpush1.msra.mxu0 0.0
      %1861 = vmatprep.subr.mxu0 0.0
      %1862 = vmatpush1.msra.mxu0 0.0
      %1863 = vmatprep.subr.mxu0 0.0
      %1864 = vmatpush1.msra.mxu0 0.0
      %1865 = vmatprep.subr.mxu0 0.0
      %1866 = vmatpush1.msra.mxu0 0.0
      %1867 = vmatprep.subr.mxu0 0.0
      %1868 = vmatpush1.msra.mxu0 0.0
      %1869 = vmatprep.subr.mxu0 0.0
      %1870 = vmatpush1.msra.mxu0 0.0
      %1871 = vmatprep.subr.mxu0 0.0
      %1872 = vmatpush1.msra.mxu0 0.0
      %1873 = vmatprep.subr.mxu0 0.0
      %1874 = vmatpush1.msra.mxu0 0.0
      %1875 = vmatprep.subr.mxu0 0.0
      %1876 = vmatpush1.msra.mxu0 0.0
      %1877 = vmatprep.subr.mxu0 0.0
      %1878 = vmatpush1.msra.mxu0 0.0
      %1879 = vmatprep.subr.mxu0 0.0
      %1880 = vmatpush1.msra.mxu0 0.0
      %1881 = vmatprep.subr.mxu0 0.0
      %1882 = vmatpush1.msra.mxu0 0.0
      %1883 = vmatprep.subr.mxu0 0.0
      %1884 = vmatpush1.msra.mxu0 0.0
      %1885 = vmatprep.subr.mxu0 0.0
      %1886 = vmatpush1.msra.mxu0 0.0
      %1887 = vmatprep.subr.mxu0 0.0
      %1888 = vmatpush1.msra.mxu0 0.0
      %1889 = vmatprep.subr.mxu0 0.0
      %1890 = vmatpush1.msra.mxu0 0.0
      %1891 = vmatprep.subr.mxu0 0.0
      %1892 = vmatpush1.msra.mxu0 0.0
      %1893 = vmatprep.subr.mxu0 0.0
      %1894 = vmatpush1.msra.mxu0 0.0
      %1895 = vmatprep.subr.mxu0 0.0
      %1896 = vmatpush1.msra.mxu0 0.0
      %1897 = vmatprep.subr.mxu0 0.0
      %1898 = vmatpush1.msra.mxu0 0.0
      %1899 = vmatprep.subr.mxu0 0.0
      %1900 = vmatpush1.msra.mxu0 0.0
      %1901 = vmatprep.subr.mxu0 0.0
      %1902 = vmatpush1.msra.mxu0 0.0
      %1903 = vmatprep.subr.mxu0 0.0
      %1904 = vmatpush1.msra.mxu0 0.0
      %1905 = vmatprep.subr.mxu0 0.0
      %1906 = vmatpush1.msra.mxu0 0.0
      %1907 = vmatprep.subr.mxu0 0.0
      %1908 = vmatpush1.msra.mxu0 0.0
      %1909 = vmatprep.subr.mxu0 0.0
      %1910 = vmatpush1.msra.mxu0 0.0
      %1911 = vmatprep.subr.mxu0 0.0
      %1912 = vmatpush1.msra.mxu0 0.0
      %1913 = vmatprep.subr.mxu0 0.0
      %1914 = vmatpush1.msra.mxu0 0.0
      %1915 = vmatprep.mubr.f32.mxu0 0.0
      %1916 = vmatmul.mubr.f32.gmra.mrb[0].mxu0 %v1753
      %v1917 = vpop.f32.mrb[0].mxu0
      %v1918 = vadd.f32 0.0, %v1917
      %v1919 = vpop.f32.mrb[0].mxu0
      %1920 = vmatprep.mubr.f32.mxu0 0.0
      %1921 = vmatmul.mubr.f32.gmra.mrb[0].mxu0 %v1756
      %v1922 = vpop.f32.mrb[0].mxu0
      %v1923 = vadd.f32 0.0, %v1922
      %v1924 = vpop.f32.mrb[0].mxu0
      %1925 = vmatprep.mubr.f32.mxu0 0.0
      %1926 = vmatmul.mubr.f32.gmra.mrb[0].mxu0 %v1759
      %v1927 = vpop.f32.mrb[0].mxu0
      %v1928 = vadd.f32 0.0, %v1927
      %v1929 = vpop.f32.mrb[0].mxu0
      %1930 = vmatprep.mubr.f32.mxu0 0.0
      %1931 = vmatmul.mubr.f32.gmra.mrb[0].mxu0 %v1762
      %v1932 = vpop.f32.mrb[0].mxu0
      %v1933 = vadd.f32 0.0, %v1932
      %v1934 = vpop.f32.mrb[0].mxu0
      %1935 = vmatprep.mubr.f32.mxu0 0.0
      %1936 = vmatmul.mubr.f32.gmra.mrb[0].mxu0 %v1765
      %v1937 = vpop.f32.mrb[0].mxu0
      %v1938 = vadd.f32 0.0, %v1937
      %v1939 = vpop.f32.mrb[0].mxu0
      %1940 = vmatprep.mubr.f32.mxu0 0.0
      %1941 = vmatmul.mubr.f32.gmra.mrb[0].mxu0 %v1768
      %v1942 = vpop.f32.mrb[0].mxu0
      %v1943 = vadd.f32 0.0, %v1942
      %v1944 = vpop.f32.mrb[0].mxu0
      %1945 = vmatprep.mubr.f32.mxu0 0.0
      %1946 = vmatmul.mubr.f32.gmra.mrb[0].mxu0 %v1771
      %v1947 = vpop.f32.mrb[0].mxu0
      %v1948 = vadd.f32 0.0, %v1947
      %v1949 = vpop.f32.mrb[0].mxu0
      %1950 = vmatprep.mubr.f32.mxu0 0.0
      %1951 = vmatmul.mubr.f32.gmra.mrb[0].mxu0 %v1774
      %v1952 = vpop.f32.mrb[0].mxu0
      %v1953 = vadd.f32 0.0, %v1952
      %v1954 = vpop.f32.mrb[0].mxu0
      %1955 = vmatprep.mubr.f32.mxu0 0.0
      %1956 = vmatmul.mubr.f32.gmra.mrb[0].mxu0 %v1777
      %v1957 = vpop.f32.mrb[0].mxu0
      %v1958 = vadd.f32 0.0, %v1957
      %v1959 = vpop.f32.mrb[0].mxu0
      %1960 = vmatprep.mubr.f32.mxu0 0.0
      %1961 = vmatmul.mubr.f32.gmra.mrb[0].mxu0 %v1780
      %v1962 = vpop.f32.mrb[0].mxu0
      %v1963 = vadd.f32 0.0, %v1962
      %v1964 = vpop.f32.mrb[0].mxu0
      %1965 = vmatprep.mubr.f32.mxu0 0.0
      %1966 = vmatmul.mubr.f32.gmra.mrb[0].mxu0 %v1783
      %v1967 = vpop.f32.mrb[0].mxu0
      %v1968 = vadd.f32 0.0, %v1967
      %v1969 = vpop.f32.mrb[0].mxu0
      %1970 = vmatprep.mubr.f32.mxu0 0.0
      %1971 = vmatmul.mubr.f32.gmra.mrb[0].mxu0 %v1786
      %v1972 = vpop.f32.mrb[0].mxu0
      %v1973 = vadd.f32 0.0, %v1972
      %v1974 = vpop.f32.mrb[0].mxu0
      %1975 = vmatprep.mubr.f32.mxu0 0.0
      %1976 = vmatmul.mubr.f32.gmra.mrb[0].mxu0 %v1789
      %v1977 = vpop.f32.mrb[0].mxu0
      %v1978 = vadd.f32 0.0, %v1977
      %v1979 = vpop.f32.mrb[0].mxu0
      %1980 = vmatprep.mubr.f32.mxu0 0.0
      %1981 = vmatmul.mubr.f32.gmra.mrb[0].mxu0 %v1792
      %v1982 = vpop.f32.mrb[0].mxu0
      %v1983 = vadd.f32 0.0, %v1982
      %v1984 = vpop.f32.mrb[0].mxu0
      %1985 = vmatprep.mubr.f32.mxu0 0.0
      %1986 = vmatmul.mubr.f32.gmra.mrb[0].mxu0 %v1795
      %v1987 = vpop.f32.mrb[0].mxu0
      %v1988 = vadd.f32 0.0, %v1987
      %v1989 = vpop.f32.mrb[0].mxu0
      %1990 = vmatprep.mubr.f32.mxu0 0.0
      %1991 = vmatmul.mubr.f32.gmra.mrb[0].mxu0 %v1798
      %v1992 = vpop.f32.mrb[0].mxu0
      %v1993 = vadd.f32 0.0, %v1992
      %v1994 = vpop.f32.mrb[0].mxu0
      %1995 = vmatprep.mubr.f32.mxu0 0.0
      %1996 = vmatmul.mubr.f32.gmra.mrb[0].mxu0 %v1801
      %v1997 = vpop.f32.mrb[0].mxu0
      %v1998 = vadd.f32 0.0, %v1997
      %v1999 = vpop.f32.mrb[0].mxu0
      %2000 = vmatprep.mubr.f32.mxu0 0.0
      %2001 = vmatmul.mubr.f32.gmra.mrb[0].mxu0 %v1804
      %v2002 = vpop.f32.mrb[0].mxu0
      %v2003 = vadd.f32 0.0, %v2002
      %v2004 = vpop.f32.mrb[0].mxu0
      %2005 = vmatprep.mubr.f32.mxu0 0.0
      %2006 = vmatmul.mubr.f32.gmra.mrb[0].mxu0 %v1807
      %v2007 = vpop.f32.mrb[0].mxu0
      %v2008 = vadd.f32 0.0, %v2007
      %v2009 = vpop.f32.mrb[0].mxu0
      %2010 = vmatprep.mubr.f32.mxu0 0.0
      %2011 = vmatmul.mubr.f32.gmra.mrb[0].mxu0 %v1810
      %v2012 = vpop.f32.mrb[0].mxu0
      %v2013 = vadd.f32 0.0, %v2012
      %v2014 = vpop.f32.mrb[0].mxu0
      %2015 = vmatprep.mubr.f32.mxu0 0.0
      %2016 = vmatmul.mubr.f32.gmra.mrb[0].mxu0 %v1813
      %v2017 = vpop.f32.mrb[0].mxu0
      %v2018 = vadd.f32 0.0, %v2017
      %v2019 = vpop.f32.mrb[0].mxu0
      %2020 = vmatprep.mubr.f32.mxu0 0.0
      %2021 = vmatmul.mubr.f32.gmra.mrb[0].mxu0 %v1816
      %v2022 = vpop.f32.mrb[0].mxu0
      %v2023 = vadd.f32 0.0, %v2022
      %v2024 = vpop.f32.mrb[0].mxu0
      %2025 = vmatprep.mubr.f32.mxu0 0.0
      %2026 = vmatmul.mubr.f32.gmra.mrb[0].mxu0 %v1819
      %v2027 = vpop.f32.mrb[0].mxu0
      %v2028 = vadd.f32 0.0, %v2027
      %v2029 = vpop.f32.mrb[0].mxu0
      %2030 = vmatprep.mubr.f32.mxu0 0.0
      %2031 = vmatmul.mubr.f32.gmra.mrb[0].mxu0 %v1822
      %v2032 = vpop.f32.mrb[0].mxu0
      %v2033 = vadd.f32 0.0, %v2032
      %v2034 = vpop.f32.mrb[0].mxu0
      %2035 = vmatprep.mubr.f32.mxu0 0.0
      %2036 = vmatmul.mubr.f32.gmra.mrb[0].mxu0 %v1825
      %v2037 = vpop.f32.mrb[0].mxu0
      %v2038 = vadd.f32 0.0, %v2037
      %v2039 = vpop.f32.mrb[0].mxu0
      %2040 = vmatprep.mubr.f32.mxu0 0.0
      %2041 = vmatmul.mubr.f32.gmra.mrb[0].mxu0 %v1828
      %v2042 = vpop.f32.mrb[0].mxu0
      %v2043 = vadd.f32 0.0, %v2042
      %v2044 = vpop.f32.mrb[0].mxu0
      %2045 = vmatprep.mubr.f32.mxu0 0.0
      %2046 = vmatmul.mubr.f32.gmra.mrb[0].mxu0 %v1831
      %v2047 = vpop.f32.mrb[0].mxu0
      %v2048 = vadd.f32 0.0, %v2047
      %v2049 = vpop.f32.mrb[0].mxu0
      %2050 = vmatprep.mubr.f32.mxu0 0.0
      %2051 = vmatmul.mubr.f32.gmra.mrb[0].mxu0 %v1834
      %v2052 = vpop.f32.mrb[0].mxu0
      %v2053 = vadd.f32 0.0, %v2052
      %v2054 = vpop.f32.mrb[0].mxu0
      %2055 = vmatprep.mubr.f32.mxu0 0.0
      %2056 = vmatmul.mubr.f32.gmra.mrb[0].mxu0 %v1837
      %v2057 = vpop.f32.mrb[0].mxu0
      %v2058 = vadd.f32 0.0, %v2057
      %v2059 = vpop.f32.mrb[0].mxu0
      %2060 = vmatprep.mubr.f32.mxu0 0.0
      %2061 = vmatmul.mubr.f32.gmra.mrb[0].mxu0 %v1840
      %v2062 = vpop.f32.mrb[0].mxu0
      %v2063 = vadd.f32 0.0, %v2062
      %v2064 = vpop.f32.mrb[0].mxu0
      %2065 = vmatprep.mubr.f32.mxu0 0.0
      %2066 = vmatmul.mubr.f32.gmra.mrb[0].mxu0 %v1843
      %v2067 = vpop.f32.mrb[0].mxu0
      %v2068 = vadd.f32 0.0, %v2067
      %v2069 = vpop.f32.mrb[0].mxu0
      %2070 = vmatprep.mubr.f32.mxu0 0.0
      %2071 = vmatmul.mubr.f32.gmra.mrb[0].mxu0 %v1846
      %v2072 = vpop.f32.mrb[0].mxu0
      %v2073 = vadd.f32 0.0, %v2072
      %v2074 = vpop.f32.mrb[0].mxu0
      %2075 = vdwg.mxu0
      %v2076 = vadd.f32 %v1686, %v1918
      %v2077 = vadd.f32 %v1687, %v1923
      %v2078 = vadd.f32 %v1688, %v1928
      %v2079 = vadd.f32 %v1689, %v1933
      %v2080 = vadd.f32 %v1690, %v1938
      %v2081 = vadd.f32 %v1691, %v1943
      %v2082 = vadd.f32 %v1692, %v1948
      %v2083 = vadd.f32 %v1693, %v1953
      %v2084 = vadd.f32 %v1694, %v1958
      %v2085 = vadd.f32 %v1695, %v1963
      %v2086 = vadd.f32 %v1696, %v1968
      %v2087 = vadd.f32 %v1697, %v1973
      %v2088 = vadd.f32 %v1698, %v1978
      %v2089 = vadd.f32 %v1699, %v1983
      %v2090 = vadd.f32 %v1700, %v1988
      %v2091 = vadd.f32 %v1701, %v1993
      %v2092 = vadd.f32 %v1702, %v1998
      %v2093 = vadd.f32 %v1703, %v2003
      %v2094 = vadd.f32 %v1704, %v2008
      %v2095 = vadd.f32 %v1705, %v2013
      %v2096 = vadd.f32 %v1706, %v2018
      %v2097 = vadd.f32 %v1707, %v2023
      %v2098 = vadd.f32 %v1708, %v2028
      %v2099 = vadd.f32 %v1709, %v2033
      %v2100 = vadd.f32 %v1710, %v2038
      %v2101 = vadd.f32 %v1711, %v2043
      %v2102 = vadd.f32 %v1712, %v2048
      %v2103 = vadd.f32 %v1713, %v2053
      %v2104 = vadd.f32 %v1714, %v2058
      %v2105 = vadd.f32 %v1715, %v2063
      %v2106 = vadd.f32 %v1716, %v2068
      %v2107 = vadd.f32 %v1717, %v2073
      %v2108 = vld [vmem:[%s1327 + $0x2] sm:$0xff]
      %v2109 = vld [vmem:[%s1327 + $0xa] sm:$0xff]
      %v2110 = vld [vmem:[%s1327 + $0x1a] sm:$0xff]
      %v2111 = vld [vmem:[%s1327 + $0x22] sm:$0xff]
      %v2112 = vld [vmem:[%s1327 + $0x32] sm:$0xff]
      %v2113 = vld [vmem:[%s1327 + $0x3a] sm:$0xff]
      %v2114 = vld [vmem:[%s1327 + $0x4a] sm:$0xff]
      %v2115 = vld [vmem:[%s1327 + $0x52] sm:$0xff]
      %v2116 = vld [vmem:[%s1327 + $0x62] sm:$0xff]
      %v2117 = vld [vmem:[%s1327 + $0x6a] sm:$0xff]
      %v2118 = vld [vmem:[%s1327 + $0x7a] sm:$0xff]
      %v2119 = vld [vmem:[%s1327 + $0x82] sm:$0xff]
      %v2120 = vld [vmem:[%s1327 + $0x92] sm:$0xff]
      %v2121 = vld [vmem:[%s1327 + $0x9a] sm:$0xff]
      %v2122 = vld [vmem:[%s1327 + $0xaa] sm:$0xff]
      %v2123 = vld [vmem:[%s1327 + $0xb2] sm:$0xff]
      %v2124 = vld [vmem:[%s1327 + $0xc2] sm:$0xff]
      %v2125 = vld [vmem:[%s1327 + $0xca] sm:$0xff]
      %v2126 = vld [vmem:[%s1327 + $0xda] sm:$0xff]
      %v2127 = vld [vmem:[%s1327 + $0xe2] sm:$0xff]
      %v2128 = vld [vmem:[%s1327 + $0xf2] sm:$0xff]
      %v2129 = vld [vmem:[%s1327 + $0xfa] sm:$0xff]
      %v2130 = vld [vmem:[%s1327 + $0x10a] sm:$0xff]
      %v2131 = vld [vmem:[%s1327 + $0x112] sm:$0xff]
      %v2132 = vld [vmem:[%s1327 + $0x122] sm:$0xff]
      %v2133 = vld [vmem:[%s1327 + $0x12a] sm:$0xff]
      %v2134 = vld [vmem:[%s1327 + $0x13a] sm:$0xff]
      %v2135 = vld [vmem:[%s1327 + $0x142] sm:$0xff]
      %v2136 = vld [vmem:[%s1327 + $0x152] sm:$0xff]
      %v2137 = vld [vmem:[%s1327 + $0x15a] sm:$0xff]
      %v2138 = vld [vmem:[%s1327 + $0x16a] sm:$0xff]
      %v2139 = vld [vmem:[%s1327 + $0x172] sm:$0xff]
      %s2140 = scalar_lea.vmem %s1, 20
      %v2141 = vld [vmem:[%s2140] sm:$0xf]
      %v2143 = vsel %vm285, %v2108, 0
      %v2146 = vsel %vm285, %v2109, 0
      %v2149 = vsel %vm285, %v2110, 0
      %v2152 = vsel %vm285, %v2111, 0
      %v2155 = vsel %vm285, %v2112, 0
      %v2158 = vsel %vm285, %v2113, 0
      %v2161 = vsel %vm285, %v2114, 0
      %v2164 = vsel %vm285, %v2115, 0
      %v2167 = vsel %vm285, %v2116, 0
      %v2170 = vsel %vm285, %v2117, 0
      %v2173 = vsel %vm285, %v2118, 0
      %v2176 = vsel %vm285, %v2119, 0
      %v2179 = vsel %vm285, %v2120, 0
      %v2182 = vsel %vm285, %v2121, 0
      %v2185 = vsel %vm285, %v2122, 0
      %v2188 = vsel %vm285, %v2123, 0
      %v2191 = vsel %vm285, %v2124, 0
      %v2194 = vsel %vm285, %v2125, 0
      %v2197 = vsel %vm285, %v2126, 0
      %v2200 = vsel %vm285, %v2127, 0
      %v2203 = vsel %vm285, %v2128, 0
      %v2206 = vsel %vm285, %v2129, 0
      %v2209 = vsel %vm285, %v2130, 0
      %v2212 = vsel %vm285, %v2131, 0
      %v2215 = vsel %vm285, %v2132, 0
      %v2218 = vsel %vm285, %v2133, 0
      %v2221 = vsel %vm285, %v2134, 0
      %v2224 = vsel %vm285, %v2135, 0
      %v2227 = vsel %vm285, %v2136, 0
      %v2230 = vsel %vm285, %v2137, 0
      %v2233 = vsel %vm285, %v2138, 0
      %v2236 = vsel %vm285, %v2139, 0
      %v2239 = vsel %vm382, %v2141, 0
      %2241 = vmatprep.subr.mxu0 0.0
      %2242 = vmatpush1.msra.mxu0 %v2239
      %2243 = vmatprep.subr.mxu0 0.0
      %2244 = vmatpush1.msra.mxu0 0.0
      %2245 = vmatprep.subr.mxu0 0.0
      %2246 = vmatpush1.msra.mxu0 0.0
      %2247 = vmatprep.subr.mxu0 0.0
      %2248 = vmatpush1.msra.mxu0 0.0
      %2249 = vmatprep.subr.mxu0 0.0
      %2250 = vmatpush1.msra.mxu0 0.0
      %2251 = vmatprep.subr.mxu0 0.0
      %2252 = vmatpush1.msra.mxu0 0.0
      %2253 = vmatprep.subr.mxu0 0.0
      %2254 = vmatpush1.msra.mxu0 0.0
      %2255 = vmatprep.subr.mxu0 0.0
      %2256 = vmatpush1.msra.mxu0 0.0
      %2257 = vmatprep.subr.mxu0 0.0
      %2258 = vmatpush1.msra.mxu0 0.0
      %2259 = vmatprep.subr.mxu0 0.0
      %2260 = vmatpush1.msra.mxu0 0.0
      %2261 = vmatprep.subr.mxu0 0.0
      %2262 = vmatpush1.msra.mxu0 0.0
      %2263 = vmatprep.subr.mxu0 0.0
      %2264 = vmatpush1.msra.mxu0 0.0
      %2265 = vmatprep.subr.mxu0 0.0
      %2266 = vmatpush1.msra.mxu0 0.0
      %2267 = vmatprep.subr.mxu0 0.0
      %2268 = vmatpush1.msra.mxu0 0.0
      %2269 = vmatprep.subr.mxu0 0.0
      %2270 = vmatpush1.msra.mxu0 0.0
      %2271 = vmatprep.subr.mxu0 0.0
      %2272 = vmatpush1.msra.mxu0 0.0
      %2273 = vmatprep.subr.mxu0 0.0
      %2274 = vmatpush1.msra.mxu0 0.0
      %2275 = vmatprep.subr.mxu0 0.0
      %2276 = vmatpush1.msra.mxu0 0.0
      %2277 = vmatprep.subr.mxu0 0.0
      %2278 = vmatpush1.msra.mxu0 0.0
      %2279 = vmatprep.subr.mxu0 0.0
      %2280 = vmatpush1.msra.mxu0 0.0
      %2281 = vmatprep.subr.mxu0 0.0
      %2282 = vmatpush1.msra.mxu0 0.0
      %2283 = vmatprep.subr.mxu0 0.0
      %2284 = vmatpush1.msra.mxu0 0.0
      %2285 = vmatprep.subr.mxu0 0.0
      %2286 = vmatpush1.msra.mxu0 0.0
      %2287 = vmatprep.subr.mxu0 0.0
      %2288 = vmatpush1.msra.mxu0 0.0
      %2289 = vmatprep.subr.mxu0 0.0
      %2290 = vmatpush1.msra.mxu0 0.0
      %2291 = vmatprep.subr.mxu0 0.0
      %2292 = vmatpush1.msra.mxu0 0.0
      %2293 = vmatprep.subr.mxu0 0.0
      %2294 = vmatpush1.msra.mxu0 0.0
      %2295 = vmatprep.subr.mxu0 0.0
      %2296 = vmatpush1.msra.mxu0 0.0
      %2297 = vmatprep.subr.mxu0 0.0
      %2298 = vmatpush1.msra.mxu0 0.0
      %2299 = vmatprep.subr.mxu0 0.0
      %2300 = vmatpush1.msra.mxu0 0.0
      %2301 = vmatprep.subr.mxu0 0.0
      %2302 = vmatpush1.msra.mxu0 0.0
      %2303 = vmatprep.subr.mxu0 0.0
      %2304 = vmatpush1.msra.mxu0 0.0
      %2305 = vmatprep.mubr.f32.mxu0 0.0
      %2306 = vmatmul.mubr.f32.gmra.mrb[0].mxu0 %v2143
      %v2307 = vpop.f32.mrb[0].mxu0
      %v2308 = vadd.f32 0.0, %v2307
      %v2309 = vpop.f32.mrb[0].mxu0
      %2310 = vmatprep.mubr.f32.mxu0 0.0
      %2311 = vmatmul.mubr.f32.gmra.mrb[0].mxu0 %v2146
      %v2312 = vpop.f32.mrb[0].mxu0
      %v2313 = vadd.f32 0.0, %v2312
      %v2314 = vpop.f32.mrb[0].mxu0
      %2315 = vmatprep.mubr.f32.mxu0 0.0
      %2316 = vmatmul.mubr.f32.gmra.mrb[0].mxu0 %v2149
      %v2317 = vpop.f32.mrb[0].mxu0
      %v2318 = vadd.f32 0.0, %v2317
      %v2319 = vpop.f32.mrb[0].mxu0
      %2320 = vmatprep.mubr.f32.mxu0 0.0
      %2321 = vmatmul.mubr.f32.gmra.mrb[0].mxu0 %v2152
      %v2322 = vpop.f32.mrb[0].mxu0
      %v2323 = vadd.f32 0.0, %v2322
      %v2324 = vpop.f32.mrb[0].mxu0
      %2325 = vmatprep.mubr.f32.mxu0 0.0
      %2326 = vmatmul.mubr.f32.gmra.mrb[0].mxu0 %v2155
      %v2327 = vpop.f32.mrb[0].mxu0
      %v2328 = vadd.f32 0.0, %v2327
      %v2329 = vpop.f32.mrb[0].mxu0
      %2330 = vmatprep.mubr.f32.mxu0 0.0
      %2331 = vmatmul.mubr.f32.gmra.mrb[0].mxu0 %v2158
      %v2332 = vpop.f32.mrb[0].mxu0
      %v2333 = vadd.f32 0.0, %v2332
      %v2334 = vpop.f32.mrb[0].mxu0
      %2335 = vmatprep.mubr.f32.mxu0 0.0
      %2336 = vmatmul.mubr.f32.gmra.mrb[0].mxu0 %v2161
      %v2337 = vpop.f32.mrb[0].mxu0
      %v2338 = vadd.f32 0.0, %v2337
      %v2339 = vpop.f32.mrb[0].mxu0
      %2340 = vmatprep.mubr.f32.mxu0 0.0
      %2341 = vmatmul.mubr.f32.gmra.mrb[0].mxu0 %v2164
      %v2342 = vpop.f32.mrb[0].mxu0
      %v2343 = vadd.f32 0.0, %v2342
      %v2344 = vpop.f32.mrb[0].mxu0
      %2345 = vmatprep.mubr.f32.mxu0 0.0
      %2346 = vmatmul.mubr.f32.gmra.mrb[0].mxu0 %v2167
      %v2347 = vpop.f32.mrb[0].mxu0
      %v2348 = vadd.f32 0.0, %v2347
      %v2349 = vpop.f32.mrb[0].mxu0
      %2350 = vmatprep.mubr.f32.mxu0 0.0
      %2351 = vmatmul.mubr.f32.gmra.mrb[0].mxu0 %v2170
      %v2352 = vpop.f32.mrb[0].mxu0
      %v2353 = vadd.f32 0.0, %v2352
      %v2354 = vpop.f32.mrb[0].mxu0
      %2355 = vmatprep.mubr.f32.mxu0 0.0
      %2356 = vmatmul.mubr.f32.gmra.mrb[0].mxu0 %v2173
      %v2357 = vpop.f32.mrb[0].mxu0
      %v2358 = vadd.f32 0.0, %v2357
      %v2359 = vpop.f32.mrb[0].mxu0
      %2360 = vmatprep.mubr.f32.mxu0 0.0
      %2361 = vmatmul.mubr.f32.gmra.mrb[0].mxu0 %v2176
      %v2362 = vpop.f32.mrb[0].mxu0
      %v2363 = vadd.f32 0.0, %v2362
      %v2364 = vpop.f32.mrb[0].mxu0
      %2365 = vmatprep.mubr.f32.mxu0 0.0
      %2366 = vmatmul.mubr.f32.gmra.mrb[0].mxu0 %v2179
      %v2367 = vpop.f32.mrb[0].mxu0
      %v2368 = vadd.f32 0.0, %v2367
      %v2369 = vpop.f32.mrb[0].mxu0
      %2370 = vmatprep.mubr.f32.mxu0 0.0
      %2371 = vmatmul.mubr.f32.gmra.mrb[0].mxu0 %v2182
      %v2372 = vpop.f32.mrb[0].mxu0
      %v2373 = vadd.f32 0.0, %v2372
      %v2374 = vpop.f32.mrb[0].mxu0
      %2375 = vmatprep.mubr.f32.mxu0 0.0
      %2376 = vmatmul.mubr.f32.gmra.mrb[0].mxu0 %v2185
      %v2377 = vpop.f32.mrb[0].mxu0
      %v2378 = vadd.f32 0.0, %v2377
      %v2379 = vpop.f32.mrb[0].mxu0
      %2380 = vmatprep.mubr.f32.mxu0 0.0
      %2381 = vmatmul.mubr.f32.gmra.mrb[0].mxu0 %v2188
      %v2382 = vpop.f32.mrb[0].mxu0
      %v2383 = vadd.f32 0.0, %v2382
      %v2384 = vpop.f32.mrb[0].mxu0
      %2385 = vmatprep.mubr.f32.mxu0 0.0
      %2386 = vmatmul.mubr.f32.gmra.mrb[0].mxu0 %v2191
      %v2387 = vpop.f32.mrb[0].mxu0
      %v2388 = vadd.f32 0.0, %v2387
      %v2389 = vpop.f32.mrb[0].mxu0
      %2390 = vmatprep.mubr.f32.mxu0 0.0
      %2391 = vmatmul.mubr.f32.gmra.mrb[0].mxu0 %v2194
      %v2392 = vpop.f32.mrb[0].mxu0
      %v2393 = vadd.f32 0.0, %v2392
      %v2394 = vpop.f32.mrb[0].mxu0
      %2395 = vmatprep.mubr.f32.mxu0 0.0
      %2396 = vmatmul.mubr.f32.gmra.mrb[0].mxu0 %v2197
      %v2397 = vpop.f32.mrb[0].mxu0
      %v2398 = vadd.f32 0.0, %v2397
      %v2399 = vpop.f32.mrb[0].mxu0
      %2400 = vmatprep.mubr.f32.mxu0 0.0
      %2401 = vmatmul.mubr.f32.gmra.mrb[0].mxu0 %v2200
      %v2402 = vpop.f32.mrb[0].mxu0
      %v2403 = vadd.f32 0.0, %v2402
      %v2404 = vpop.f32.mrb[0].mxu0
      %2405 = vmatprep.mubr.f32.mxu0 0.0
      %2406 = vmatmul.mubr.f32.gmra.mrb[0].mxu0 %v2203
      %v2407 = vpop.f32.mrb[0].mxu0
      %v2408 = vadd.f32 0.0, %v2407
      %v2409 = vpop.f32.mrb[0].mxu0
      %2410 = vmatprep.mubr.f32.mxu0 0.0
      %2411 = vmatmul.mubr.f32.gmra.mrb[0].mxu0 %v2206
      %v2412 = vpop.f32.mrb[0].mxu0
      %v2413 = vadd.f32 0.0, %v2412
      %v2414 = vpop.f32.mrb[0].mxu0
      %2415 = vmatprep.mubr.f32.mxu0 0.0
      %2416 = vmatmul.mubr.f32.gmra.mrb[0].mxu0 %v2209
      %v2417 = vpop.f32.mrb[0].mxu0
      %v2418 = vadd.f32 0.0, %v2417
      %v2419 = vpop.f32.mrb[0].mxu0
      %2420 = vmatprep.mubr.f32.mxu0 0.0
      %2421 = vmatmul.mubr.f32.gmra.mrb[0].mxu0 %v2212
      %v2422 = vpop.f32.mrb[0].mxu0
      %v2423 = vadd.f32 0.0, %v2422
      %v2424 = vpop.f32.mrb[0].mxu0
      %2425 = vmatprep.mubr.f32.mxu0 0.0
      %2426 = vmatmul.mubr.f32.gmra.mrb[0].mxu0 %v2215
      %v2427 = vpop.f32.mrb[0].mxu0
      %v2428 = vadd.f32 0.0, %v2427
      %v2429 = vpop.f32.mrb[0].mxu0
      %2430 = vmatprep.mubr.f32.mxu0 0.0
      %2431 = vmatmul.mubr.f32.gmra.mrb[0].mxu0 %v2218
      %v2432 = vpop.f32.mrb[0].mxu0
      %v2433 = vadd.f32 0.0, %v2432
      %v2434 = vpop.f32.mrb[0].mxu0
      %2435 = vmatprep.mubr.f32.mxu0 0.0
      %2436 = vmatmul.mubr.f32.gmra.mrb[0].mxu0 %v2221
      %v2437 = vpop.f32.mrb[0].mxu0
      %v2438 = vadd.f32 0.0, %v2437
      %v2439 = vpop.f32.mrb[0].mxu0
      %2440 = vmatprep.mubr.f32.mxu0 0.0
      %2441 = vmatmul.mubr.f32.gmra.mrb[0].mxu0 %v2224
      %v2442 = vpop.f32.mrb[0].mxu0
      %v2443 = vadd.f32 0.0, %v2442
      %v2444 = vpop.f32.mrb[0].mxu0
      %2445 = vmatprep.mubr.f32.mxu0 0.0
      %2446 = vmatmul.mubr.f32.gmra.mrb[0].mxu0 %v2227
      %v2447 = vpop.f32.mrb[0].mxu0
      %v2448 = vadd.f32 0.0, %v2447
      %v2449 = vpop.f32.mrb[0].mxu0
      %2450 = vmatprep.mubr.f32.mxu0 0.0
      %2451 = vmatmul.mubr.f32.gmra.mrb[0].mxu0 %v2230
      %v2452 = vpop.f32.mrb[0].mxu0
      %v2453 = vadd.f32 0.0, %v2452
      %v2454 = vpop.f32.mrb[0].mxu0
      %2455 = vmatprep.mubr.f32.mxu0 0.0
      %2456 = vmatmul.mubr.f32.gmra.mrb[0].mxu0 %v2233
      %v2457 = vpop.f32.mrb[0].mxu0
      %v2458 = vadd.f32 0.0, %v2457
      %v2459 = vpop.f32.mrb[0].mxu0
      %2460 = vmatprep.mubr.f32.mxu0 0.0
      %2461 = vmatmul.mubr.f32.gmra.mrb[0].mxu0 %v2236
      %v2462 = vpop.f32.mrb[0].mxu0
      %v2463 = vadd.f32 0.0, %v2462
      %v2464 = vpop.f32.mrb[0].mxu0
      %2465 = vdwg.mxu0
      %v2466 = vadd.f32 %v2076, %v2308
      %v2467 = vadd.f32 %v2077, %v2313
      %v2468 = vadd.f32 %v2078, %v2318
      %v2469 = vadd.f32 %v2079, %v2323
      %v2470 = vadd.f32 %v2080, %v2328
      %v2471 = vadd.f32 %v2081, %v2333
      %v2472 = vadd.f32 %v2082, %v2338
      %v2473 = vadd.f32 %v2083, %v2343
      %v2474 = vadd.f32 %v2084, %v2348
      %v2475 = vadd.f32 %v2085, %v2353
      %v2476 = vadd.f32 %v2086, %v2358
      %v2477 = vadd.f32 %v2087, %v2363
      %v2478 = vadd.f32 %v2088, %v2368
      %v2479 = vadd.f32 %v2089, %v2373
      %v2480 = vadd.f32 %v2090, %v2378
      %v2481 = vadd.f32 %v2091, %v2383
      %v2482 = vadd.f32 %v2092, %v2388
      %v2483 = vadd.f32 %v2093, %v2393
      %v2484 = vadd.f32 %v2094, %v2398
      %v2485 = vadd.f32 %v2095, %v2403
      %v2486 = vadd.f32 %v2096, %v2408
      %v2487 = vadd.f32 %v2097, %v2413
      %v2488 = vadd.f32 %v2098, %v2418
      %v2489 = vadd.f32 %v2099, %v2423
      %v2490 = vadd.f32 %v2100, %v2428
      %v2491 = vadd.f32 %v2101, %v2433
      %v2492 = vadd.f32 %v2102, %v2438
      %v2493 = vadd.f32 %v2103, %v2443
      %v2494 = vadd.f32 %v2104, %v2448
      %v2495 = vadd.f32 %v2105, %v2453
      %v2496 = vadd.f32 %v2106, %v2458
      %v2497 = vadd.f32 %v2107, %v2463
      %s2498 = sadd.s32 %s215, 2
      %s2499 = smul.u32 %s2498, 24
      %s2500 = scalar_lea.vmem %s196, %s2499
      %v2501 = vld [vmem:[%s2500] sm:$0xff]
      %v2502 = vld [vmem:[%s2500 + $0x8] sm:$0xff]
      %v2503 = vld [vmem:[%s2500 + $0x18] sm:$0xff]
      %v2504 = vld [vmem:[%s2500 + $0x20] sm:$0xff]
      %v2505 = vld [vmem:[%s2500 + $0x30] sm:$0xff]
      %v2506 = vld [vmem:[%s2500 + $0x38] sm:$0xff]
      %v2507 = vld [vmem:[%s2500 + $0x48] sm:$0xff]
      %v2508 = vld [vmem:[%s2500 + $0x50] sm:$0xff]
      %v2509 = vld [vmem:[%s2500 + $0x60] sm:$0xff]
      %v2510 = vld [vmem:[%s2500 + $0x68] sm:$0xff]
      %v2511 = vld [vmem:[%s2500 + $0x78] sm:$0xff]
      %v2512 = vld [vmem:[%s2500 + $0x80] sm:$0xff]
      %v2513 = vld [vmem:[%s2500 + $0x90] sm:$0xff]
      %v2514 = vld [vmem:[%s2500 + $0x98] sm:$0xff]
      %v2515 = vld [vmem:[%s2500 + $0xa8] sm:$0xff]
      %v2516 = vld [vmem:[%s2500 + $0xb0] sm:$0xff]
      %v2517 = vld [vmem:[%s2500 + $0xc0] sm:$0xff]
      %v2518 = vld [vmem:[%s2500 + $0xc8] sm:$0xff]
      %v2519 = vld [vmem:[%s2500 + $0xd8] sm:$0xff]
      %v2520 = vld [vmem:[%s2500 + $0xe0] sm:$0xff]
      %v2521 = vld [vmem:[%s2500 + $0xf0] sm:$0xff]
      %v2522 = vld [vmem:[%s2500 + $0xf8] sm:$0xff]
      %v2523 = vld [vmem:[%s2500 + $0x108] sm:$0xff]
      %v2524 = vld [vmem:[%s2500 + $0x110] sm:$0xff]
      %v2525 = vld [vmem:[%s2500 + $0x120] sm:$0xff]
      %v2526 = vld [vmem:[%s2500 + $0x128] sm:$0xff]
      %v2527 = vld [vmem:[%s2500 + $0x138] sm:$0xff]
      %v2528 = vld [vmem:[%s2500 + $0x140] sm:$0xff]
      %v2529 = vld [vmem:[%s2500 + $0x150] sm:$0xff]
      %v2530 = vld [vmem:[%s2500 + $0x158] sm:$0xff]
      %v2531 = vld [vmem:[%s2500 + $0x168] sm:$0xff]
      %v2532 = vld [vmem:[%s2500 + $0x170] sm:$0xff]
      %s2533 = scalar_lea.vmem %s1, 24
      %v2534 = vld [vmem:[%s2533] sm:$0xf]
      %v2536 = vsel %vm285, %v2501, 0
      %v2539 = vsel %vm285, %v2502, 0
      %v2542 = vsel %vm285, %v2503, 0
      %v2545 = vsel %vm285, %v2504, 0
      %v2548 = vsel %vm285, %v2505, 0
      %v2551 = vsel %vm285, %v2506, 0
      %v2554 = vsel %vm285, %v2507, 0
      %v2557 = vsel %vm285, %v2508, 0
      %v2560 = vsel %vm285, %v2509, 0
      %v2563 = vsel %vm285, %v2510, 0
      %v2566 = vsel %vm285, %v2511, 0
      %v2569 = vsel %vm285, %v2512, 0
      %v2572 = vsel %vm285, %v2513, 0
      %v2575 = vsel %vm285, %v2514, 0
      %v2578 = vsel %vm285, %v2515, 0
      %v2581 = vsel %vm285, %v2516, 0
      %v2584 = vsel %vm285, %v2517, 0
      %v2587 = vsel %vm285, %v2518, 0
      %v2590 = vsel %vm285, %v2519, 0
      %v2593 = vsel %vm285, %v2520, 0
      %v2596 = vsel %vm285, %v2521, 0
      %v2599 = vsel %vm285, %v2522, 0
      %v2602 = vsel %vm285, %v2523, 0
      %v2605 = vsel %vm285, %v2524, 0
      %v2608 = vsel %vm285, %v2525, 0
      %v2611 = vsel %vm285, %v2526, 0
      %v2614 = vsel %vm285, %v2527, 0
      %v2617 = vsel %vm285, %v2528, 0
      %v2620 = vsel %vm285, %v2529, 0
      %v2623 = vsel %vm285, %v2530, 0
      %v2626 = vsel %vm285, %v2531, 0
      %v2629 = vsel %vm285, %v2532, 0
      %v2632 = vsel %vm382, %v2534, 0
      %2634 = vmatprep.subr.mxu0 0.0
      %2635 = vmatpush1.msra.mxu0 %v2632
      %2636 = vmatprep.subr.mxu0 0.0
      %2637 = vmatpush1.msra.mxu0 0.0
      %2638 = vmatprep.subr.mxu0 0.0
      %2639 = vmatpush1.msra.mxu0 0.0
      %2640 = vmatprep.subr.mxu0 0.0
      %2641 = vmatpush1.msra.mxu0 0.0
      %2642 = vmatprep.subr.mxu0 0.0
      %2643 = vmatpush1.msra.mxu0 0.0
      %2644 = vmatprep.subr.mxu0 0.0
      %2645 = vmatpush1.msra.mxu0 0.0
      %2646 = vmatprep.subr.mxu0 0.0
      %2647 = vmatpush1.msra.mxu0 0.0
      %2648 = vmatprep.subr.mxu0 0.0
      %2649 = vmatpush1.msra.mxu0 0.0
      %2650 = vmatprep.subr.mxu0 0.0
      %2651 = vmatpush1.msra.mxu0 0.0
      %2652 = vmatprep.subr.mxu0 0.0
      %2653 = vmatpush1.msra.mxu0 0.0
      %2654 = vmatprep.subr.mxu0 0.0
      %2655 = vmatpush1.msra.mxu0 0.0
      %2656 = vmatprep.subr.mxu0 0.0
      %2657 = vmatpush1.msra.mxu0 0.0
      %2658 = vmatprep.subr.mxu0 0.0
      %2659 = vmatpush1.msra.mxu0 0.0
      %2660 = vmatprep.subr.mxu0 0.0
      %2661 = vmatpush1.msra.mxu0 0.0
      %2662 = vmatprep.subr.mxu0 0.0
      %2663 = vmatpush1.msra.mxu0 0.0
      %2664 = vmatprep.subr.mxu0 0.0
      %2665 = vmatpush1.msra.mxu0 0.0
      %2666 = vmatprep.subr.mxu0 0.0
      %2667 = vmatpush1.msra.mxu0 0.0
      %2668 = vmatprep.subr.mxu0 0.0
      %2669 = vmatpush1.msra.mxu0 0.0
      %2670 = vmatprep.subr.mxu0 0.0
      %2671 = vmatpush1.msra.mxu0 0.0
      %2672 = vmatprep.subr.mxu0 0.0
      %2673 = vmatpush1.msra.mxu0 0.0
      %2674 = vmatprep.subr.mxu0 0.0
      %2675 = vmatpush1.msra.mxu0 0.0
      %2676 = vmatprep.subr.mxu0 0.0
      %2677 = vmatpush1.msra.mxu0 0.0
      %2678 = vmatprep.subr.mxu0 0.0
      %2679 = vmatpush1.msra.mxu0 0.0
      %2680 = vmatprep.subr.mxu0 0.0
      %2681 = vmatpush1.msra.mxu0 0.0
      %2682 = vmatprep.subr.mxu0 0.0
      %2683 = vmatpush1.msra.mxu0 0.0
      %2684 = vmatprep.subr.mxu0 0.0
      %2685 = vmatpush1.msra.mxu0 0.0
      %2686 = vmatprep.subr.mxu0 0.0
      %2687 = vmatpush1.msra.mxu0 0.0
      %2688 = vmatprep.subr.mxu0 0.0
      %2689 = vmatpush1.msra.mxu0 0.0
      %2690 = vmatprep.subr.mxu0 0.0
      %2691 = vmatpush1.msra.mxu0 0.0
      %2692 = vmatprep.subr.mxu0 0.0
      %2693 = vmatpush1.msra.mxu0 0.0
      %2694 = vmatprep.subr.mxu0 0.0
      %2695 = vmatpush1.msra.mxu0 0.0
      %2696 = vmatprep.subr.mxu0 0.0
      %2697 = vmatpush1.msra.mxu0 0.0
      %2698 = vmatprep.mubr.f32.mxu0 0.0
      %2699 = vmatmul.mubr.f32.gmra.mrb[0].mxu0 %v2536
      %v2700 = vpop.f32.mrb[0].mxu0
      %v2701 = vadd.f32 0.0, %v2700
      %v2702 = vpop.f32.mrb[0].mxu0
      %2703 = vmatprep.mubr.f32.mxu0 0.0
      %2704 = vmatmul.mubr.f32.gmra.mrb[0].mxu0 %v2539
      %v2705 = vpop.f32.mrb[0].mxu0
      %v2706 = vadd.f32 0.0, %v2705
      %v2707 = vpop.f32.mrb[0].mxu0
      %2708 = vmatprep.mubr.f32.mxu0 0.0
      %2709 = vmatmul.mubr.f32.gmra.mrb[0].mxu0 %v2542
      %v2710 = vpop.f32.mrb[0].mxu0
      %v2711 = vadd.f32 0.0, %v2710
      %v2712 = vpop.f32.mrb[0].mxu0
      %2713 = vmatprep.mubr.f32.mxu0 0.0
      %2714 = vmatmul.mubr.f32.gmra.mrb[0].mxu0 %v2545
      %v2715 = vpop.f32.mrb[0].mxu0
      %v2716 = vadd.f32 0.0, %v2715
      %v2717 = vpop.f32.mrb[0].mxu0
      %2718 = vmatprep.mubr.f32.mxu0 0.0
      %2719 = vmatmul.mubr.f32.gmra.mrb[0].mxu0 %v2548
      %v2720 = vpop.f32.mrb[0].mxu0
      %v2721 = vadd.f32 0.0, %v2720
      %v2722 = vpop.f32.mrb[0].mxu0
      %2723 = vmatprep.mubr.f32.mxu0 0.0
      %2724 = vmatmul.mubr.f32.gmra.mrb[0].mxu0 %v2551
      %v2725 = vpop.f32.mrb[0].mxu0
      %v2726 = vadd.f32 0.0, %v2725
      %v2727 = vpop.f32.mrb[0].mxu0
      %2728 = vmatprep.mubr.f32.mxu0 0.0
      %2729 = vmatmul.mubr.f32.gmra.mrb[0].mxu0 %v2554
      %v2730 = vpop.f32.mrb[0].mxu0
      %v2731 = vadd.f32 0.0, %v2730
      %v2732 = vpop.f32.mrb[0].mxu0
      %2733 = vmatprep.mubr.f32.mxu0 0.0
      %2734 = vmatmul.mubr.f32.gmra.mrb[0].mxu0 %v2557
      %v2735 = vpop.f32.mrb[0].mxu0
      %v2736 = vadd.f32 0.0, %v2735
      %v2737 = vpop.f32.mrb[0].mxu0
      %2738 = vmatprep.mubr.f32.mxu0 0.0
      %2739 = vmatmul.mubr.f32.gmra.mrb[0].mxu0 %v2560
      %v2740 = vpop.f32.mrb[0].mxu0
      %v2741 = vadd.f32 0.0, %v2740
      %v2742 = vpop.f32.mrb[0].mxu0
      %2743 = vmatprep.mubr.f32.mxu0 0.0
      %2744 = vmatmul.mubr.f32.gmra.mrb[0].mxu0 %v2563
      %v2745 = vpop.f32.mrb[0].mxu0
      %v2746 = vadd.f32 0.0, %v2745
      %v2747 = vpop.f32.mrb[0].mxu0
      %2748 = vmatprep.mubr.f32.mxu0 0.0
      %2749 = vmatmul.mubr.f32.gmra.mrb[0].mxu0 %v2566
      %v2750 = vpop.f32.mrb[0].mxu0
      %v2751 = vadd.f32 0.0, %v2750
      %v2752 = vpop.f32.mrb[0].mxu0
      %2753 = vmatprep.mubr.f32.mxu0 0.0
      %2754 = vmatmul.mubr.f32.gmra.mrb[0].mxu0 %v2569
      %v2755 = vpop.f32.mrb[0].mxu0
      %v2756 = vadd.f32 0.0, %v2755
      %v2757 = vpop.f32.mrb[0].mxu0
      %2758 = vmatprep.mubr.f32.mxu0 0.0
      %2759 = vmatmul.mubr.f32.gmra.mrb[0].mxu0 %v2572
      %v2760 = vpop.f32.mrb[0].mxu0
      %v2761 = vadd.f32 0.0, %v2760
      %v2762 = vpop.f32.mrb[0].mxu0
      %2763 = vmatprep.mubr.f32.mxu0 0.0
      %2764 = vmatmul.mubr.f32.gmra.mrb[0].mxu0 %v2575
      %v2765 = vpop.f32.mrb[0].mxu0
      %v2766 = vadd.f32 0.0, %v2765
      %v2767 = vpop.f32.mrb[0].mxu0
      %2768 = vmatprep.mubr.f32.mxu0 0.0
      %2769 = vmatmul.mubr.f32.gmra.mrb[0].mxu0 %v2578
      %v2770 = vpop.f32.mrb[0].mxu0
      %v2771 = vadd.f32 0.0, %v2770
      %v2772 = vpop.f32.mrb[0].mxu0
      %2773 = vmatprep.mubr.f32.mxu0 0.0
      %2774 = vmatmul.mubr.f32.gmra.mrb[0].mxu0 %v2581
      %v2775 = vpop.f32.mrb[0].mxu0
      %v2776 = vadd.f32 0.0, %v2775
      %v2777 = vpop.f32.mrb[0].mxu0
      %2778 = vmatprep.mubr.f32.mxu0 0.0
      %2779 = vmatmul.mubr.f32.gmra.mrb[0].mxu0 %v2584
      %v2780 = vpop.f32.mrb[0].mxu0
      %v2781 = vadd.f32 0.0, %v2780
      %v2782 = vpop.f32.mrb[0].mxu0
      %2783 = vmatprep.mubr.f32.mxu0 0.0
      %2784 = vmatmul.mubr.f32.gmra.mrb[0].mxu0 %v2587
      %v2785 = vpop.f32.mrb[0].mxu0
      %v2786 = vadd.f32 0.0, %v2785
      %v2787 = vpop.f32.mrb[0].mxu0
      %2788 = vmatprep.mubr.f32.mxu0 0.0
      %2789 = vmatmul.mubr.f32.gmra.mrb[0].mxu0 %v2590
      %v2790 = vpop.f32.mrb[0].mxu0
      %v2791 = vadd.f32 0.0, %v2790
      %v2792 = vpop.f32.mrb[0].mxu0
      %2793 = vmatprep.mubr.f32.mxu0 0.0
      %2794 = vmatmul.mubr.f32.gmra.mrb[0].mxu0 %v2593
      %v2795 = vpop.f32.mrb[0].mxu0
      %v2796 = vadd.f32 0.0, %v2795
      %v2797 = vpop.f32.mrb[0].mxu0
      %2798 = vmatprep.mubr.f32.mxu0 0.0
      %2799 = vmatmul.mubr.f32.gmra.mrb[0].mxu0 %v2596
      %v2800 = vpop.f32.mrb[0].mxu0
      %v2801 = vadd.f32 0.0, %v2800
      %v2802 = vpop.f32.mrb[0].mxu0
      %2803 = vmatprep.mubr.f32.mxu0 0.0
      %2804 = vmatmul.mubr.f32.gmra.mrb[0].mxu0 %v2599
      %v2805 = vpop.f32.mrb[0].mxu0
      %v2806 = vadd.f32 0.0, %v2805
      %v2807 = vpop.f32.mrb[0].mxu0
      %2808 = vmatprep.mubr.f32.mxu0 0.0
      %2809 = vmatmul.mubr.f32.gmra.mrb[0].mxu0 %v2602
      %v2810 = vpop.f32.mrb[0].mxu0
      %v2811 = vadd.f32 0.0, %v2810
      %v2812 = vpop.f32.mrb[0].mxu0
      %2813 = vmatprep.mubr.f32.mxu0 0.0
      %2814 = vmatmul.mubr.f32.gmra.mrb[0].mxu0 %v2605
      %v2815 = vpop.f32.mrb[0].mxu0
      %v2816 = vadd.f32 0.0, %v2815
      %v2817 = vpop.f32.mrb[0].mxu0
      %2818 = vmatprep.mubr.f32.mxu0 0.0
      %2819 = vmatmul.mubr.f32.gmra.mrb[0].mxu0 %v2608
      %v2820 = vpop.f32.mrb[0].mxu0
      %v2821 = vadd.f32 0.0, %v2820
      %v2822 = vpop.f32.mrb[0].mxu0
      %2823 = vmatprep.mubr.f32.mxu0 0.0
      %2824 = vmatmul.mubr.f32.gmra.mrb[0].mxu0 %v2611
      %v2825 = vpop.f32.mrb[0].mxu0
      %v2826 = vadd.f32 0.0, %v2825
      %v2827 = vpop.f32.mrb[0].mxu0
      %2828 = vmatprep.mubr.f32.mxu0 0.0
      %2829 = vmatmul.mubr.f32.gmra.mrb[0].mxu0 %v2614
      %v2830 = vpop.f32.mrb[0].mxu0
      %v2831 = vadd.f32 0.0, %v2830
      %v2832 = vpop.f32.mrb[0].mxu0
      %2833 = vmatprep.mubr.f32.mxu0 0.0
      %2834 = vmatmul.mubr.f32.gmra.mrb[0].mxu0 %v2617
      %v2835 = vpop.f32.mrb[0].mxu0
      %v2836 = vadd.f32 0.0, %v2835
      %v2837 = vpop.f32.mrb[0].mxu0
      %2838 = vmatprep.mubr.f32.mxu0 0.0
      %2839 = vmatmul.mubr.f32.gmra.mrb[0].mxu0 %v2620
      %v2840 = vpop.f32.mrb[0].mxu0
      %v2841 = vadd.f32 0.0, %v2840
      %v2842 = vpop.f32.mrb[0].mxu0
      %2843 = vmatprep.mubr.f32.mxu0 0.0
      %2844 = vmatmul.mubr.f32.gmra.mrb[0].mxu0 %v2623
      %v2845 = vpop.f32.mrb[0].mxu0
      %v2846 = vadd.f32 0.0, %v2845
      %v2847 = vpop.f32.mrb[0].mxu0
      %2848 = vmatprep.mubr.f32.mxu0 0.0
      %2849 = vmatmul.mubr.f32.gmra.mrb[0].mxu0 %v2626
      %v2850 = vpop.f32.mrb[0].mxu0
      %v2851 = vadd.f32 0.0, %v2850
      %v2852 = vpop.f32.mrb[0].mxu0
      %2853 = vmatprep.mubr.f32.mxu0 0.0
      %2854 = vmatmul.mubr.f32.gmra.mrb[0].mxu0 %v2629
      %v2855 = vpop.f32.mrb[0].mxu0
      %v2856 = vadd.f32 0.0, %v2855
      %v2857 = vpop.f32.mrb[0].mxu0
      %2858 = vdwg.mxu0
      %v2859 = vadd.f32 %v2466, %v2701
      %v2860 = vadd.f32 %v2467, %v2706
      %v2861 = vadd.f32 %v2468, %v2711
      %v2862 = vadd.f32 %v2469, %v2716
      %v2863 = vadd.f32 %v2470, %v2721
      %v2864 = vadd.f32 %v2471, %v2726
      %v2865 = vadd.f32 %v2472, %v2731
      %v2866 = vadd.f32 %v2473, %v2736
      %v2867 = vadd.f32 %v2474, %v2741
      %v2868 = vadd.f32 %v2475, %v2746
      %v2869 = vadd.f32 %v2476, %v2751
      %v2870 = vadd.f32 %v2477, %v2756
      %v2871 = vadd.f32 %v2478, %v2761
      %v2872 = vadd.f32 %v2479, %v2766
      %v2873 = vadd.f32 %v2480, %v2771
      %v2874 = vadd.f32 %v2481, %v2776
      %v2875 = vadd.f32 %v2482, %v2781
      %v2876 = vadd.f32 %v2483, %v2786
      %v2877 = vadd.f32 %v2484, %v2791
      %v2878 = vadd.f32 %v2485, %v2796
      %v2879 = vadd.f32 %v2486, %v2801
      %v2880 = vadd.f32 %v2487, %v2806
      %v2881 = vadd.f32 %v2488, %v2811
      %v2882 = vadd.f32 %v2489, %v2816
      %v2883 = vadd.f32 %v2490, %v2821
      %v2884 = vadd.f32 %v2491, %v2826
      %v2885 = vadd.f32 %v2492, %v2831
      %v2886 = vadd.f32 %v2493, %v2836
      %v2887 = vadd.f32 %v2494, %v2841
      %v2888 = vadd.f32 %v2495, %v2846
      %v2889 = vadd.f32 %v2496, %v2851
      %v2890 = vadd.f32 %v2497, %v2856
      %v2891 = vld [vmem:[%s2500 + $0x1] sm:$0xff]
      %v2892 = vld [vmem:[%s2500 + $0x9] sm:$0xff]
      %v2893 = vld [vmem:[%s2500 + $0x19] sm:$0xff]
      %v2894 = vld [vmem:[%s2500 + $0x21] sm:$0xff]
      %v2895 = vld [vmem:[%s2500 + $0x31] sm:$0xff]
      %v2896 = vld [vmem:[%s2500 + $0x39] sm:$0xff]
      %v2897 = vld [vmem:[%s2500 + $0x49] sm:$0xff]
      %v2898 = vld [vmem:[%s2500 + $0x51] sm:$0xff]
      %v2899 = vld [vmem:[%s2500 + $0x61] sm:$0xff]
      %v2900 = vld [vmem:[%s2500 + $0x69] sm:$0xff]
      %v2901 = vld [vmem:[%s2500 + $0x79] sm:$0xff]
      %v2902 = vld [vmem:[%s2500 + $0x81] sm:$0xff]
      %v2903 = vld [vmem:[%s2500 + $0x91] sm:$0xff]
      %v2904 = vld [vmem:[%s2500 + $0x99] sm:$0xff]
      %v2905 = vld [vmem:[%s2500 + $0xa9] sm:$0xff]
      %v2906 = vld [vmem:[%s2500 + $0xb1] sm:$0xff]
      %v2907 = vld [vmem:[%s2500 + $0xc1] sm:$0xff]
      %v2908 = vld [vmem:[%s2500 + $0xc9] sm:$0xff]
      %v2909 = vld [vmem:[%s2500 + $0xd9] sm:$0xff]
      %v2910 = vld [vmem:[%s2500 + $0xe1] sm:$0xff]
      %v2911 = vld [vmem:[%s2500 + $0xf1] sm:$0xff]
      %v2912 = vld [vmem:[%s2500 + $0xf9] sm:$0xff]
      %v2913 = vld [vmem:[%s2500 + $0x109] sm:$0xff]
      %v2914 = vld [vmem:[%s2500 + $0x111] sm:$0xff]
      %v2915 = vld [vmem:[%s2500 + $0x121] sm:$0xff]
      %v2916 = vld [vmem:[%s2500 + $0x129] sm:$0xff]
      %v2917 = vld [vmem:[%s2500 + $0x139] sm:$0xff]
      %v2918 = vld [vmem:[%s2500 + $0x141] sm:$0xff]
      %v2919 = vld [vmem:[%s2500 + $0x151] sm:$0xff]
      %v2920 = vld [vmem:[%s2500 + $0x159] sm:$0xff]
      %v2921 = vld [vmem:[%s2500 + $0x169] sm:$0xff]
      %v2922 = vld [vmem:[%s2500 + $0x171] sm:$0xff]
      %s2923 = scalar_lea.vmem %s1, 28
      %v2924 = vld [vmem:[%s2923] sm:$0xf]
      %v2926 = vsel %vm285, %v2891, 0
      %v2929 = vsel %vm285, %v2892, 0
      %v2932 = vsel %vm285, %v2893, 0
      %v2935 = vsel %vm285, %v2894, 0
      %v2938 = vsel %vm285, %v2895, 0
      %v2941 = vsel %vm285, %v2896, 0
      %v2944 = vsel %vm285, %v2897, 0
      %v2947 = vsel %vm285, %v2898, 0
      %v2950 = vsel %vm285, %v2899, 0
      %v2953 = vsel %vm285, %v2900, 0
      %v2956 = vsel %vm285, %v2901, 0
      %v2959 = vsel %vm285, %v2902, 0
      %v2962 = vsel %vm285, %v2903, 0
      %v2965 = vsel %vm285, %v2904, 0
      %v2968 = vsel %vm285, %v2905, 0
      %v2971 = vsel %vm285, %v2906, 0
      %v2974 = vsel %vm285, %v2907, 0
      %v2977 = vsel %vm285, %v2908, 0
      %v2980 = vsel %vm285, %v2909, 0
      %v2983 = vsel %vm285, %v2910, 0
      %v2986 = vsel %vm285, %v2911, 0
      %v2989 = vsel %vm285, %v2912, 0
      %v2992 = vsel %vm285, %v2913, 0
      %v2995 = vsel %vm285, %v2914, 0
      %v2998 = vsel %vm285, %v2915, 0
      %v3001 = vsel %vm285, %v2916, 0
      %v3004 = vsel %vm285, %v2917, 0
      %v3007 = vsel %vm285, %v2918, 0
      %v3010 = vsel %vm285, %v2919, 0
      %v3013 = vsel %vm285, %v2920, 0
      %v3016 = vsel %vm285, %v2921, 0
      %v3019 = vsel %vm285, %v2922, 0
      %v3022 = vsel %vm382, %v2924, 0
      %3024 = vmatprep.subr.mxu0 0.0
      %3025 = vmatpush1.msra.mxu0 %v3022
      %3026 = vmatprep.subr.mxu0 0.0
      %3027 = vmatpush1.msra.mxu0 0.0
      %3028 = vmatprep.subr.mxu0 0.0
      %3029 = vmatpush1.msra.mxu0 0.0
      %3030 = vmatprep.subr.mxu0 0.0
      %3031 = vmatpush1.msra.mxu0 0.0
      %3032 = vmatprep.subr.mxu0 0.0
      %3033 = vmatpush1.msra.mxu0 0.0
      %3034 = vmatprep.subr.mxu0 0.0
      %3035 = vmatpush1.msra.mxu0 0.0
      %3036 = vmatprep.subr.mxu0 0.0
      %3037 = vmatpush1.msra.mxu0 0.0
      %3038 = vmatprep.subr.mxu0 0.0
      %3039 = vmatpush1.msra.mxu0 0.0
      %3040 = vmatprep.subr.mxu0 0.0
      %3041 = vmatpush1.msra.mxu0 0.0
      %3042 = vmatprep.subr.mxu0 0.0
      %3043 = vmatpush1.msra.mxu0 0.0
      %3044 = vmatprep.subr.mxu0 0.0
      %3045 = vmatpush1.msra.mxu0 0.0
      %3046 = vmatprep.subr.mxu0 0.0
      %3047 = vmatpush1.msra.mxu0 0.0
      %3048 = vmatprep.subr.mxu0 0.0
      %3049 = vmatpush1.msra.mxu0 0.0
      %3050 = vmatprep.subr.mxu0 0.0
      %3051 = vmatpush1.msra.mxu0 0.0
      %3052 = vmatprep.subr.mxu0 0.0
      %3053 = vmatpush1.msra.mxu0 0.0
      %3054 = vmatprep.subr.mxu0 0.0
      %3055 = vmatpush1.msra.mxu0 0.0
      %3056 = vmatprep.subr.mxu0 0.0
      %3057 = vmatpush1.msra.mxu0 0.0
      %3058 = vmatprep.subr.mxu0 0.0
      %3059 = vmatpush1.msra.mxu0 0.0
      %3060 = vmatprep.subr.mxu0 0.0
      %3061 = vmatpush1.msra.mxu0 0.0
      %3062 = vmatprep.subr.mxu0 0.0
      %3063 = vmatpush1.msra.mxu0 0.0
      %3064 = vmatprep.subr.mxu0 0.0
      %3065 = vmatpush1.msra.mxu0 0.0
      %3066 = vmatprep.subr.mxu0 0.0
      %3067 = vmatpush1.msra.mxu0 0.0
      %3068 = vmatprep.subr.mxu0 0.0
      %3069 = vmatpush1.msra.mxu0 0.0
      %3070 = vmatprep.subr.mxu0 0.0
      %3071 = vmatpush1.msra.mxu0 0.0
      %3072 = vmatprep.subr.mxu0 0.0
      %3073 = vmatpush1.msra.mxu0 0.0
      %3074 = vmatprep.subr.mxu0 0.0
      %3075 = vmatpush1.msra.mxu0 0.0
      %3076 = vmatprep.subr.mxu0 0.0
      %3077 = vmatpush1.msra.mxu0 0.0
      %3078 = vmatprep.subr.mxu0 0.0
      %3079 = vmatpush1.msra.mxu0 0.0
      %3080 = vmatprep.subr.mxu0 0.0
      %3081 = vmatpush1.msra.mxu0 0.0
      %3082 = vmatprep.subr.mxu0 0.0
      %3083 = vmatpush1.msra.mxu0 0.0
      %3084 = vmatprep.subr.mxu0 0.0
      %3085 = vmatpush1.msra.mxu0 0.0
      %3086 = vmatprep.subr.mxu0 0.0
      %3087 = vmatpush1.msra.mxu0 0.0
      %3088 = vmatprep.mubr.f32.mxu0 0.0
      %3089 = vmatmul.mubr.f32.gmra.mrb[0].mxu0 %v2926
      %v3090 = vpop.f32.mrb[0].mxu0
      %v3091 = vadd.f32 0.0, %v3090
      %v3092 = vpop.f32.mrb[0].mxu0
      %3093 = vmatprep.mubr.f32.mxu0 0.0
      %3094 = vmatmul.mubr.f32.gmra.mrb[0].mxu0 %v2929
      %v3095 = vpop.f32.mrb[0].mxu0
      %v3096 = vadd.f32 0.0, %v3095
      %v3097 = vpop.f32.mrb[0].mxu0
      %3098 = vmatprep.mubr.f32.mxu0 0.0
      %3099 = vmatmul.mubr.f32.gmra.mrb[0].mxu0 %v2932
      %v3100 = vpop.f32.mrb[0].mxu0
      %v3101 = vadd.f32 0.0, %v3100
      %v3102 = vpop.f32.mrb[0].mxu0
      %3103 = vmatprep.mubr.f32.mxu0 0.0
      %3104 = vmatmul.mubr.f32.gmra.mrb[0].mxu0 %v2935
      %v3105 = vpop.f32.mrb[0].mxu0
      %v3106 = vadd.f32 0.0, %v3105
      %v3107 = vpop.f32.mrb[0].mxu0
      %3108 = vmatprep.mubr.f32.mxu0 0.0
      %3109 = vmatmul.mubr.f32.gmra.mrb[0].mxu0 %v2938
      %v3110 = vpop.f32.mrb[0].mxu0
      %v3111 = vadd.f32 0.0, %v3110
      %v3112 = vpop.f32.mrb[0].mxu0
      %3113 = vmatprep.mubr.f32.mxu0 0.0
      %3114 = vmatmul.mubr.f32.gmra.mrb[0].mxu0 %v2941
      %v3115 = vpop.f32.mrb[0].mxu0
      %v3116 = vadd.f32 0.0, %v3115
      %v3117 = vpop.f32.mrb[0].mxu0
      %3118 = vmatprep.mubr.f32.mxu0 0.0
      %3119 = vmatmul.mubr.f32.gmra.mrb[0].mxu0 %v2944
      %v3120 = vpop.f32.mrb[0].mxu0
      %v3121 = vadd.f32 0.0, %v3120
      %v3122 = vpop.f32.mrb[0].mxu0
      %3123 = vmatprep.mubr.f32.mxu0 0.0
      %3124 = vmatmul.mubr.f32.gmra.mrb[0].mxu0 %v2947
      %v3125 = vpop.f32.mrb[0].mxu0
      %v3126 = vadd.f32 0.0, %v3125
      %v3127 = vpop.f32.mrb[0].mxu0
      %3128 = vmatprep.mubr.f32.mxu0 0.0
      %3129 = vmatmul.mubr.f32.gmra.mrb[0].mxu0 %v2950
      %v3130 = vpop.f32.mrb[0].mxu0
      %v3131 = vadd.f32 0.0, %v3130
      %v3132 = vpop.f32.mrb[0].mxu0
      %3133 = vmatprep.mubr.f32.mxu0 0.0
      %3134 = vmatmul.mubr.f32.gmra.mrb[0].mxu0 %v2953
      %v3135 = vpop.f32.mrb[0].mxu0
      %v3136 = vadd.f32 0.0, %v3135
      %v3137 = vpop.f32.mrb[0].mxu0
      %3138 = vmatprep.mubr.f32.mxu0 0.0
      %3139 = vmatmul.mubr.f32.gmra.mrb[0].mxu0 %v2956
      %v3140 = vpop.f32.mrb[0].mxu0
      %v3141 = vadd.f32 0.0, %v3140
      %v3142 = vpop.f32.mrb[0].mxu0
      %3143 = vmatprep.mubr.f32.mxu0 0.0
      %3144 = vmatmul.mubr.f32.gmra.mrb[0].mxu0 %v2959
      %v3145 = vpop.f32.mrb[0].mxu0
      %v3146 = vadd.f32 0.0, %v3145
      %v3147 = vpop.f32.mrb[0].mxu0
      %3148 = vmatprep.mubr.f32.mxu0 0.0
      %3149 = vmatmul.mubr.f32.gmra.mrb[0].mxu0 %v2962
      %v3150 = vpop.f32.mrb[0].mxu0
      %v3151 = vadd.f32 0.0, %v3150
      %v3152 = vpop.f32.mrb[0].mxu0
      %3153 = vmatprep.mubr.f32.mxu0 0.0
      %3154 = vmatmul.mubr.f32.gmra.mrb[0].mxu0 %v2965
      %v3155 = vpop.f32.mrb[0].mxu0
      %v3156 = vadd.f32 0.0, %v3155
      %v3157 = vpop.f32.mrb[0].mxu0
      %3158 = vmatprep.mubr.f32.mxu0 0.0
      %3159 = vmatmul.mubr.f32.gmra.mrb[0].mxu0 %v2968
      %v3160 = vpop.f32.mrb[0].mxu0
      %v3161 = vadd.f32 0.0, %v3160
      %v3162 = vpop.f32.mrb[0].mxu0
      %3163 = vmatprep.mubr.f32.mxu0 0.0
      %3164 = vmatmul.mubr.f32.gmra.mrb[0].mxu0 %v2971
      %v3165 = vpop.f32.mrb[0].mxu0
      %v3166 = vadd.f32 0.0, %v3165
      %v3167 = vpop.f32.mrb[0].mxu0
      %3168 = vmatprep.mubr.f32.mxu0 0.0
      %3169 = vmatmul.mubr.f32.gmra.mrb[0].mxu0 %v2974
      %v3170 = vpop.f32.mrb[0].mxu0
      %v3171 = vadd.f32 0.0, %v3170
      %v3172 = vpop.f32.mrb[0].mxu0
      %3173 = vmatprep.mubr.f32.mxu0 0.0
      %3174 = vmatmul.mubr.f32.gmra.mrb[0].mxu0 %v2977
      %v3175 = vpop.f32.mrb[0].mxu0
      %v3176 = vadd.f32 0.0, %v3175
      %v3177 = vpop.f32.mrb[0].mxu0
      %3178 = vmatprep.mubr.f32.mxu0 0.0
      %3179 = vmatmul.mubr.f32.gmra.mrb[0].mxu0 %v2980
      %v3180 = vpop.f32.mrb[0].mxu0
      %v3181 = vadd.f32 0.0, %v3180
      %v3182 = vpop.f32.mrb[0].mxu0
      %3183 = vmatprep.mubr.f32.mxu0 0.0
      %3184 = vmatmul.mubr.f32.gmra.mrb[0].mxu0 %v2983
      %v3185 = vpop.f32.mrb[0].mxu0
      %v3186 = vadd.f32 0.0, %v3185
      %v3187 = vpop.f32.mrb[0].mxu0
      %3188 = vmatprep.mubr.f32.mxu0 0.0
      %3189 = vmatmul.mubr.f32.gmra.mrb[0].mxu0 %v2986
      %v3190 = vpop.f32.mrb[0].mxu0
      %v3191 = vadd.f32 0.0, %v3190
      %v3192 = vpop.f32.mrb[0].mxu0
      %3193 = vmatprep.mubr.f32.mxu0 0.0
      %3194 = vmatmul.mubr.f32.gmra.mrb[0].mxu0 %v2989
      %v3195 = vpop.f32.mrb[0].mxu0
      %v3196 = vadd.f32 0.0, %v3195
      %v3197 = vpop.f32.mrb[0].mxu0
      %3198 = vmatprep.mubr.f32.mxu0 0.0
      %3199 = vmatmul.mubr.f32.gmra.mrb[0].mxu0 %v2992
      %v3200 = vpop.f32.mrb[0].mxu0
      %v3201 = vadd.f32 0.0, %v3200
      %v3202 = vpop.f32.mrb[0].mxu0
      %3203 = vmatprep.mubr.f32.mxu0 0.0
      %3204 = vmatmul.mubr.f32.gmra.mrb[0].mxu0 %v2995
      %v3205 = vpop.f32.mrb[0].mxu0
      %v3206 = vadd.f32 0.0, %v3205
      %v3207 = vpop.f32.mrb[0].mxu0
      %3208 = vmatprep.mubr.f32.mxu0 0.0
      %3209 = vmatmul.mubr.f32.gmra.mrb[0].mxu0 %v2998
      %v3210 = vpop.f32.mrb[0].mxu0
      %v3211 = vadd.f32 0.0, %v3210
      %v3212 = vpop.f32.mrb[0].mxu0
      %3213 = vmatprep.mubr.f32.mxu0 0.0
      %3214 = vmatmul.mubr.f32.gmra.mrb[0].mxu0 %v3001
      %v3215 = vpop.f32.mrb[0].mxu0
      %v3216 = vadd.f32 0.0, %v3215
      %v3217 = vpop.f32.mrb[0].mxu0
      %3218 = vmatprep.mubr.f32.mxu0 0.0
      %3219 = vmatmul.mubr.f32.gmra.mrb[0].mxu0 %v3004
      %v3220 = vpop.f32.mrb[0].mxu0
      %v3221 = vadd.f32 0.0, %v3220
      %v3222 = vpop.f32.mrb[0].mxu0
      %3223 = vmatprep.mubr.f32.mxu0 0.0
      %3224 = vmatmul.mubr.f32.gmra.mrb[0].mxu0 %v3007
      %v3225 = vpop.f32.mrb[0].mxu0
      %v3226 = vadd.f32 0.0, %v3225
      %v3227 = vpop.f32.mrb[0].mxu0
      %3228 = vmatprep.mubr.f32.mxu0 0.0
      %3229 = vmatmul.mubr.f32.gmra.mrb[0].mxu0 %v3010
      %v3230 = vpop.f32.mrb[0].mxu0
      %v3231 = vadd.f32 0.0, %v3230
      %v3232 = vpop.f32.mrb[0].mxu0
      %3233 = vmatprep.mubr.f32.mxu0 0.0
      %3234 = vmatmul.mubr.f32.gmra.mrb[0].mxu0 %v3013
      %v3235 = vpop.f32.mrb[0].mxu0
      %v3236 = vadd.f32 0.0, %v3235
      %v3237 = vpop.f32.mrb[0].mxu0
      %3238 = vmatprep.mubr.f32.mxu0 0.0
      %3239 = vmatmul.mubr.f32.gmra.mrb[0].mxu0 %v3016
      %v3240 = vpop.f32.mrb[0].mxu0
      %v3241 = vadd.f32 0.0, %v3240
      %v3242 = vpop.f32.mrb[0].mxu0
      %3243 = vmatprep.mubr.f32.mxu0 0.0
      %3244 = vmatmul.mubr.f32.gmra.mrb[0].mxu0 %v3019
      %v3245 = vpop.f32.mrb[0].mxu0
      %v3246 = vadd.f32 0.0, %v3245
      %v3247 = vpop.f32.mrb[0].mxu0
      %3248 = vdwg.mxu0
      %v3249 = vadd.f32 %v2859, %v3091
      %v3250 = vadd.f32 %v2860, %v3096
      %v3251 = vadd.f32 %v2861, %v3101
      %v3252 = vadd.f32 %v2862, %v3106
      %v3253 = vadd.f32 %v2863, %v3111
      %v3254 = vadd.f32 %v2864, %v3116
      %v3255 = vadd.f32 %v2865, %v3121
      %v3256 = vadd.f32 %v2866, %v3126
      %v3257 = vadd.f32 %v2867, %v3131
      %v3258 = vadd.f32 %v2868, %v3136
      %v3259 = vadd.f32 %v2869, %v3141
      %v3260 = vadd.f32 %v2870, %v3146
      %v3261 = vadd.f32 %v2871, %v3151
      %v3262 = vadd.f32 %v2872, %v3156
      %v3263 = vadd.f32 %v2873, %v3161
      %v3264 = vadd.f32 %v2874, %v3166
      %v3265 = vadd.f32 %v2875, %v3171
      %v3266 = vadd.f32 %v2876, %v3176
      %v3267 = vadd.f32 %v2877, %v3181
      %v3268 = vadd.f32 %v2878, %v3186
      %v3269 = vadd.f32 %v2879, %v3191
      %v3270 = vadd.f32 %v2880, %v3196
      %v3271 = vadd.f32 %v2881, %v3201
      %v3272 = vadd.f32 %v2882, %v3206
      %v3273 = vadd.f32 %v2883, %v3211
      %v3274 = vadd.f32 %v2884, %v3216
      %v3275 = vadd.f32 %v2885, %v3221
      %v3276 = vadd.f32 %v2886, %v3226
      %v3277 = vadd.f32 %v2887, %v3231
      %v3278 = vadd.f32 %v2888, %v3236
      %v3279 = vadd.f32 %v2889, %v3241
      %v3280 = vadd.f32 %v2890, %v3246
      %v3281 = vld [vmem:[%s2500 + $0x2] sm:$0xff]
      %v3282 = vld [vmem:[%s2500 + $0xa] sm:$0xff]
      %v3283 = vld [vmem:[%s2500 + $0x1a] sm:$0xff]
      %v3284 = vld [vmem:[%s2500 + $0x22] sm:$0xff]
      %v3285 = vld [vmem:[%s2500 + $0x32] sm:$0xff]
      %v3286 = vld [vmem:[%s2500 + $0x3a] sm:$0xff]
      %v3287 = vld [vmem:[%s2500 + $0x4a] sm:$0xff]
      %v3288 = vld [vmem:[%s2500 + $0x52] sm:$0xff]
      %v3289 = vld [vmem:[%s2500 + $0x62] sm:$0xff]
      %v3290 = vld [vmem:[%s2500 + $0x6a] sm:$0xff]
      %v3291 = vld [vmem:[%s2500 + $0x7a] sm:$0xff]
      %v3292 = vld [vmem:[%s2500 + $0x82] sm:$0xff]
      %v3293 = vld [vmem:[%s2500 + $0x92] sm:$0xff]
      %v3294 = vld [vmem:[%s2500 + $0x9a] sm:$0xff]
      %v3295 = vld [vmem:[%s2500 + $0xaa] sm:$0xff]
      %v3296 = vld [vmem:[%s2500 + $0xb2] sm:$0xff]
      %v3297 = vld [vmem:[%s2500 + $0xc2] sm:$0xff]
      %v3298 = vld [vmem:[%s2500 + $0xca] sm:$0xff]
      %v3299 = vld [vmem:[%s2500 + $0xda] sm:$0xff]
      %v3300 = vld [vmem:[%s2500 + $0xe2] sm:$0xff]
      %v3301 = vld [vmem:[%s2500 + $0xf2] sm:$0xff]
      %v3302 = vld [vmem:[%s2500 + $0xfa] sm:$0xff]
      %v3303 = vld [vmem:[%s2500 + $0x10a] sm:$0xff]
      %v3304 = vld [vmem:[%s2500 + $0x112] sm:$0xff]
      %v3305 = vld [vmem:[%s2500 + $0x122] sm:$0xff]
      %v3306 = vld [vmem:[%s2500 + $0x12a] sm:$0xff]
      %v3307 = vld [vmem:[%s2500 + $0x13a] sm:$0xff]
      %v3308 = vld [vmem:[%s2500 + $0x142] sm:$0xff]
      %v3309 = vld [vmem:[%s2500 + $0x152] sm:$0xff]
      %v3310 = vld [vmem:[%s2500 + $0x15a] sm:$0xff]
      %v3311 = vld [vmem:[%s2500 + $0x16a] sm:$0xff]
      %v3312 = vld [vmem:[%s2500 + $0x172] sm:$0xff]
      %s3313 = scalar_lea.vmem %s1, 32
      %v3314 = vld [vmem:[%s3313] sm:$0xf]
      %v3316 = vsel %vm285, %v3281, 0
      %v3319 = vsel %vm285, %v3282, 0
      %v3322 = vsel %vm285, %v3283, 0
      %v3325 = vsel %vm285, %v3284, 0
      %v3328 = vsel %vm285, %v3285, 0
      %v3331 = vsel %vm285, %v3286, 0
      %v3334 = vsel %vm285, %v3287, 0
      %v3337 = vsel %vm285, %v3288, 0
      %v3340 = vsel %vm285, %v3289, 0
      %v3343 = vsel %vm285, %v3290, 0
      %v3346 = vsel %vm285, %v3291, 0
      %v3349 = vsel %vm285, %v3292, 0
      %v3352 = vsel %vm285, %v3293, 0
      %v3355 = vsel %vm285, %v3294, 0
      %v3358 = vsel %vm285, %v3295, 0
      %v3361 = vsel %vm285, %v3296, 0
      %v3364 = vsel %vm285, %v3297, 0
      %v3367 = vsel %vm285, %v3298, 0
      %v3370 = vsel %vm285, %v3299, 0
      %v3373 = vsel %vm285, %v3300, 0
      %v3376 = vsel %vm285, %v3301, 0
      %v3379 = vsel %vm285, %v3302, 0
      %v3382 = vsel %vm285, %v3303, 0
      %v3385 = vsel %vm285, %v3304, 0
      %v3388 = vsel %vm285, %v3305, 0
      %v3391 = vsel %vm285, %v3306, 0
      %v3394 = vsel %vm285, %v3307, 0
      %v3397 = vsel %vm285, %v3308, 0
      %v3400 = vsel %vm285, %v3309, 0
      %v3403 = vsel %vm285, %v3310, 0
      %v3406 = vsel %vm285, %v3311, 0
      %v3409 = vsel %vm285, %v3312, 0
      %v3412 = vsel %vm382, %v3314, 0
      %3414 = vmatprep.subr.mxu0 0.0
      %3415 = vmatpush1.msra.mxu0 %v3412
      %3416 = vmatprep.subr.mxu0 0.0
      %3417 = vmatpush1.msra.mxu0 0.0
      %3418 = vmatprep.subr.mxu0 0.0
      %3419 = vmatpush1.msra.mxu0 0.0
      %3420 = vmatprep.subr.mxu0 0.0
      %3421 = vmatpush1.msra.mxu0 0.0
      %3422 = vmatprep.subr.mxu0 0.0
      %3423 = vmatpush1.msra.mxu0 0.0
      %3424 = vmatprep.subr.mxu0 0.0
      %3425 = vmatpush1.msra.mxu0 0.0
      %3426 = vmatprep.subr.mxu0 0.0
      %3427 = vmatpush1.msra.mxu0 0.0
      %3428 = vmatprep.subr.mxu0 0.0
      %3429 = vmatpush1.msra.mxu0 0.0
      %3430 = vmatprep.subr.mxu0 0.0
      %3431 = vmatpush1.msra.mxu0 0.0
      %3432 = vmatprep.subr.mxu0 0.0
      %3433 = vmatpush1.msra.mxu0 0.0
      %3434 = vmatprep.subr.mxu0 0.0
      %3435 = vmatpush1.msra.mxu0 0.0
      %3436 = vmatprep.subr.mxu0 0.0
      %3437 = vmatpush1.msra.mxu0 0.0
      %3438 = vmatprep.subr.mxu0 0.0
      %3439 = vmatpush1.msra.mxu0 0.0
      %3440 = vmatprep.subr.mxu0 0.0
      %3441 = vmatpush1.msra.mxu0 0.0
      %3442 = vmatprep.subr.mxu0 0.0
      %3443 = vmatpush1.msra.mxu0 0.0
      %3444 = vmatprep.subr.mxu0 0.0
      %3445 = vmatpush1.msra.mxu0 0.0
      %3446 = vmatprep.subr.mxu0 0.0
      %3447 = vmatpush1.msra.mxu0 0.0
      %3448 = vmatprep.subr.mxu0 0.0
      %3449 = vmatpush1.msra.mxu0 0.0
      %3450 = vmatprep.subr.mxu0 0.0
      %3451 = vmatpush1.msra.mxu0 0.0
      %3452 = vmatprep.subr.mxu0 0.0
      %3453 = vmatpush1.msra.mxu0 0.0
      %3454 = vmatprep.subr.mxu0 0.0
      %3455 = vmatpush1.msra.mxu0 0.0
      %3456 = vmatprep.subr.mxu0 0.0
      %3457 = vmatpush1.msra.mxu0 0.0
      %3458 = vmatprep.subr.mxu0 0.0
      %3459 = vmatpush1.msra.mxu0 0.0
      %3460 = vmatprep.subr.mxu0 0.0
      %3461 = vmatpush1.msra.mxu0 0.0
      %3462 = vmatprep.subr.mxu0 0.0
      %3463 = vmatpush1.msra.mxu0 0.0
      %3464 = vmatprep.subr.mxu0 0.0
      %3465 = vmatpush1.msra.mxu0 0.0
      %3466 = vmatprep.subr.mxu0 0.0
      %3467 = vmatpush1.msra.mxu0 0.0
      %3468 = vmatprep.subr.mxu0 0.0
      %3469 = vmatpush1.msra.mxu0 0.0
      %3470 = vmatprep.subr.mxu0 0.0
      %3471 = vmatpush1.msra.mxu0 0.0
      %3472 = vmatprep.subr.mxu0 0.0
      %3473 = vmatpush1.msra.mxu0 0.0
      %3474 = vmatprep.subr.mxu0 0.0
      %3475 = vmatpush1.msra.mxu0 0.0
      %3476 = vmatprep.subr.mxu0 0.0
      %3477 = vmatpush1.msra.mxu0 0.0
      %3478 = vmatprep.mubr.f32.mxu0 0.0
      %3479 = vmatmul.mubr.f32.gmra.mrb[0].mxu0 %v3316
      %v3480 = vpop.f32.mrb[0].mxu0
      %v3481 = vadd.f32 0.0, %v3480
      %v3482 = vpop.f32.mrb[0].mxu0
      %3483 = vmatprep.mubr.f32.mxu0 0.0
      %3484 = vmatmul.mubr.f32.gmra.mrb[0].mxu0 %v3319
      %v3485 = vpop.f32.mrb[0].mxu0
      %v3486 = vadd.f32 0.0, %v3485
      %v3487 = vpop.f32.mrb[0].mxu0
      %3488 = vmatprep.mubr.f32.mxu0 0.0
      %3489 = vmatmul.mubr.f32.gmra.mrb[0].mxu0 %v3322
      %v3490 = vpop.f32.mrb[0].mxu0
      %v3491 = vadd.f32 0.0, %v3490
      %v3492 = vpop.f32.mrb[0].mxu0
      %3493 = vmatprep.mubr.f32.mxu0 0.0
      %3494 = vmatmul.mubr.f32.gmra.mrb[0].mxu0 %v3325
      %v3495 = vpop.f32.mrb[0].mxu0
      %v3496 = vadd.f32 0.0, %v3495
      %v3497 = vpop.f32.mrb[0].mxu0
      %3498 = vmatprep.mubr.f32.mxu0 0.0
      %3499 = vmatmul.mubr.f32.gmra.mrb[0].mxu0 %v3328
      %v3500 = vpop.f32.mrb[0].mxu0
      %v3501 = vadd.f32 0.0, %v3500
      %v3502 = vpop.f32.mrb[0].mxu0
      %3503 = vmatprep.mubr.f32.mxu0 0.0
      %3504 = vmatmul.mubr.f32.gmra.mrb[0].mxu0 %v3331
      %v3505 = vpop.f32.mrb[0].mxu0
      %v3506 = vadd.f32 0.0, %v3505
      %v3507 = vpop.f32.mrb[0].mxu0
      %3508 = vmatprep.mubr.f32.mxu0 0.0
      %3509 = vmatmul.mubr.f32.gmra.mrb[0].mxu0 %v3334
      %v3510 = vpop.f32.mrb[0].mxu0
      %v3511 = vadd.f32 0.0, %v3510
      %v3512 = vpop.f32.mrb[0].mxu0
      %3513 = vmatprep.mubr.f32.mxu0 0.0
      %3514 = vmatmul.mubr.f32.gmra.mrb[0].mxu0 %v3337
      %v3515 = vpop.f32.mrb[0].mxu0
      %v3516 = vadd.f32 0.0, %v3515
      %v3517 = vpop.f32.mrb[0].mxu0
      %3518 = vmatprep.mubr.f32.mxu0 0.0
      %3519 = vmatmul.mubr.f32.gmra.mrb[0].mxu0 %v3340
      %v3520 = vpop.f32.mrb[0].mxu0
      %v3521 = vadd.f32 0.0, %v3520
      %v3522 = vpop.f32.mrb[0].mxu0
      %3523 = vmatprep.mubr.f32.mxu0 0.0
      %3524 = vmatmul.mubr.f32.gmra.mrb[0].mxu0 %v3343
      %v3525 = vpop.f32.mrb[0].mxu0
      %v3526 = vadd.f32 0.0, %v3525
      %v3527 = vpop.f32.mrb[0].mxu0
      %3528 = vmatprep.mubr.f32.mxu0 0.0
      %3529 = vmatmul.mubr.f32.gmra.mrb[0].mxu0 %v3346
      %v3530 = vpop.f32.mrb[0].mxu0
      %v3531 = vadd.f32 0.0, %v3530
      %v3532 = vpop.f32.mrb[0].mxu0
      %3533 = vmatprep.mubr.f32.mxu0 0.0
      %3534 = vmatmul.mubr.f32.gmra.mrb[0].mxu0 %v3349
      %v3535 = vpop.f32.mrb[0].mxu0
      %v3536 = vadd.f32 0.0, %v3535
      %v3537 = vpop.f32.mrb[0].mxu0
      %3538 = vmatprep.mubr.f32.mxu0 0.0
      %3539 = vmatmul.mubr.f32.gmra.mrb[0].mxu0 %v3352
      %v3540 = vpop.f32.mrb[0].mxu0
      %v3541 = vadd.f32 0.0, %v3540
      %v3542 = vpop.f32.mrb[0].mxu0
      %3543 = vmatprep.mubr.f32.mxu0 0.0
      %3544 = vmatmul.mubr.f32.gmra.mrb[0].mxu0 %v3355
      %v3545 = vpop.f32.mrb[0].mxu0
      %v3546 = vadd.f32 0.0, %v3545
      %v3547 = vpop.f32.mrb[0].mxu0
      %3548 = vmatprep.mubr.f32.mxu0 0.0
      %3549 = vmatmul.mubr.f32.gmra.mrb[0].mxu0 %v3358
      %v3550 = vpop.f32.mrb[0].mxu0
      %v3551 = vadd.f32 0.0, %v3550
      %v3552 = vpop.f32.mrb[0].mxu0
      %3553 = vmatprep.mubr.f32.mxu0 0.0
      %3554 = vmatmul.mubr.f32.gmra.mrb[0].mxu0 %v3361
      %v3555 = vpop.f32.mrb[0].mxu0
      %v3556 = vadd.f32 0.0, %v3555
      %v3557 = vpop.f32.mrb[0].mxu0
      %3558 = vmatprep.mubr.f32.mxu0 0.0
      %3559 = vmatmul.mubr.f32.gmra.mrb[0].mxu0 %v3364
      %v3560 = vpop.f32.mrb[0].mxu0
      %v3561 = vadd.f32 0.0, %v3560
      %v3562 = vpop.f32.mrb[0].mxu0
      %3563 = vmatprep.mubr.f32.mxu0 0.0
      %3564 = vmatmul.mubr.f32.gmra.mrb[0].mxu0 %v3367
      %v3565 = vpop.f32.mrb[0].mxu0
      %v3566 = vadd.f32 0.0, %v3565
      %v3567 = vpop.f32.mrb[0].mxu0
      %3568 = vmatprep.mubr.f32.mxu0 0.0
      %3569 = vmatmul.mubr.f32.gmra.mrb[0].mxu0 %v3370
      %v3570 = vpop.f32.mrb[0].mxu0
      %v3571 = vadd.f32 0.0, %v3570
      %v3572 = vpop.f32.mrb[0].mxu0
      %3573 = vmatprep.mubr.f32.mxu0 0.0
      %3574 = vmatmul.mubr.f32.gmra.mrb[0].mxu0 %v3373
      %v3575 = vpop.f32.mrb[0].mxu0
      %v3576 = vadd.f32 0.0, %v3575
      %v3577 = vpop.f32.mrb[0].mxu0
      %3578 = vmatprep.mubr.f32.mxu0 0.0
      %3579 = vmatmul.mubr.f32.gmra.mrb[0].mxu0 %v3376
      %v3580 = vpop.f32.mrb[0].mxu0
      %v3581 = vadd.f32 0.0, %v3580
      %v3582 = vpop.f32.mrb[0].mxu0
      %3583 = vmatprep.mubr.f32.mxu0 0.0
      %3584 = vmatmul.mubr.f32.gmra.mrb[0].mxu0 %v3379
      %v3585 = vpop.f32.mrb[0].mxu0
      %v3586 = vadd.f32 0.0, %v3585
      %v3587 = vpop.f32.mrb[0].mxu0
      %3588 = vmatprep.mubr.f32.mxu0 0.0
      %3589 = vmatmul.mubr.f32.gmra.mrb[0].mxu0 %v3382
      %v3590 = vpop.f32.mrb[0].mxu0
      %v3591 = vadd.f32 0.0, %v3590
      %v3592 = vpop.f32.mrb[0].mxu0
      %3593 = vmatprep.mubr.f32.mxu0 0.0
      %3594 = vmatmul.mubr.f32.gmra.mrb[0].mxu0 %v3385
      %v3595 = vpop.f32.mrb[0].mxu0
      %v3596 = vadd.f32 0.0, %v3595
      %v3597 = vpop.f32.mrb[0].mxu0
      %3598 = vmatprep.mubr.f32.mxu0 0.0
      %3599 = vmatmul.mubr.f32.gmra.mrb[0].mxu0 %v3388
      %v3600 = vpop.f32.mrb[0].mxu0
      %v3601 = vadd.f32 0.0, %v3600
      %v3602 = vpop.f32.mrb[0].mxu0
      %3603 = vmatprep.mubr.f32.mxu0 0.0
      %3604 = vmatmul.mubr.f32.gmra.mrb[0].mxu0 %v3391
      %v3605 = vpop.f32.mrb[0].mxu0
      %v3606 = vadd.f32 0.0, %v3605
      %v3607 = vpop.f32.mrb[0].mxu0
      %3608 = vmatprep.mubr.f32.mxu0 0.0
      %3609 = vmatmul.mubr.f32.gmra.mrb[0].mxu0 %v3394
      %v3610 = vpop.f32.mrb[0].mxu0
      %v3611 = vadd.f32 0.0, %v3610
      %v3612 = vpop.f32.mrb[0].mxu0
      %3613 = vmatprep.mubr.f32.mxu0 0.0
      %3614 = vmatmul.mubr.f32.gmra.mrb[0].mxu0 %v3397
      %v3615 = vpop.f32.mrb[0].mxu0
      %v3616 = vadd.f32 0.0, %v3615
      %v3617 = vpop.f32.mrb[0].mxu0
      %3618 = vmatprep.mubr.f32.mxu0 0.0
      %3619 = vmatmul.mubr.f32.gmra.mrb[0].mxu0 %v3400
      %v3620 = vpop.f32.mrb[0].mxu0
      %v3621 = vadd.f32 0.0, %v3620
      %v3622 = vpop.f32.mrb[0].mxu0
      %3623 = vmatprep.mubr.f32.mxu0 0.0
      %3624 = vmatmul.mubr.f32.gmra.mrb[0].mxu0 %v3403
      %v3625 = vpop.f32.mrb[0].mxu0
      %v3626 = vadd.f32 0.0, %v3625
      %v3627 = vpop.f32.mrb[0].mxu0
      %3628 = vmatprep.mubr.f32.mxu0 0.0
      %3629 = vmatmul.mubr.f32.gmra.mrb[0].mxu0 %v3406
      %v3630 = vpop.f32.mrb[0].mxu0
      %v3631 = vadd.f32 0.0, %v3630
      %v3632 = vpop.f32.mrb[0].mxu0
      %3633 = vmatprep.mubr.f32.mxu0 0.0
      %3634 = vmatmul.mubr.f32.gmra.mrb[0].mxu0 %v3409
      %v3635 = vpop.f32.mrb[0].mxu0
      %v3636 = vadd.f32 0.0, %v3635
      %v3637 = vpop.f32.mrb[0].mxu0
      %3638 = vdwg.mxu0
      %v3639 = vadd.f32 %v3249, %v3481
      %v3640 = vadd.f32 %v3250, %v3486
      %v3641 = vadd.f32 %v3251, %v3491
      %v3642 = vadd.f32 %v3252, %v3496
      %v3643 = vadd.f32 %v3253, %v3501
      %v3644 = vadd.f32 %v3254, %v3506
      %v3645 = vadd.f32 %v3255, %v3511
      %v3646 = vadd.f32 %v3256, %v3516
      %v3647 = vadd.f32 %v3257, %v3521
      %v3648 = vadd.f32 %v3258, %v3526
      %v3649 = vadd.f32 %v3259, %v3531
      %v3650 = vadd.f32 %v3260, %v3536
      %v3651 = vadd.f32 %v3261, %v3541
      %v3652 = vadd.f32 %v3262, %v3546
      %v3653 = vadd.f32 %v3263, %v3551
      %v3654 = vadd.f32 %v3264, %v3556
      %v3655 = vadd.f32 %v3265, %v3561
      %v3656 = vadd.f32 %v3266, %v3566
      %v3657 = vadd.f32 %v3267, %v3571
      %v3658 = vadd.f32 %v3268, %v3576
      %v3659 = vadd.f32 %v3269, %v3581
      %v3660 = vadd.f32 %v3270, %v3586
      %v3661 = vadd.f32 %v3271, %v3591
      %v3662 = vadd.f32 %v3272, %v3596
      %v3663 = vadd.f32 %v3273, %v3601
      %v3664 = vadd.f32 %v3274, %v3606
      %v3665 = vadd.f32 %v3275, %v3611
      %v3666 = vadd.f32 %v3276, %v3616
      %v3667 = vadd.f32 %v3277, %v3621
      %v3668 = vadd.f32 %v3278, %v3626
      %v3669 = vadd.f32 %v3279, %v3631
      %v3670 = vadd.f32 %v3280, %v3636
      %3671 = vst [vmem:[%s206] sm:$0xff] %v3639
      %3672 = vst [vmem:[%s206 + $0x8] sm:$0xff] %v3640
      %3673 = vst [vmem:[%s206 + $0x10] sm:$0xff] %v3641
      %3674 = vst [vmem:[%s206 + $0x18] sm:$0xff] %v3642
      %3675 = vst [vmem:[%s206 + $0x20] sm:$0xff] %v3643
      %3676 = vst [vmem:[%s206 + $0x28] sm:$0xff] %v3644
      %3677 = vst [vmem:[%s206 + $0x30] sm:$0xff] %v3645
      %3678 = vst [vmem:[%s206 + $0x38] sm:$0xff] %v3646
      %3679 = vst [vmem:[%s206 + $0x40] sm:$0xff] %v3647
      %3680 = vst [vmem:[%s206 + $0x48] sm:$0xff] %v3648
      %3681 = vst [vmem:[%s206 + $0x50] sm:$0xff] %v3649
      %3682 = vst [vmem:[%s206 + $0x58] sm:$0xff] %v3650
      %3683 = vst [vmem:[%s206 + $0x60] sm:$0xff] %v3651
      %3684 = vst [vmem:[%s206 + $0x68] sm:$0xff] %v3652
      %3685 = vst [vmem:[%s206 + $0x70] sm:$0xff] %v3653
      %3686 = vst [vmem:[%s206 + $0x78] sm:$0xff] %v3654
      %3687 = vst [vmem:[%s206 + $0x80] sm:$0xff] %v3655
      %3688 = vst [vmem:[%s206 + $0x88] sm:$0xff] %v3656
      %3689 = vst [vmem:[%s206 + $0x90] sm:$0xff] %v3657
      %3690 = vst [vmem:[%s206 + $0x98] sm:$0xff] %v3658
      %3691 = vst [vmem:[%s206 + $0xa0] sm:$0xff] %v3659
      %3692 = vst [vmem:[%s206 + $0xa8] sm:$0xff] %v3660
      %3693 = vst [vmem:[%s206 + $0xb0] sm:$0xff] %v3661
      %3694 = vst [vmem:[%s206 + $0xb8] sm:$0xff] %v3662
      %3695 = vst [vmem:[%s206 + $0xc0] sm:$0xff] %v3663
      %3696 = vst [vmem:[%s206 + $0xc8] sm:$0xff] %v3664
      %3697 = vst [vmem:[%s206 + $0xd0] sm:$0xff] %v3665
      %3698 = vst [vmem:[%s206 + $0xd8] sm:$0xff] %v3666
      %3699 = vst [vmem:[%s206 + $0xe0] sm:$0xff] %v3667
      %3700 = vst [vmem:[%s206 + $0xe8] sm:$0xff] %v3668
      %3701 = vst [vmem:[%s206 + $0xf0] sm:$0xff] %v3669
      %3702 = vst [vmem:[%s206 + $0xf8] sm:$0xff] %v3670
      %v3703 = vlaneseq
      %v3704 = vshrl.u32 %v3703, 7
      %v3705 = vadd.f32 %v3639, %v3640
      %v3706 = vadd.f32 %v3705, %v3641
      %v3707 = vadd.f32 %v3706, %v3642
      %v3708 = vadd.f32 %v3707, %v3643
      %v3709 = vadd.f32 %v3708, %v3644
      %v3710 = vadd.f32 %v3709, %v3645
      %v3711 = vadd.f32 %v3710, %v3646
      %v3712 = vadd.f32 %v3711, %v3647
      %v3713 = vadd.f32 %v3712, %v3648
      %v3714 = vadd.f32 %v3713, %v3649
      %v3715 = vadd.f32 %v3714, %v3650
      %v3716 = vadd.f32 %v3715, %v3651
      %v3717 = vadd.f32 %v3716, %v3652
      %v3718 = vadd.f32 %v3717, %v3653
      %v3719 = vadd.f32 %v3718, %v3654
      %v3720 = vadd.f32 %v3719, %v3655
      %v3721 = vadd.f32 %v3720, %v3656
      %v3722 = vadd.f32 %v3721, %v3657
      %v3723 = vadd.f32 %v3722, %v3658
      %v3724 = vadd.f32 %v3723, %v3659
      %v3725 = vadd.f32 %v3724, %v3660
      %v3726 = vadd.f32 %v3725, %v3661
      %v3727 = vadd.f32 %v3726, %v3662
      %v3728 = vadd.f32 %v3727, %v3663
      %v3729 = vadd.f32 %v3728, %v3664
      %v3730 = vadd.f32 %v3729, %v3665
      %v3731 = vadd.f32 %v3730, %v3666
      %v3732 = vadd.f32 %v3731, %v3667
      %v3733 = vadd.f32 %v3732, %v3668
      %v3734 = vadd.f32 %v3733, %v3669
      %v3735 = vadd.f32 %v3734, %v3670
      %v3736 = vrot.slane %v3735, 4
      %v3737 = vadd.f32 %v3735, %v3736
      %v3738 = vrot.slane %v3737, 2
      %v3739 = vadd.f32 %v3737, %v3738
      %v3740 = vrot.slane %v3739, 1
      %v3741 = vadd.f32 %v3739, %v3740
      %v3742 = vmul.f32 %v3639, %v3639
      %v3743 = vmul.f32 %v3640, %v3640
      %v3744 = vmul.f32 %v3641, %v3641
      %v3745 = vmul.f32 %v3642, %v3642
      %v3746 = vmul.f32 %v3643, %v3643
      %v3747 = vmul.f32 %v3644, %v3644
      %v3748 = vmul.f32 %v3645, %v3645
      %v3749 = vmul.f32 %v3646, %v3646
      %v3750 = vmul.f32 %v3647, %v3647
      %v3751 = vmul.f32 %v3648, %v3648
      %v3752 = vmul.f32 %v3649, %v3649
      %v3753 = vmul.f32 %v3650, %v3650
      %v3754 = vmul.f32 %v3651, %v3651
      %v3755 = vmul.f32 %v3652, %v3652
      %v3756 = vmul.f32 %v3653, %v3653
      %v3757 = vmul.f32 %v3654, %v3654
      %v3758 = vmul.f32 %v3655, %v3655
      %v3759 = vmul.f32 %v3656, %v3656
      %v3760 = vmul.f32 %v3657, %v3657
      %v3761 = vmul.f32 %v3658, %v3658
      %v3762 = vmul.f32 %v3659, %v3659
      %v3763 = vmul.f32 %v3660, %v3660
      %v3764 = vmul.f32 %v3661, %v3661
      %v3765 = vmul.f32 %v3662, %v3662
      %v3766 = vmul.f32 %v3663, %v3663
      %v3767 = vmul.f32 %v3664, %v3664
      %v3768 = vmul.f32 %v3665, %v3665
      %v3769 = vmul.f32 %v3666, %v3666
      %v3770 = vmul.f32 %v3667, %v3667
      %v3771 = vmul.f32 %v3668, %v3668
      %v3772 = vmul.f32 %v3669, %v3669
      %v3773 = vmul.f32 %v3670, %v3670
      %v3774 = vadd.f32 %v3742, %v3743
      %v3775 = vadd.f32 %v3774, %v3744
      %v3776 = vadd.f32 %v3775, %v3745
      %v3777 = vadd.f32 %v3776, %v3746
      %v3778 = vadd.f32 %v3777, %v3747
      %v3779 = vadd.f32 %v3778, %v3748
      %v3780 = vadd.f32 %v3779, %v3749
      %v3781 = vadd.f32 %v3780, %v3750
      %v3782 = vadd.f32 %v3781, %v3751
      %v3783 = vadd.f32 %v3782, %v3752
      %v3784 = vadd.f32 %v3783, %v3753
      %v3785 = vadd.f32 %v3784, %v3754
      %v3786 = vadd.f32 %v3785, %v3755
      %v3787 = vadd.f32 %v3786, %v3756
      %v3788 = vadd.f32 %v3787, %v3757
      %v3789 = vadd.f32 %v3788, %v3758
      %v3790 = vadd.f32 %v3789, %v3759
      %v3791 = vadd.f32 %v3790, %v3760
      %v3792 = vadd.f32 %v3791, %v3761
      %v3793 = vadd.f32 %v3792, %v3762
      %v3794 = vadd.f32 %v3793, %v3763
      %v3795 = vadd.f32 %v3794, %v3764
      %v3796 = vadd.f32 %v3795, %v3765
      %v3797 = vadd.f32 %v3796, %v3766
      %v3798 = vadd.f32 %v3797, %v3767
      %v3799 = vadd.f32 %v3798, %v3768
      %v3800 = vadd.f32 %v3799, %v3769
      %v3801 = vadd.f32 %v3800, %v3770
      %v3802 = vadd.f32 %v3801, %v3771
      %v3803 = vadd.f32 %v3802, %v3772
      %v3804 = vadd.f32 %v3803, %v3773
      %v3805 = vrot.slane %v3804, 4
      %v3806 = vadd.f32 %v3804, %v3805
      %v3807 = vrot.slane %v3806, 2
      %v3808 = vadd.f32 %v3806, %v3807
      %v3809 = vrot.slane %v3808, 1
      %v3810 = vadd.f32 %v3808, %v3809
      %vm3811 = vcmp.eq.s32.totalorder %v3704, 0
      %vm3812 = vcmp.eq.s32.totalorder %v3704, 1
      %v3813 = vsel %vm3812, %v3810, 0.0
      %v3814 = vsel %vm3811, %v3741, %v3813
      %3815 = vst [vmem:[%s214] sm:$0xff] %v3814
      %s3816 = smul.u32 16, %s20
      %p3817 = scmp.lt.s32.totalorder %s19, 1
      %s3818 = scalar_select %p3817, %s19, 1
      %p3819 = scmp.lt.s32.totalorder %s3816, 15
      %s3820 = scalar_select %p3819, %s3816, 15
      %s3821 = smul.addr %s3820, 2
      %s3822 = smul.addr %s3818, 32
      %s3823 = sadd.s32 %s3821, %s3822
      %s3824 = smul.addr %s3823, 8
      %s3825 = scalar_lea.vmem %s2, %s3824
      %p3826 = scmp.lt.s32.totalorder %s19, 1
      %s3827 = scalar_select %p3826, %s19, 1
      %p3828 = scmp.lt.s32.totalorder %s20, 0
      %s3829 = scalar_select %p3828, %s20, 0
      %s3830 = sadd.s32 %s3829, %s3827
      %s3831 = smul.addr %s3830, 8
      %s3832 = scalar_lea.vmem %s3, %s3831
      // Predicated region
      $region29: #{cnn_block_forward.2} parent=27 // pred_check
        %p3833 = pneg %p94
      $region30: #{cnn_block_forward.2} parent=27 // pred_check_branch
        %3835 = sbr.rel (%p3833) target = $region32
      $region31: #{cnn_block_forward.2} parent=27 // pred_region
        %s3836 = smul.u32 16, %s20
      $region32: #{cnn_block_forward.2} parent=27 // pred_fallthru
        _
      // Predicated region
      $region33: #{cnn_block_forward.2} parent=27 // pred_check
        %p3837 = pneg %p122
      $region34: #{cnn_block_forward.2} parent=27 // pred_check_branch
        %3839 = sbr.rel (%p3837) target = $region36
      $region35: #{cnn_block_forward.2} parent=27 // pred_region
        _
      $region36: #{cnn_block_forward.2} parent=27 // pred_fallthru
        _
    $region28: #{cnn_block_forward.2} parent=5 // pred_fallthru
      _
    %p3840 = scmp.le.s32.totalorder 2, %s10
    // Predicated region
    $region37: #{cnn_block_forward.2} parent=5 // pred_check
      %p3841 = pneg %p3840
    $region38: #{cnn_block_forward.2} parent=5 // pred_check_branch
      %3843 = sbr.rel (%p3841) target = $region40
    $region39: #{cnn_block_forward.2} parent=5 // pred_region
      %s3844 = ssub.s32 %s10, 2
      // Predicated region
      $region41: #{cnn_block_forward.2} parent=39 // pred_check
        %p3845 = pneg %p100
      $region42: #{cnn_block_forward.2} parent=39 // pred_check_branch
        %3847 = sbr.rel (%p3845) target = $region44
      $region43: #{cnn_block_forward.2} parent=39 // pred_region
        %s3848 = smul.u32 16, %s22
        %p3849 = scmp.lt.s32.totalorder %s21, 1
        %s3850 = scalar_select %p3849, %s21, 1
        %p3851 = scmp.lt.s32.totalorder %s3848, 15
        %s3852 = scalar_select %p3851, %s3848, 15
        %s3853 = smul.addr %s3852, 2
        %s3854 = smul.addr %s3850, 32
        %s3855 = sadd.s32 %s3853, %s3854
        %s3856 = smul.addr %s3855, 8
        %s3857 = scalar_lea.vmem %s2, %s3856
      $region44: #{cnn_block_forward.2} parent=39 // pred_fallthru
        _
      // Predicated region
      $region45: #{cnn_block_forward.2} parent=39 // pred_check
        %p3858 = pneg %p128
      $region46: #{cnn_block_forward.2} parent=39 // pred_check_branch
        %3860 = sbr.rel (%p3858) target = $region48
      $region47: #{cnn_block_forward.2} parent=39 // pred_region
        %p3861 = scmp.lt.s32.totalorder %s21, 1
        %s3862 = scalar_select %p3861, %s21, 1
        %p3863 = scmp.lt.s32.totalorder %s22, 0
        %s3864 = scalar_select %p3863, %s22, 0
        %s3865 = sadd.s32 %s3864, %s3862
        %s3866 = smul.addr %s3865, 8
        %s3867 = scalar_lea.vmem %s3, %s3866
      $region48: #{cnn_block_forward.2} parent=39 // pred_fallthru
        _
    $region40: #{cnn_block_forward.2} parent=5 // pred_fallthru
      _
  $region6: #{cnn_block_forward.2} parent=0 // loop_footer
    %s14 = sadd.s32 1, %s10
  $region7: #{cnn_block_forward.2} parent=0 // loop_footer_branch
    %9 = sbr.rel target = $region3
  $region8: #{cnn_block_forward.2} parent=0 // loop_exit
    _

</llo_original>
